<compile_context>
chip_gen: v7x
topology: tpu7x:2x2x1
jax: 0.10.0
libtpu: 0.0.40
codegen_flags: <defaults>
</compile_context>

<pallas_src>
import math
from functools import partial

import jax
import jax.numpy as jnp
from jax.experimental import pallas as pl
from jax.experimental.pallas import tpu as pltpu


# ----------------------------------------------------------------------------
# small helpers
# ----------------------------------------------------------------------------
def _round_up(x, m):
    return ((x + m - 1) // m) * m


def _erf(x):
    # Abramowitz & Stegun 7.1.26 polynomial erf (max abs err ~1.5e-7),
    # used for exact-style (erf) GELU matching PyTorch nn.GELU default.
    a1, a2, a3, a4, a5 = (0.254829592, -0.284496736, 1.421413741,
                          -1.453152027, 1.061405429)
    pc = 0.3275911
    sign = jnp.where(x >= 0.0, 1.0, -1.0)
    ax = jnp.abs(x)
    t = 1.0 / (1.0 + pc * ax)
    poly = ((((a5 * t + a4) * t + a3) * t + a2) * t + a1) * t
    return sign * (1.0 - poly * jnp.exp(-ax * ax))


def _gelu(x):
    return 0.5 * x * (1.0 + _erf(x * 0.7071067811865476))


def _layernorm(x, g, b, eps=1e-6):
    # nn.LayerNorm semantics (biased variance); eps=1e-6 per torchvision ViT.
    mu = jnp.mean(x, axis=-1, keepdims=True)
    var = jnp.mean((x - mu) * (x - mu), axis=-1, keepdims=True)
    return (x - mu) * jax.lax.rsqrt(var + eps) * g + b


def _row_spec(rows, cols):
    return pl.BlockSpec((rows, cols), lambda i: (i, 0))


def _const_spec(a):
    # Full-array block, constant index across the grid -> fetched once.
    return pl.BlockSpec(a.shape, lambda i, n=a.ndim: (0,) * n)


TM = 128          # token-row tile for encoder kernels (S is padded to 128k)
TM_PATCH = 256    # row tile for the patch-embedding matmul


# ----------------------------------------------------------------------------
# Kernel 1: patch embedding (Conv2d k=p, s=p  ==  row-tiled patch matmul)
# ----------------------------------------------------------------------------
def _patch_embed_kernel(p_ref, w_ref, b_ref, o_ref):
    o_ref[...] = (jnp.dot(p_ref[...].astype(jnp.bfloat16), w_ref[...],
                          preferred_element_type=jnp.float32) + b_ref[...])


def patch_embed(patches, w, b):
    # patches: [T, C*p*p] f32, w: [C*p*p, D] bf16, b: [1, D] f32 -> [T, D] f32
    T, F = patches.shape
    D = w.shape[1]
    Tp = _round_up(T, TM_PATCH)
    patches = jnp.pad(patches, ((0, Tp - T), (0, 0)))
    out = pl.pallas_call(
        _patch_embed_kernel,
        out_shape=jax.ShapeDtypeStruct((Tp, D), jnp.float32),
        grid=(Tp // TM_PATCH,),
        in_specs=[_row_spec(TM_PATCH, F), _const_spec(w), _const_spec(b)],
        out_specs=_row_spec(TM_PATCH, D),
        compiler_params=pltpu.CompilerParams(dimension_semantics=("parallel",)),
    )(patches, w, b)
    return out[:T]


# ----------------------------------------------------------------------------
# Kernel 2: LayerNorm1 + QKV projection (row-tiled)
# ----------------------------------------------------------------------------
def _ln_qkv_kernel(x_ref, g_ref, b_ref, w_ref, bq_ref, o_ref):
    h = _layernorm(x_ref[...], g_ref[...], b_ref[...])         # f32 (TM, D)
    o_ref[...] = (jnp.dot(h.astype(jnp.bfloat16), w_ref[...],
                          preferred_element_type=jnp.float32)
                  + bq_ref[...]).astype(jnp.bfloat16)


def ln_qkv(x, g, b, w, bq):
    # x: [N, D] f32 -> qkv: [N, 3D] bf16
    N, D = x.shape
    D3 = w.shape[1]
    return pl.pallas_call(
        _ln_qkv_kernel,
        out_shape=jax.ShapeDtypeStruct((N, D3), jnp.bfloat16),
        grid=(N // TM,),
        in_specs=[_row_spec(TM, D), _const_spec(g), _const_spec(b),
                  _const_spec(w), _const_spec(bq)],
        out_specs=_row_spec(TM, D3),
        compiler_params=pltpu.CompilerParams(dimension_semantics=("parallel",)),
    )(x, g, b, w, bq)


# ----------------------------------------------------------------------------
# Kernel 3: multi-head self-attention core + fused out-projection + residual
#            (all heads batched, one grid step per batch element)
# ----------------------------------------------------------------------------
def _attention_kernel(q_ref, k_ref, v_ref, x_ref, wo_ref, bo_ref, o_ref,
                      *, s_valid, scale):
    q = q_ref[0]                                    # (H, S, dh) bf16
    k = k_ref[0]
    v = v_ref[0]
    s = jnp.einsum('hqd,hkd->hqk', q, k,
                   preferred_element_type=jnp.float32) * scale   # (H,S,S) f32
    # mask padded key positions (sequence was padded up to a multiple of 128)
    key_ids = jax.lax.broadcasted_iota(jnp.int32, s.shape, 2)
    s = jnp.where(key_ids < s_valid, s, -1e30)
    m = jnp.max(s, axis=-1, keepdims=True)
    p = jnp.exp(s - m)
    denom = jnp.sum(p, axis=-1, keepdims=True)
    p = p * pl.reciprocal(denom, approx=True)        # EUP, not VALU divide
    ctx = jnp.einsum('hqk,hkd->hqd', p.astype(jnp.bfloat16), v,
                     preferred_element_type=jnp.float32)          # (H,S,dh)
    # Fused out-projection: per-head matmul against the head-split W_o, then
    # a cheap leading-dim sum.  Avoids the (H,S,dh)->(S,D) transpose and the
    # HBM round trip of ctx entirely.
    attn = jnp.einsum('hqd,hdo->hqo', ctx.astype(jnp.bfloat16), wo_ref[...],
                      preferred_element_type=jnp.float32)         # (H,S,D)
    attn = jnp.sum(attn, axis=0) + bo_ref[...]                    # (S,D) f32
    o_ref[0] = x_ref[0] + attn                                    # residual 1


def attention_block(q, k, v, x, wo_heads, bo, *, s_valid):
    # q,k,v: [B,H,S,dh] bf16, x: [B,S,D] f32, wo_heads: [H,dh,D] bf16
    # returns x + MHA(LN1(x)) : [B,S,D] f32
    B, H, S, dh = q.shape
    D = x.shape[-1]
    scale = 1.0 / math.sqrt(dh)
    qkv_blk = pl.BlockSpec((1, H, S, dh), lambda b: (b, 0, 0, 0))
    x_blk = pl.BlockSpec((1, S, D), lambda b: (b, 0, 0))
    return pl.pallas_call(
        partial(_attention_kernel, s_valid=s_valid, scale=scale),
        out_shape=jax.ShapeDtypeStruct((B, S, D), jnp.float32),
        grid=(B,),
        in_specs=[qkv_blk, qkv_blk, qkv_blk, x_blk,
                  _const_spec(wo_heads), _const_spec(bo)],
        out_specs=x_blk,
        compiler_params=pltpu.CompilerParams(dimension_semantics=("parallel",)),
    )(q, k, v, x, wo_heads, bo)


# ----------------------------------------------------------------------------
# Kernel 4: LayerNorm2 + MLP + residual (row-tiled)
# ----------------------------------------------------------------------------
def _mlp_kernel(x_ref, g_ref, b_ref, w1_ref, b1_ref, w2_ref, b2_ref, o_ref):
    x = x_ref[...]                                              # (TM, D) f32
    h = _layernorm(x, g_ref[...], b_ref[...])
    m = (jnp.dot(h.astype(jnp.bfloat16), w1_ref[...],
                 preferred_element_type=jnp.float32) + b1_ref[...])
    m = _gelu(m)                                                # f32
    y = (jnp.dot(m.astype(jnp.bfloat16), w2_ref[...],
                 preferred_element_type=jnp.float32) + b2_ref[...])
    o_ref[...] = x + y                                          # residual 2


def mlp_block(x, g, b, w1, b1, w2, b2):
    # x: [N, D] f32 (post-attention residual stream) -> [N, D] f32
    N, D = x.shape
    M = w1.shape[1]
    return pl.pallas_call(
        _mlp_kernel,
        out_shape=jax.ShapeDtypeStruct((N, D), jnp.float32),
        grid=(N // TM,),
        in_specs=[_row_spec(TM, D),
                  _const_spec(g), _const_spec(b),
                  _const_spec(w1), _const_spec(b1),
                  _const_spec(w2), _const_spec(b2)],
        out_specs=_row_spec(TM, D),
        compiler_params=pltpu.CompilerParams(dimension_semantics=("parallel",)),
    )(x, g, b, w1, b1, w2, b2)


# ----------------------------------------------------------------------------
# Kernel 5: final LayerNorm (on the class token) + classification head
# ----------------------------------------------------------------------------
def _head_kernel(cls_ref, g_ref, b_ref, w_ref, bh_ref, o_ref):
    x = _layernorm(cls_ref[...], g_ref[...], b_ref[...])
    o_ref[...] = (jnp.dot(x.astype(jnp.bfloat16), w_ref[...],
                          preferred_element_type=jnp.float32) + bh_ref[...])


def head(cls_tok, g, b, wh, bh):
    B = cls_tok.shape[0]
    C = wh.shape[1]
    return pl.pallas_call(
        _head_kernel,
        out_shape=jax.ShapeDtypeStruct((B, C), jnp.float32),
    )(cls_tok, g, b, wh, bh)


# ----------------------------------------------------------------------------
# One encoder layer (LN -> MHA(+out-proj+res) -> LN -> MLP -> +res)
# ----------------------------------------------------------------------------
def encoder_layer(x_flat, lp, *, batch, seq_pad, seq_valid, num_heads):
    N, D = x_flat.shape
    dh = D // num_heads
    qkv = ln_qkv(x_flat, lp['ln1_g'], lp['ln1_b'], lp['w_qkv'], lp['b_qkv'])
    # wrapper-side head split (layout plumbing, outside the kernels)
    qkv = qkv.reshape(batch, seq_pad, 3, num_heads, dh).transpose(2, 0, 3, 1, 4)
    wo_heads = lp['w_o'].reshape(num_heads, dh, D)       # head-split out-proj
    x_bsd = x_flat.reshape(batch, seq_pad, D)
    x1 = attention_block(qkv[0], qkv[1], qkv[2], x_bsd, wo_heads, lp['b_o'],
                         s_valid=seq_valid)              # (B, S, D) f32
    x1 = x1.reshape(N, D)
    return mlp_block(x1, lp['ln2_g'], lp['ln2_b'],
                     lp['w1'], lp['b1'], lp['w2'], lp['b2'])


# ----------------------------------------------------------------------------
# Parameters (deterministic synthetic init; shapes follow the PyTorch module)
# ----------------------------------------------------------------------------
def init_params(key, *, image_size, patch_size, in_channels, hidden_dim,
                mlp_dim, num_layers, num_classes):
    p = patch_size
    seq = (image_size // p) ** 2 + 1
    D, M = hidden_dim, mlp_dim
    keys = iter(jax.random.split(key, 8 + 8 * num_layers))

    def nrm(shape, std):
        return std * jax.random.normal(next(keys), shape, jnp.float32)

    def bf16(a):
        return a.astype(jnp.bfloat16)

    fan_in = in_channels * p * p
    conv_w = nrm((D, in_channels, p, p), math.sqrt(1.0 / fan_in))  # [D,C,p,p]

    params = {
        'w_patch': bf16(conv_w.reshape(D, fan_in).T),     # [C*p*p, D] bf16
        'b_patch': jnp.zeros((1, D), jnp.float32),
        'class_token': jnp.zeros((1, 1, D), jnp.float32),
        'pos_embedding': nrm((1, seq, D), 0.02),
        'ln_g': jnp.ones((1, D), jnp.float32),
        'ln_b': jnp.zeros((1, D), jnp.float32),
        # PyTorch zero-inits the head; small random here so the synthetic
        # kernel output is non-trivial (documented deviation).
        'w_head': bf16(nrm((D, num_classes), 0.02)),
        'b_head': jnp.zeros((1, num_classes), jnp.float32),
        'layers': [],
    }
    for _ in range(num_layers):
        params['layers'].append({
            'ln1_g': jnp.ones((1, D), jnp.float32),
            'ln1_b': jnp.zeros((1, D), jnp.float32),
            'w_qkv': bf16(nrm((D, 3 * D), math.sqrt(1.0 / D))),
            'b_qkv': jnp.zeros((1, 3 * D), jnp.float32),
            'w_o': bf16(nrm((D, D), math.sqrt(1.0 / D))),
            'b_o': jnp.zeros((1, D), jnp.float32),
            'ln2_g': jnp.ones((1, D), jnp.float32),
            'ln2_b': jnp.zeros((1, D), jnp.float32),
            'w1': bf16(nrm((D, M), math.sqrt(2.0 / (D + M)))),   # xavier-like
            'b1': 1e-6 * jax.random.normal(next(keys), (1, M), jnp.float32),
            'w2': bf16(nrm((M, D), math.sqrt(2.0 / (D + M)))),
            'b2': 1e-6 * jax.random.normal(next(keys), (1, D), jnp.float32),
        })
    return params


# ----------------------------------------------------------------------------
# Full forward pass (dropout p=0.0 -> identity; deep_prompts=None path)
# ----------------------------------------------------------------------------
def vit_forward(x_nchw, params, *, patch_size, num_heads):
    B, C, H, W = x_nchw.shape
    p = patch_size
    nh, nw = H // p, W // p
    D = params['w_patch'].shape[1]
    assert D % num_heads == 0, "hidden_dim must be divisible by num_heads"

    # NCHW -> patch matrix [B*nh*nw, C*p*p] (same contraction as Conv2d k=p,s=p)
    patches = x_nchw.reshape(B, C, nh, p, nw, p).transpose(0, 2, 4, 1, 3, 5)
    patches = patches.reshape(B * nh * nw, C * p * p).astype(jnp.float32)

    tokens = patch_embed(patches, params['w_patch'], params['b_patch'])
    tokens = tokens.reshape(B, nh * nw, D)

    cls = jnp.broadcast_to(params['class_token'], (B, 1, D))
    x = jnp.concatenate([cls, tokens], axis=1)        # [B, S0, D]
    x = x + params['pos_embedding']

    S0 = x.shape[1]
    S_pad = _round_up(S0, 128)                        # lane/sublane-dense seq
    x = jnp.pad(x, ((0, 0), (0, S_pad - S0), (0, 0)))
    x = x.reshape(B * S_pad, D)                       # flat token rows, f32

    for lp in params['layers']:
        x = encoder_layer(x, lp, batch=B, seq_pad=S_pad, seq_valid=S0,
                          num_heads=num_heads)

    # Final LayerNorm is per-token; applying it to the class token only is
    # identical to LN(x)[:, 0].
    cls_tok = x.reshape(B, S_pad, D)[:, 0, :]
    logits = head(cls_tok, params['ln_g'], params['ln_b'],
                  params['w_head'], params['b_head'])
    return logits


# TODO(synk): deep_prompts (prompt-tuning) branch of Encoder.forward not implemented.
# TODO(synk): conv_stem_configs / representation_size paths not implemented.
# TODO(synk): cross-call prefetch of next-layer weights (P10) for ViT-B scale.

if __name__ == "__main__":
    image_size, patch_size = 16, 4
    num_layers, num_heads = 2, 2
    hidden_dim, mlp_dim = 32, 64
    num_classes, batch = 10, 2

    key = jax.random.PRNGKey(0)
    kx, kp = jax.random.split(key)
    x = jax.random.normal(kx, (batch, 3, image_size, image_size), jnp.float32)
    params = init_params(kp, image_size=image_size, patch_size=patch_size,
                         in_channels=3, hidden_dim=hidden_dim, mlp_dim=mlp_dim,
                         num_layers=num_layers, num_classes=num_classes)

    fwd = jax.jit(partial(vit_forward, patch_size=patch_size,
                          num_heads=num_heads))
    out = fwd(x, params)
    out = jax.block_until_ready(out)
    assert out.shape == (batch, num_classes)
    assert bool(jnp.all(jnp.isfinite(out)))
    print("KERNEL_OK")
</pallas_src>

<mosaic_0001>
module attributes {stable_mosaic.version = 11 : i64} {
  func.func @_patch_embed_kernel(%arg0: i32, %arg1: memref<256x48xf32, #tpu.memory_space<vmem>>, %arg2: memref<48x32xbf16, #tpu.memory_space<vmem>>, %arg3: memref<1x32xf32, #tpu.memory_space<vmem>>, %arg4: memref<256x32xf32, #tpu.memory_space<vmem>>) attributes {dimension_semantics = [#tpu.dimension_semantics<parallel>], iteration_bounds = array<i64: 1>, scalar_prefetch = 0 : i64, scratch_operands = 0 : i64, tpu.core_type = #tpu.core_type<tc>, window_params = [{transform_indices = @transform_0, window_bounds = array<i64: 256, 48>}, {pipeline_mode = #tpu.pipeline_mode<synchronous>, transform_indices = @transform_1, window_bounds = array<i64: 48, 32>}, {pipeline_mode = #tpu.pipeline_mode<synchronous>, transform_indices = @transform_2, window_bounds = array<i64: 1, 32>}, {transform_indices = @transform_3, window_bounds = array<i64: 256, 32>}]} {
    %c0 = arith.constant 0 : index
    %c0_0 = arith.constant 0 : index
    %0 = vector.load %arg1[%c0, %c0_0] : memref<256x48xf32, #tpu.memory_space<vmem>>, vector<256x48xf32>
    %1 = arith.truncf %0 : vector<256x48xf32> to vector<256x48xbf16>
    %c0_1 = arith.constant 0 : index
    %c0_2 = arith.constant 0 : index
    %2 = vector.load %arg2[%c0_1, %c0_2] : memref<48x32xbf16, #tpu.memory_space<vmem>>, vector<48x32xbf16>
    %cst = arith.constant dense<0.000000e+00> : vector<256x32xf32>
    %3 = tpu.matmul %1, %2, %cst {dimension_numbers = #tpu.dot_dimension_numbers<[1], [0], [0], [1], [0, 0, 1, 1], [], []>} : vector<256x48xbf16>, vector<48x32xbf16>, vector<256x32xf32> -> vector<256x32xf32>
    %c0_3 = arith.constant 0 : index
    %c0_4 = arith.constant 0 : index
    %4 = vector.load %arg3[%c0_3, %c0_4] : memref<1x32xf32, #tpu.memory_space<vmem>>, vector<1x32xf32>
    %5 = vector.broadcast %4 : vector<1x32xf32> to vector<256x32xf32>
    %6 = arith.addf %3, %5 : vector<256x32xf32>
    %c0_5 = arith.constant 0 : index
    %c0_6 = arith.constant 0 : index
    %7 = vector.load %arg4[%c0_5, %c0_6] : memref<256x32xf32, #tpu.memory_space<vmem>>, vector<256x32xf32>
    tpu.vector_store %arg4[%c0_5, %c0_6], %6 {strides = array<i32>} : memref<256x32xf32, #tpu.memory_space<vmem>>, vector<256x32xf32>,
    return
  }
  func.func @transform_0(%arg0: i32) -> (i32, i32) {
    %c0_i32 = arith.constant 0 : i32
    %c0_i32_0 = arith.constant 0 : i32
    return %arg0, %c0_i32 : i32, i32
  }
  func.func @transform_1(%arg0: i32) -> (i32, i32) {
    %c0_i32 = arith.constant 0 : i32
    %c0_i32_0 = arith.constant 0 : i32
    %c0_i32_1 = arith.constant 0 : i32
    return %c0_i32, %c0_i32_0 : i32, i32
  }
  func.func @transform_2(%arg0: i32) -> (i32, i32) {
    %c0_i32 = arith.constant 0 : i32
    %c0_i32_0 = arith.constant 0 : i32
    %c0_i32_1 = arith.constant 0 : i32
    return %c0_i32, %c0_i32_0 : i32, i32
  }
  func.func @transform_3(%arg0: i32) -> (i32, i32) {
    %c0_i32 = arith.constant 0 : i32
    %c0_i32_0 = arith.constant 0 : i32
    return %arg0, %c0_i32 : i32, i32
  }
}

module attributes {stable_mosaic.version = 11 : i64} {
  func.func @_ln_qkv_kernel(%arg0: i32, %arg1: memref<128x32xf32, #tpu.memory_space<vmem>>, %arg2: memref<1x32xf32, #tpu.memory_space<vmem>>, %arg3: memref<1x32xf32, #tpu.memory_space<vmem>>, %arg4: memref<32x96xbf16, #tpu.memory_space<vmem>>, %arg5: memref<1x96xf32, #tpu.memory_space<vmem>>, %arg6: memref<128x96xbf16, #tpu.memory_space<vmem>>) attributes {dimension_semantics = [#tpu.dimension_semantics<parallel>], iteration_bounds = array<i64: 2>, scalar_prefetch = 0 : i64, scratch_operands = 0 : i64, tpu.core_type = #tpu.core_type<tc>, window_params = [{transform_indices = @transform_0, window_bounds = array<i64: 128, 32>}, {pipeline_mode = #tpu.pipeline_mode<synchronous>, transform_indices = @transform_1, window_bounds = array<i64: 1, 32>}, {pipeline_mode = #tpu.pipeline_mode<synchronous>, transform_indices = @transform_2, window_bounds = array<i64: 1, 32>}, {pipeline_mode = #tpu.pipeline_mode<synchronous>, transform_indices = @transform_3, window_bounds = array<i64: 32, 96>}, {pipeline_mode = #tpu.pipeline_mode<synchronous>, transform_indices = @transform_4, window_bounds = array<i64: 1, 96>}, {transform_indices = @transform_5, window_bounds = array<i64: 128, 96>}]} {
    %c0 = arith.constant 0 : index
    %c0_0 = arith.constant 0 : index
    %0 = vector.load %arg1[%c0, %c0_0] : memref<128x32xf32, #tpu.memory_space<vmem>>, vector<128x32xf32>
    %c0_1 = arith.constant 0 : index
    %c0_2 = arith.constant 0 : index
    %1 = vector.load %arg2[%c0_1, %c0_2] : memref<1x32xf32, #tpu.memory_space<vmem>>, vector<1x32xf32>
    %c0_3 = arith.constant 0 : index
    %c0_4 = arith.constant 0 : index
    %2 = vector.load %arg3[%c0_3, %c0_4] : memref<1x32xf32, #tpu.memory_space<vmem>>, vector<1x32xf32>
    %cst = arith.constant dense<0.000000e+00> : vector<128xf32>
    %3 = vector.multi_reduction <add>, %0, %cst [1] : vector<128x32xf32> to vector<128xf32>
    %4 = vector.shape_cast %3 : vector<128xf32> to vector<128x1xf32>
    %cst_5 = arith.constant 3.200000e+01 : f32
    %5 = vector.broadcast %cst_5 : f32 to vector<128x1xf32>
    %6 = arith.divf %4, %5 : vector<128x1xf32>
    %7 = vector.broadcast %6 : vector<128x1xf32> to vector<128x32xf32>
    %8 = arith.subf %0, %7 : vector<128x32xf32>
    %9 = vector.broadcast %6 : vector<128x1xf32> to vector<128x32xf32>
    %10 = arith.subf %0, %9 : vector<128x32xf32>
    %11 = arith.mulf %8, %10 : vector<128x32xf32>
    %cst_6 = arith.constant dense<0.000000e+00> : vector<128xf32>
    %12 = vector.multi_reduction <add>, %11, %cst_6 [1] : vector<128x32xf32> to vector<128xf32>
    %13 = vector.shape_cast %12 : vector<128xf32> to vector<128x1xf32>
    %cst_7 = arith.constant 3.200000e+01 : f32
    %14 = vector.broadcast %cst_7 : f32 to vector<128x1xf32>
    %15 = arith.divf %13, %14 : vector<128x1xf32>
    %16 = vector.broadcast %6 : vector<128x1xf32> to vector<128x32xf32>
    %17 = arith.subf %0, %16 : vector<128x32xf32>
    %cst_8 = arith.constant 9.99999997E-7 : f32
    %18 = vector.broadcast %cst_8 : f32 to vector<128x1xf32>
    %19 = arith.addf %15, %18 : vector<128x1xf32>
    %20 = math.rsqrt %19 : vector<128x1xf32>
    %21 = vector.broadcast %20 : vector<128x1xf32> to vector<128x32xf32>
    %22 = arith.mulf %17, %21 : vector<128x32xf32>
    %23 = vector.broadcast %1 : vector<1x32xf32> to vector<128x32xf32>
    %24 = arith.mulf %22, %23 : vector<128x32xf32>
    %25 = vector.broadcast %2 : vector<1x32xf32> to vector<128x32xf32>
    %26 = arith.addf %24, %25 : vector<128x32xf32>
    %27 = arith.truncf %26 : vector<128x32xf32> to vector<128x32xbf16>
    %c0_9 = arith.constant 0 : index
    %c0_10 = arith.constant 0 : index
    %28 = vector.load %arg4[%c0_9, %c0_10] : memref<32x96xbf16, #tpu.memory_space<vmem>>, vector<32x96xbf16>
    %cst_11 = arith.constant dense<0.000000e+00> : vector<128x96xf32>
    %29 = tpu.matmul %27, %28, %cst_11 {dimension_numbers = #tpu.dot_dimension_numbers<[1], [0], [0], [1], [0, 0, 1, 1], [], []>} : vector<128x32xbf16>, vector<32x96xbf16>, vector<128x96xf32> -> vector<128x96xf32>
    %c0_12 = arith.constant 0 : index
    %c0_13 = arith.constant 0 : index
    %30 = vector.load %arg5[%c0_12, %c0_13] : memref<1x96xf32, #tpu.memory_space<vmem>>, vector<1x96xf32>
    %31 = vector.broadcast %30 : vector<1x96xf32> to vector<128x96xf32>
    %32 = arith.addf %29, %31 : vector<128x96xf32>
    %33 = arith.truncf %32 : vector<128x96xf32> to vector<128x96xbf16>
    %c0_14 = arith.constant 0 : index
    %c0_15 = arith.constant 0 : index
    %34 = vector.load %arg6[%c0_14, %c0_15] : memref<128x96xbf16, #tpu.memory_space<vmem>>, vector<128x96xbf16>
    tpu.vector_store %arg6[%c0_14, %c0_15], %33 {strides = array<i32>} : memref<128x96xbf16, #tpu.memory_space<vmem>>, vector<128x96xbf16>,
    return
  }
  func.func @transform_0(%arg0: i32) -> (i32, i32) {
    %c0_i32 = arith.constant 0 : i32
    %c0_i32_0 = arith.constant 0 : i32
    return %arg0, %c0_i32 : i32, i32
  }
  func.func @transform_1(%arg0: i32) -> (i32, i32) {
    %c0_i32 = arith.constant 0 : i32
    %c0_i32_0 = arith.constant 0 : i32
    %c0_i32_1 = arith.constant 0 : i32
    return %c0_i32, %c0_i32_0 : i32, i32
  }
  func.func @transform_2(%arg0: i32) -> (i32, i32) {
    %c0_i32 = arith.constant 0 : i32
    %c0_i32_0 = arith.constant 0 : i32
    %c0_i32_1 = arith.constant 0 : i32
    return %c0_i32, %c0_i32_0 : i32, i32
  }
  func.func @transform_3(%arg0: i32) -> (i32, i32) {
    %c0_i32 = arith.constant 0 : i32
    %c0_i32_0 = arith.constant 0 : i32
    %c0_i32_1 = arith.constant 0 : i32
    return %c0_i32, %c0_i32_0 : i32, i32
  }
  func.func @transform_4(%arg0: i32) -> (i32, i32) {
    %c0_i32 = arith.constant 0 : i32
    %c0_i32_0 = arith.constant 0 : i32
    %c0_i32_1 = arith.constant 0 : i32
    return %c0_i32, %c0_i32_0 : i32, i32
  }
  func.func @transform_5(%arg0: i32) -> (i32, i32) {
    %c0_i32 = arith.constant 0 : i32
    %c0_i32_0 = arith.constant 0 : i32
    return %arg0, %c0_i32 : i32, i32
  }
}

module attributes {stable_mosaic.version = 11 : i64} {
  func.func @_attention_kernel(%arg0: i32, %arg1: memref<1x2x128x16xbf16, #tpu.memory_space<vmem>>, %arg2: memref<1x2x128x16xbf16, #tpu.memory_space<vmem>>, %arg3: memref<1x2x128x16xbf16, #tpu.memory_space<vmem>>, %arg4: memref<1x128x32xf32, #tpu.memory_space<vmem>>, %arg5: memref<2x16x32xbf16, #tpu.memory_space<vmem>>, %arg6: memref<1x32xf32, #tpu.memory_space<vmem>>, %arg7: memref<1x128x32xf32, #tpu.memory_space<vmem>>) attributes {dimension_semantics = [#tpu.dimension_semantics<parallel>], iteration_bounds = array<i64: 2>, scalar_prefetch = 0 : i64, scratch_operands = 0 : i64, tpu.core_type = #tpu.core_type<tc>, window_params = [{transform_indices = @transform_0, window_bounds = array<i64: 1, 2, 128, 16>}, {transform_indices = @transform_1, window_bounds = array<i64: 1, 2, 128, 16>}, {transform_indices = @transform_2, window_bounds = array<i64: 1, 2, 128, 16>}, {transform_indices = @transform_3, window_bounds = array<i64: 1, 128, 32>}, {pipeline_mode = #tpu.pipeline_mode<synchronous>, transform_indices = @transform_4, window_bounds = array<i64: 2, 16, 32>}, {pipeline_mode = #tpu.pipeline_mode<synchronous>, transform_indices = @transform_5, window_bounds = array<i64: 1, 32>}, {transform_indices = @transform_6, window_bounds = array<i64: 1, 128, 32>}]} {
    %c0 = arith.constant 0 : index
    %c0_0 = arith.constant 0 : index
    %c0_1 = arith.constant 0 : index
    %c0_2 = arith.constant 0 : index
    %0 = vector.load %arg1[%c0, %c0_0, %c0_1, %c0_2] : memref<1x2x128x16xbf16, #tpu.memory_space<vmem>>, vector<1x2x128x16xbf16>
    %1 = vector.shape_cast %0 : vector<1x2x128x16xbf16> to vector<2x128x16xbf16>
    %c0_3 = arith.constant 0 : index
    %c0_4 = arith.constant 0 : index
    %c0_5 = arith.constant 0 : index
    %c0_6 = arith.constant 0 : index
    %2 = vector.load %arg2[%c0_3, %c0_4, %c0_5, %c0_6] : memref<1x2x128x16xbf16, #tpu.memory_space<vmem>>, vector<1x2x128x16xbf16>
    %3 = vector.shape_cast %2 : vector<1x2x128x16xbf16> to vector<2x128x16xbf16>
    %c0_7 = arith.constant 0 : index
    %c0_8 = arith.constant 0 : index
    %c0_9 = arith.constant 0 : index
    %c0_10 = arith.constant 0 : index
    %4 = vector.load %arg3[%c0_7, %c0_8, %c0_9, %c0_10] : memref<1x2x128x16xbf16, #tpu.memory_space<vmem>>, vector<1x2x128x16xbf16>
    %5 = vector.shape_cast %4 : vector<1x2x128x16xbf16> to vector<2x128x16xbf16>
    "tpu.trace_start"() <{level = 10 : i32, message = "hqd,hkd->hqk"}> : () -> ()
    %cst = arith.constant dense<0.000000e+00> : vector<2x128x128xf32>
    %6 = tpu.matmul %1, %3, %cst {dimension_numbers = #tpu.dot_dimension_numbers<[2], [2], [1], [1], [0, 0, 0, 1, 1, 1], [0], [0]>} : vector<2x128x16xbf16>, vector<2x128x16xbf16>, vector<2x128x128xf32> -> vector<2x128x128xf32>
    "tpu.trace_stop"() : () -> ()
    %cst_11 = arith.constant 2.500000e-01 : f32
    %7 = vector.broadcast %cst_11 : f32 to vector<2x128x128xf32>
    %8 = arith.mulf %6, %7 : vector<2x128x128xf32>
    %9 = tpu.iota {dimensions = array<i32: 2>} : vector<2x128x128xi32>
    %c17_i32 = arith.constant 17 : i32
    %10 = vector.broadcast %c17_i32 : i32 to vector<2x128x128xi32>
    %11 = arith.cmpi slt, %9, %10 : vector<2x128x128xi32>
    %cst_12 = arith.constant -1.000000e+30 : f32
    %12 = vector.broadcast %cst_12 : f32 to vector<2x128x128xf32>
    %13 = arith.select %11, %8, %12 : vector<2x128x128xi1>, vector<2x128x128xf32>
    %cst_13 = arith.constant dense<0xFF800000> : vector<2x128xf32>
    %14 = vector.multi_reduction <maximumf>, %13, %cst_13 [2] : vector<2x128x128xf32> to vector<2x128xf32>
    %15 = vector.shape_cast %14 : vector<2x128xf32> to vector<2x128x1xf32>
    %16 = vector.broadcast %15 : vector<2x128x1xf32> to vector<2x128x128xf32>
    %17 = arith.subf %13, %16 : vector<2x128x128xf32>
    %18 = math.exp %17 : vector<2x128x128xf32>
    %cst_14 = arith.constant dense<0.000000e+00> : vector<2x128xf32>
    %19 = vector.multi_reduction <add>, %18, %cst_14 [2] : vector<2x128x128xf32> to vector<2x128xf32>
    %20 = vector.shape_cast %19 : vector<2x128xf32> to vector<2x128x1xf32>
    %21 = tpu.reciprocal %20 {approx = true} : vector<2x128x1xf32> -> vector<2x128x1xf32>
    %22 = vector.broadcast %21 : vector<2x128x1xf32> to vector<2x128x128xf32>
    %23 = arith.mulf %18, %22 : vector<2x128x128xf32>
    %24 = arith.truncf %23 : vector<2x128x128xf32> to vector<2x128x128xbf16>
    "tpu.trace_start"() <{level = 10 : i32, message = "hqk,hkd->hqd"}> : () -> ()
    %cst_15 = arith.constant dense<0.000000e+00> : vector<2x128x16xf32>
    %25 = tpu.matmul %24, %5, %cst_15 {dimension_numbers = #tpu.dot_dimension_numbers<[2], [1], [1], [2], [0, 0, 0, 1, 1, 2], [0], [0]>} : vector<2x128x128xbf16>, vector<2x128x16xbf16>, vector<2x128x16xf32> -> vector<2x128x16xf32>
    "tpu.trace_stop"() : () -> ()
    %26 = arith.truncf %25 : vector<2x128x16xf32> to vector<2x128x16xbf16>
    %c0_16 = arith.constant 0 : index
    %c0_17 = arith.constant 0 : index
    %c0_18 = arith.constant 0 : index
    %27 = vector.load %arg5[%c0_16, %c0_17, %c0_18] : memref<2x16x32xbf16, #tpu.memory_space<vmem>>, vector<2x16x32xbf16>
    "tpu.trace_start"() <{level = 10 : i32, message = "hqd,hdo->hqo"}> : () -> ()
    %cst_19 = arith.constant dense<0.000000e+00> : vector<2x128x32xf32>
    %28 = tpu.matmul %26, %27, %cst_19 {dimension_numbers = #tpu.dot_dimension_numbers<[2], [1], [1], [2], [0, 0, 0, 1, 1, 2], [0], [0]>} : vector<2x128x16xbf16>, vector<2x16x32xbf16>, vector<2x128x32xf32> -> vector<2x128x32xf32>
    "tpu.trace_stop"() : () -> ()
    %cst_20 = arith.constant dense<0.000000e+00> : vector<128x32xf32>
    %29 = vector.multi_reduction <add>, %28, %cst_20 [0] : vector<2x128x32xf32> to vector<128x32xf32>
    %c0_21 = arith.constant 0 : index
    %c0_22 = arith.constant 0 : index
    %30 = vector.load %arg6[%c0_21, %c0_22] : memref<1x32xf32, #tpu.memory_space<vmem>>, vector<1x32xf32>
    %31 = vector.broadcast %30 : vector<1x32xf32> to vector<128x32xf32>
    %32 = arith.addf %29, %31 : vector<128x32xf32>
    %c0_23 = arith.constant 0 : index
    %c0_24 = arith.constant 0 : index
    %c0_25 = arith.constant 0 : index
    %33 = vector.load %arg4[%c0_23, %c0_24, %c0_25] : memref<1x128x32xf32, #tpu.memory_space<vmem>>, vector<1x128x32xf32>
    %34 = vector.shape_cast %33 : vector<1x128x32xf32> to vector<128x32xf32>
    %35 = arith.addf %34, %32 : vector<128x32xf32>
    %c0_26 = arith.constant 0 : index
    %c0_27 = arith.constant 0 : index
    %c0_28 = arith.constant 0 : index
    %36 = vector.load %arg7[%c0_26, %c0_27, %c0_28] : memref<1x128x32xf32, #tpu.memory_space<vmem>>, vector<1x128x32xf32>
    %37 = vector.shape_cast %36 : vector<1x128x32xf32> to vector<128x32xf32>
    %38 = vector.shape_cast %35 : vector<128x32xf32> to vector<1x128x32xf32>
    tpu.vector_store %arg7[%c0_26, %c0_27, %c0_28], %38 {strides = array<i32>} : memref<1x128x32xf32, #tpu.memory_space<vmem>>, vector<1x128x32xf32>,
    return
  }
  func.func @transform_0(%arg0: i32) -> (i32, i32, i32, i32) {
    %c0_i32 = arith.constant 0 : i32
    %c0_i32_0 = arith.constant 0 : i32
    %c0_i32_1 = arith.constant 0 : i32
    %c0_i32_2 = arith.constant 0 : i32
    return %arg0, %c0_i32, %c0_i32_0, %c0_i32_1 : i32, i32, i32, i32
  }
  func.func @transform_1(%arg0: i32) -> (i32, i32, i32, i32) {
    %c0_i32 = arith.constant 0 : i32
    %c0_i32_0 = arith.constant 0 : i32
    %c0_i32_1 = arith.constant 0 : i32
    %c0_i32_2 = arith.constant 0 : i32
    return %arg0, %c0_i32, %c0_i32_0, %c0_i32_1 : i32, i32, i32, i32
  }
  func.func @transform_2(%arg0: i32) -> (i32, i32, i32, i32) {
    %c0_i32 = arith.constant 0 : i32
    %c0_i32_0 = arith.constant 0 : i32
    %c0_i32_1 = arith.constant 0 : i32
    %c0_i32_2 = arith.constant 0 : i32
    return %arg0, %c0_i32, %c0_i32_0, %c0_i32_1 : i32, i32, i32, i32
  }
  func.func @transform_3(%arg0: i32) -> (i32, i32, i32) {
    %c0_i32 = arith.constant 0 : i32
    %c0_i32_0 = arith.constant 0 : i32
    %c0_i32_1 = arith.constant 0 : i32
    return %arg0, %c0_i32, %c0_i32_0 : i32, i32, i32
  }
  func.func @transform_4(%arg0: i32) -> (i32, i32, i32) {
    %c0_i32 = arith.constant 0 : i32
    %c0_i32_0 = arith.constant 0 : i32
    %c0_i32_1 = arith.constant 0 : i32
    %c0_i32_2 = arith.constant 0 : i32
    return %c0_i32, %c0_i32_0, %c0_i32_1 : i32, i32, i32
  }
  func.func @transform_5(%arg0: i32) -> (i32, i32) {
    %c0_i32 = arith.constant 0 : i32
    %c0_i32_0 = arith.constant 0 : i32
    %c0_i32_1 = arith.constant 0 : i32
    return %c0_i32, %c0_i32_0 : i32, i32
  }
  func.func @transform_6(%arg0: i32) -> (i32, i32, i32) {
    %c0_i32 = arith.constant 0 : i32
    %c0_i32_0 = arith.constant 0 : i32
    %c0_i32_1 = arith.constant 0 : i32
    return %arg0, %c0_i32, %c0_i32_0 : i32, i32, i32
  }
}

module attributes {stable_mosaic.version = 11 : i64} {
  func.func @_mlp_kernel(%arg0: i32, %arg1: memref<128x32xf32, #tpu.memory_space<vmem>>, %arg2: memref<1x32xf32, #tpu.memory_space<vmem>>, %arg3: memref<1x32xf32, #tpu.memory_space<vmem>>, %arg4: memref<32x64xbf16, #tpu.memory_space<vmem>>, %arg5: memref<1x64xf32, #tpu.memory_space<vmem>>, %arg6: memref<64x32xbf16, #tpu.memory_space<vmem>>, %arg7: memref<1x32xf32, #tpu.memory_space<vmem>>, %arg8: memref<128x32xf32, #tpu.memory_space<vmem>>) attributes {dimension_semantics = [#tpu.dimension_semantics<parallel>], iteration_bounds = array<i64: 2>, scalar_prefetch = 0 : i64, scratch_operands = 0 : i64, tpu.core_type = #tpu.core_type<tc>, window_params = [{transform_indices = @transform_0, window_bounds = array<i64: 128, 32>}, {pipeline_mode = #tpu.pipeline_mode<synchronous>, transform_indices = @transform_1, window_bounds = array<i64: 1, 32>}, {pipeline_mode = #tpu.pipeline_mode<synchronous>, transform_indices = @transform_2, window_bounds = array<i64: 1, 32>}, {pipeline_mode = #tpu.pipeline_mode<synchronous>, transform_indices = @transform_3, window_bounds = array<i64: 32, 64>}, {pipeline_mode = #tpu.pipeline_mode<synchronous>, transform_indices = @transform_4, window_bounds = array<i64: 1, 64>}, {pipeline_mode = #tpu.pipeline_mode<synchronous>, transform_indices = @transform_5, window_bounds = array<i64: 64, 32>}, {pipeline_mode = #tpu.pipeline_mode<synchronous>, transform_indices = @transform_6, window_bounds = array<i64: 1, 32>}, {transform_indices = @transform_7, window_bounds = array<i64: 128, 32>}]} {
    %c0 = arith.constant 0 : index
    %c0_0 = arith.constant 0 : index
    %0 = vector.load %arg1[%c0, %c0_0] : memref<128x32xf32, #tpu.memory_space<vmem>>, vector<128x32xf32>
    %c0_1 = arith.constant 0 : index
    %c0_2 = arith.constant 0 : index
    %1 = vector.load %arg2[%c0_1, %c0_2] : memref<1x32xf32, #tpu.memory_space<vmem>>, vector<1x32xf32>
    %c0_3 = arith.constant 0 : index
    %c0_4 = arith.constant 0 : index
    %2 = vector.load %arg3[%c0_3, %c0_4] : memref<1x32xf32, #tpu.memory_space<vmem>>, vector<1x32xf32>
    %cst = arith.constant dense<0.000000e+00> : vector<128xf32>
    %3 = vector.multi_reduction <add>, %0, %cst [1] : vector<128x32xf32> to vector<128xf32>
    %4 = vector.shape_cast %3 : vector<128xf32> to vector<128x1xf32>
    %cst_5 = arith.constant 3.200000e+01 : f32
    %5 = vector.broadcast %cst_5 : f32 to vector<128x1xf32>
    %6 = arith.divf %4, %5 : vector<128x1xf32>
    %7 = vector.broadcast %6 : vector<128x1xf32> to vector<128x32xf32>
    %8 = arith.subf %0, %7 : vector<128x32xf32>
    %9 = vector.broadcast %6 : vector<128x1xf32> to vector<128x32xf32>
    %10 = arith.subf %0, %9 : vector<128x32xf32>
    %11 = arith.mulf %8, %10 : vector<128x32xf32>
    %cst_6 = arith.constant dense<0.000000e+00> : vector<128xf32>
    %12 = vector.multi_reduction <add>, %11, %cst_6 [1] : vector<128x32xf32> to vector<128xf32>
    %13 = vector.shape_cast %12 : vector<128xf32> to vector<128x1xf32>
    %cst_7 = arith.constant 3.200000e+01 : f32
    %14 = vector.broadcast %cst_7 : f32 to vector<128x1xf32>
    %15 = arith.divf %13, %14 : vector<128x1xf32>
    %16 = vector.broadcast %6 : vector<128x1xf32> to vector<128x32xf32>
    %17 = arith.subf %0, %16 : vector<128x32xf32>
    %cst_8 = arith.constant 9.99999997E-7 : f32
    %18 = vector.broadcast %cst_8 : f32 to vector<128x1xf32>
    %19 = arith.addf %15, %18 : vector<128x1xf32>
    %20 = math.rsqrt %19 : vector<128x1xf32>
    %21 = vector.broadcast %20 : vector<128x1xf32> to vector<128x32xf32>
    %22 = arith.mulf %17, %21 : vector<128x32xf32>
    %23 = vector.broadcast %1 : vector<1x32xf32> to vector<128x32xf32>
    %24 = arith.mulf %22, %23 : vector<128x32xf32>
    %25 = vector.broadcast %2 : vector<1x32xf32> to vector<128x32xf32>
    %26 = arith.addf %24, %25 : vector<128x32xf32>
    %27 = arith.truncf %26 : vector<128x32xf32> to vector<128x32xbf16>
    %c0_9 = arith.constant 0 : index
    %c0_10 = arith.constant 0 : index
    %28 = vector.load %arg4[%c0_9, %c0_10] : memref<32x64xbf16, #tpu.memory_space<vmem>>, vector<32x64xbf16>
    %cst_11 = arith.constant dense<0.000000e+00> : vector<128x64xf32>
    %29 = tpu.matmul %27, %28, %cst_11 {dimension_numbers = #tpu.dot_dimension_numbers<[1], [0], [0], [1], [0, 0, 1, 1], [], []>} : vector<128x32xbf16>, vector<32x64xbf16>, vector<128x64xf32> -> vector<128x64xf32>
    %c0_12 = arith.constant 0 : index
    %c0_13 = arith.constant 0 : index
    %30 = vector.load %arg5[%c0_12, %c0_13] : memref<1x64xf32, #tpu.memory_space<vmem>>, vector<1x64xf32>
    %31 = vector.broadcast %30 : vector<1x64xf32> to vector<128x64xf32>
    %32 = arith.addf %29, %31 : vector<128x64xf32>
    %cst_14 = arith.constant 5.000000e-01 : f32
    %33 = vector.broadcast %cst_14 : f32 to vector<128x64xf32>
    %34 = arith.mulf %33, %32 : vector<128x64xf32>
    %cst_15 = arith.constant 0.707106769 : f32
    %35 = vector.broadcast %cst_15 : f32 to vector<128x64xf32>
    %36 = arith.mulf %32, %35 : vector<128x64xf32>
    %cst_16 = arith.constant 0.000000e+00 : f32
    %37 = vector.broadcast %cst_16 : f32 to vector<128x64xf32>
    %38 = arith.cmpf oge, %36, %37 : vector<128x64xf32>
    %cst_17 = arith.constant 1.000000e+00 : f32
    %cst_18 = arith.constant -1.000000e+00 : f32
    %39 = vector.broadcast %cst_17 : f32 to vector<128x64xf32>
    %40 = vector.broadcast %cst_18 : f32 to vector<128x64xf32>
    %41 = arith.select %38, %39, %40 : vector<128x64xi1>, vector<128x64xf32>
    %42 = math.absf %36 : vector<128x64xf32>
    %cst_19 = arith.constant 0.327591091 : f32
    %43 = vector.broadcast %cst_19 : f32 to vector<128x64xf32>
    %44 = arith.mulf %43, %42 : vector<128x64xf32>
    %cst_20 = arith.constant 1.000000e+00 : f32
    %45 = vector.broadcast %cst_20 : f32 to vector<128x64xf32>
    %46 = arith.addf %45, %44 : vector<128x64xf32>
    %cst_21 = arith.constant 1.000000e+00 : f32
    %47 = vector.broadcast %cst_21 : f32 to vector<128x64xf32>
    %48 = arith.divf %47, %46 : vector<128x64xf32>
    %cst_22 = arith.constant 1.06140542 : f32
    %49 = vector.broadcast %cst_22 : f32 to vector<128x64xf32>
    %50 = arith.mulf %49, %48 : vector<128x64xf32>
    %cst_23 = arith.constant -1.45315206 : f32
    %51 = vector.broadcast %cst_23 : f32 to vector<128x64xf32>
    %52 = arith.addf %50, %51 : vector<128x64xf32>
    %53 = arith.mulf %52, %48 : vector<128x64xf32>
    %cst_24 = arith.constant 1.42141378 : f32
    %54 = vector.broadcast %cst_24 : f32 to vector<128x64xf32>
    %55 = arith.addf %53, %54 : vector<128x64xf32>
    %56 = arith.mulf %55, %48 : vector<128x64xf32>
    %cst_25 = arith.constant -0.284496725 : f32
    %57 = vector.broadcast %cst_25 : f32 to vector<128x64xf32>
    %58 = arith.addf %56, %57 : vector<128x64xf32>
    %59 = arith.mulf %58, %48 : vector<128x64xf32>
    %cst_26 = arith.constant 0.254829586 : f32
    %60 = vector.broadcast %cst_26 : f32 to vector<128x64xf32>
    %61 = arith.addf %59, %60 : vector<128x64xf32>
    %62 = arith.mulf %61, %48 : vector<128x64xf32>
    %cst_27 = arith.constant 0.000000e+00 : f32
    %63 = vector.broadcast %cst_27 : f32 to vector<128x64xf32>
    %64 = arith.subf %63, %42 : vector<128x64xf32>
    %65 = arith.mulf %64, %42 : vector<128x64xf32>
    %66 = math.exp %65 : vector<128x64xf32>
    %67 = arith.mulf %62, %66 : vector<128x64xf32>
    %cst_28 = arith.constant 1.000000e+00 : f32
    %68 = vector.broadcast %cst_28 : f32 to vector<128x64xf32>
    %69 = arith.subf %68, %67 : vector<128x64xf32>
    %70 = arith.mulf %41, %69 : vector<128x64xf32>
    %cst_29 = arith.constant 1.000000e+00 : f32
    %71 = vector.broadcast %cst_29 : f32 to vector<128x64xf32>
    %72 = arith.addf %71, %70 : vector<128x64xf32>
    %73 = arith.mulf %34, %72 : vector<128x64xf32>
    %74 = arith.truncf %73 : vector<128x64xf32> to vector<128x64xbf16>
    %c0_30 = arith.constant 0 : index
    %c0_31 = arith.constant 0 : index
    %75 = vector.load %arg6[%c0_30, %c0_31] : memref<64x32xbf16, #tpu.memory_space<vmem>>, vector<64x32xbf16>
    %cst_32 = arith.constant dense<0.000000e+00> : vector<128x32xf32>
    %76 = tpu.matmul %74, %75, %cst_32 {dimension_numbers = #tpu.dot_dimension_numbers<[1], [0], [0], [1], [0, 0, 1, 1], [], []>} : vector<128x64xbf16>, vector<64x32xbf16>, vector<128x32xf32> -> vector<128x32xf32>
    %c0_33 = arith.constant 0 : index
    %c0_34 = arith.constant 0 : index
    %77 = vector.load %arg7[%c0_33, %c0_34] : memref<1x32xf32, #tpu.memory_space<vmem>>, vector<1x32xf32>
    %78 = vector.broadcast %77 : vector<1x32xf32> to vector<128x32xf32>
    %79 = arith.addf %76, %78 : vector<128x32xf32>
    %80 = arith.addf %0, %79 : vector<128x32xf32>
    %c0_35 = arith.constant 0 : index
    %c0_36 = arith.constant 0 : index
    %81 = vector.load %arg8[%c0_35, %c0_36] : memref<128x32xf32, #tpu.memory_space<vmem>>, vector<128x32xf32>
    tpu.vector_store %arg8[%c0_35, %c0_36], %80 {strides = array<i32>} : memref<128x32xf32, #tpu.memory_space<vmem>>, vector<128x32xf32>,
    return
  }
  func.func @transform_0(%arg0: i32) -> (i32, i32) {
    %c0_i32 = arith.constant 0 : i32
    %c0_i32_0 = arith.constant 0 : i32
    return %arg0, %c0_i32 : i32, i32
  }
  func.func @transform_1(%arg0: i32) -> (i32, i32) {
    %c0_i32 = arith.constant 0 : i32
    %c0_i32_0 = arith.constant 0 : i32
    %c0_i32_1 = arith.constant 0 : i32
    return %c0_i32, %c0_i32_0 : i32, i32
  }
  func.func @transform_2(%arg0: i32) -> (i32, i32) {
    %c0_i32 = arith.constant 0 : i32
    %c0_i32_0 = arith.constant 0 : i32
    %c0_i32_1 = arith.constant 0 : i32
    return %c0_i32, %c0_i32_0 : i32, i32
  }
  func.func @transform_3(%arg0: i32) -> (i32, i32) {
    %c0_i32 = arith.constant 0 : i32
    %c0_i32_0 = arith.constant 0 : i32
    %c0_i32_1 = arith.constant 0 : i32
    return %c0_i32, %c0_i32_0 : i32, i32
  }
  func.func @transform_4(%arg0: i32) -> (i32, i32) {
    %c0_i32 = arith.constant 0 : i32
    %c0_i32_0 = arith.constant 0 : i32
    %c0_i32_1 = arith.constant 0 : i32
    return %c0_i32, %c0_i32_0 : i32, i32
  }
  func.func @transform_5(%arg0: i32) -> (i32, i32) {
    %c0_i32 = arith.constant 0 : i32
    %c0_i32_0 = arith.constant 0 : i32
    %c0_i32_1 = arith.constant 0 : i32
    return %c0_i32, %c0_i32_0 : i32, i32
  }
  func.func @transform_6(%arg0: i32) -> (i32, i32) {
    %c0_i32 = arith.constant 0 : i32
    %c0_i32_0 = arith.constant 0 : i32
    %c0_i32_1 = arith.constant 0 : i32
    return %c0_i32, %c0_i32_0 : i32, i32
  }
  func.func @transform_7(%arg0: i32) -> (i32, i32) {
    %c0_i32 = arith.constant 0 : i32
    %c0_i32_0 = arith.constant 0 : i32
    return %arg0, %c0_i32 : i32, i32
  }
}

module attributes {stable_mosaic.version = 11 : i64} {
  func.func @_head_kernel(%arg0: memref<2x32xf32, #tpu.memory_space<vmem>>, %arg1: memref<1x32xf32, #tpu.memory_space<vmem>>, %arg2: memref<1x32xf32, #tpu.memory_space<vmem>>, %arg3: memref<32x10xbf16, #tpu.memory_space<vmem>>, %arg4: memref<1x10xf32, #tpu.memory_space<vmem>>, %arg5: memref<2x10xf32, #tpu.memory_space<vmem>>) attributes {dimension_semantics = [], scalar_prefetch = 0 : i64, scratch_operands = 0 : i64, tpu.core_type = #tpu.core_type<tc>} {
    %c0 = arith.constant 0 : index
    %c0_0 = arith.constant 0 : index
    %0 = vector.load %arg0[%c0, %c0_0] : memref<2x32xf32, #tpu.memory_space<vmem>>, vector<2x32xf32>
    %c0_1 = arith.constant 0 : index
    %c0_2 = arith.constant 0 : index
    %1 = vector.load %arg1[%c0_1, %c0_2] : memref<1x32xf32, #tpu.memory_space<vmem>>, vector<1x32xf32>
    %c0_3 = arith.constant 0 : index
    %c0_4 = arith.constant 0 : index
    %2 = vector.load %arg2[%c0_3, %c0_4] : memref<1x32xf32, #tpu.memory_space<vmem>>, vector<1x32xf32>
    %cst = arith.constant dense<0.000000e+00> : vector<2xf32>
    %3 = vector.multi_reduction <add>, %0, %cst [1] : vector<2x32xf32> to vector<2xf32>
    %4 = vector.shape_cast %3 : vector<2xf32> to vector<2x1xf32>
    %cst_5 = arith.constant 3.200000e+01 : f32
    %5 = vector.broadcast %cst_5 : f32 to vector<2x1xf32>
    %6 = arith.divf %4, %5 : vector<2x1xf32>
    %7 = vector.broadcast %6 : vector<2x1xf32> to vector<2x32xf32>
    %8 = arith.subf %0, %7 : vector<2x32xf32>
    %9 = vector.broadcast %6 : vector<2x1xf32> to vector<2x32xf32>
    %10 = arith.subf %0, %9 : vector<2x32xf32>
    %11 = arith.mulf %8, %10 : vector<2x32xf32>
    %cst_6 = arith.constant dense<0.000000e+00> : vector<2xf32>
    %12 = vector.multi_reduction <add>, %11, %cst_6 [1] : vector<2x32xf32> to vector<2xf32>
    %13 = vector.shape_cast %12 : vector<2xf32> to vector<2x1xf32>
    %cst_7 = arith.constant 3.200000e+01 : f32
    %14 = vector.broadcast %cst_7 : f32 to vector<2x1xf32>
    %15 = arith.divf %13, %14 : vector<2x1xf32>
    %16 = vector.broadcast %6 : vector<2x1xf32> to vector<2x32xf32>
    %17 = arith.subf %0, %16 : vector<2x32xf32>
    %cst_8 = arith.constant 9.99999997E-7 : f32
    %18 = vector.broadcast %cst_8 : f32 to vector<2x1xf32>
    %19 = arith.addf %15, %18 : vector<2x1xf32>
    %20 = math.rsqrt %19 : vector<2x1xf32>
    %21 = vector.broadcast %20 : vector<2x1xf32> to vector<2x32xf32>
    %22 = arith.mulf %17, %21 : vector<2x32xf32>
    %23 = vector.broadcast %1 : vector<1x32xf32> to vector<2x32xf32>
    %24 = arith.mulf %22, %23 : vector<2x32xf32>
    %25 = vector.broadcast %2 : vector<1x32xf32> to vector<2x32xf32>
    %26 = arith.addf %24, %25 : vector<2x32xf32>
    %27 = arith.truncf %26 : vector<2x32xf32> to vector<2x32xbf16>
    %c0_9 = arith.constant 0 : index
    %c0_10 = arith.constant 0 : index
    %28 = vector.load %arg3[%c0_9, %c0_10] : memref<32x10xbf16, #tpu.memory_space<vmem>>, vector<32x10xbf16>
    %cst_11 = arith.constant dense<0.000000e+00> : vector<2x10xf32>
    %29 = tpu.matmul %27, %28, %cst_11 {dimension_numbers = #tpu.dot_dimension_numbers<[1], [0], [0], [1], [0, 0, 1, 1], [], []>} : vector<2x32xbf16>, vector<32x10xbf16>, vector<2x10xf32> -> vector<2x10xf32>
    %c0_12 = arith.constant 0 : index
    %c0_13 = arith.constant 0 : index
    %30 = vector.load %arg4[%c0_12, %c0_13] : memref<1x10xf32, #tpu.memory_space<vmem>>, vector<1x10xf32>
    %31 = vector.broadcast %30 : vector<1x10xf32> to vector<2x10xf32>
    %32 = arith.addf %29, %31 : vector<2x10xf32>
    %c0_14 = arith.constant 0 : index
    %c0_15 = arith.constant 0 : index
    %33 = vector.load %arg5[%c0_14, %c0_15] : memref<2x10xf32, #tpu.memory_space<vmem>>, vector<2x10xf32>
    tpu.vector_store %arg5[%c0_14, %c0_15], %32 {strides = array<i32>} : memref<2x10xf32, #tpu.memory_space<vmem>>, vector<2x10xf32>,
    return
  }
}

</mosaic_0001>

<llo_original>
// kernel: vit_forward.8
$region0: #{vit_forward.8}
  #allocation0 [shape = 'u32[]', space=smem, size = 0x4, offset = 0x4, fixed_abs, tag = 'smem constant byte address 0x4 - core index']
  #allocation1 [shape = 'u32[144,128]{1,0:T(1,128)}', space=vmem, size = 0x12000, scoped, tag = 'internal scratch']
  %s0 = inlined_call_operand.vmem [shape: f32[256,48], index: 0, kind: input, shape index: {}]
  %s1 = inlined_call_operand.vmem [shape: bf16[48,32], index: 1, kind: input, shape index: {}]
  %s2 = inlined_call_operand.vmem [shape: f32[1,32], index: 2, kind: input, shape index: {}]
  %s3 = inlined_call_operand.vmem [shape: f32[256,32], index: 3, kind: output, shape index: {}]
  %s4 = sld [smem:[#allocation0]]
  $region22: #{vit_forward.8} parent=0
    _
  %s6 = ssub.s32 1, %s4
  %s7 = scalar_select 0, %s6, %s4
  // Predicated region
  $region2: #{vit_forward.8} parent=0 // pred_check
    _
  $region3: #{vit_forward.8} parent=0 // pred_check_branch
    %9 = sbr.rel (0) target = $region5
  $region4: #{vit_forward.8} parent=0 // pred_region
    _
  $region5: #{vit_forward.8} parent=0 // pred_fallthru
    _
  // Predicated region
  $region6: #{vit_forward.8} parent=0 // pred_check
    _
  $region7: #{vit_forward.8} parent=0 // pred_check_branch
    %11 = sbr.rel (0) target = $region9
  $region8: #{vit_forward.8} parent=0 // pred_region
    _
  $region9: #{vit_forward.8} parent=0 // pred_fallthru
    _
  // Predicated region
  $region10: #{vit_forward.8} parent=0 // pred_check
    _
  $region11: #{vit_forward.8} parent=0 // pred_check_branch
    %13 = sbr.rel (0) target = $region13
  $region12: #{vit_forward.8} parent=0 // pred_region
    _
  $region13: #{vit_forward.8} parent=0 // pred_fallthru
    _
  %v15 = vld [vmem:[%s0] sm:$0xff]
  %v16 = vld [vmem:[%s0 + $0x8] sm:$0xff]
  %v17 = vld [vmem:[%s0 + $0x10] sm:$0xff]
  %v18 = vld [vmem:[%s0 + $0x18] sm:$0xff]
  %v19 = vld [vmem:[%s0 + $0x20] sm:$0xff]
  %v20 = vld [vmem:[%s0 + $0x28] sm:$0xff]
  %v21 = vld [vmem:[%s0 + $0x30] sm:$0xff]
  %v22 = vld [vmem:[%s0 + $0x38] sm:$0xff]
  %v23 = vld [vmem:[%s0 + $0x40] sm:$0xff]
  %v24 = vld [vmem:[%s0 + $0x48] sm:$0xff]
  %v25 = vld [vmem:[%s0 + $0x50] sm:$0xff]
  %v26 = vld [vmem:[%s0 + $0x58] sm:$0xff]
  %v27 = vld [vmem:[%s0 + $0x60] sm:$0xff]
  %v28 = vld [vmem:[%s0 + $0x68] sm:$0xff]
  %v29 = vld [vmem:[%s0 + $0x70] sm:$0xff]
  %v30 = vld [vmem:[%s0 + $0x78] sm:$0xff]
  %v31 = vld [vmem:[%s0 + $0x80] sm:$0xff]
  %v32 = vld [vmem:[%s0 + $0x88] sm:$0xff]
  %v33 = vld [vmem:[%s0 + $0x90] sm:$0xff]
  %v34 = vld [vmem:[%s0 + $0x98] sm:$0xff]
  %v35 = vld [vmem:[%s0 + $0xa0] sm:$0xff]
  %v36 = vld [vmem:[%s0 + $0xa8] sm:$0xff]
  %v37 = vld [vmem:[%s0 + $0xb0] sm:$0xff]
  %v38 = vld [vmem:[%s0 + $0xb8] sm:$0xff]
  %v39 = vld [vmem:[%s0 + $0xc0] sm:$0xff]
  %v40 = vld [vmem:[%s0 + $0xc8] sm:$0xff]
  %v41 = vld [vmem:[%s0 + $0xd0] sm:$0xff]
  %v42 = vld [vmem:[%s0 + $0xd8] sm:$0xff]
  %v43 = vld [vmem:[%s0 + $0xe0] sm:$0xff]
  %v44 = vld [vmem:[%s0 + $0xe8] sm:$0xff]
  %v45 = vld [vmem:[%s0 + $0xf0] sm:$0xff]
  %v46 = vld [vmem:[%s0 + $0xf8] sm:$0xff]
  %v47 = vpack.c.bf16 %v16, %v15
  %v48 = vpack.c.bf16 %v18, %v17
  %v49 = vpack.c.bf16 %v20, %v19
  %v50 = vpack.c.bf16 %v22, %v21
  %v51 = vpack.c.bf16 %v24, %v23
  %v52 = vpack.c.bf16 %v26, %v25
  %v53 = vpack.c.bf16 %v28, %v27
  %v54 = vpack.c.bf16 %v30, %v29
  %v55 = vpack.c.bf16 %v32, %v31
  %v56 = vpack.c.bf16 %v34, %v33
  %v57 = vpack.c.bf16 %v36, %v35
  %v58 = vpack.c.bf16 %v38, %v37
  %v59 = vpack.c.bf16 %v40, %v39
  %v60 = vpack.c.bf16 %v42, %v41
  %v61 = vpack.c.bf16 %v44, %v43
  %v62 = vpack.c.bf16 %v46, %v45
  %v63 = vld [vmem:[%s1] sm:$0xf]
  %v64 = vld [vmem:[%s1 + $0x4] sm:$0xf]
  %v65 = vld [vmem:[%s1 + $0x8] sm:$0xf]
  %v66 = vld [vmem:[%s1 + $0xc] sm:$0xf]
  %v67 = vld [vmem:[%s1 + $0x10] sm:$0xf]
  %v68 = vld [vmem:[%s1 + $0x14] sm:$0xf]
  %v69 = vld [vmem:[%s2] sm:$0x1]
  %v71 = vlaneseq
  %v72 = vshrl.u32 %v71, 7
  %v73 = vsub.s32 0, %v72
  %v74 = vrot.slane %v69, %v73
  %v82 = vunpack.c.l.b16 %v63
  %v83 = vunpack.c.l.b16 %v64
  %v84 = vunpack.c.l.b16 %v65
  %v85 = vunpack.c.l.b16 %v66
  %v86 = vunpack.c.l.b16 %v67
  %v87 = vunpack.c.l.b16 %v68
  %v88 = vpack.c.b16 %v83, %v82
  %v89 = vpack.c.b16 %v85, %v84
  %v90 = vpack.c.b16 %v87, %v86
  %vm94 = vcmask 392192
  %v96 = vsel %vm94, %v47, 0
  %v99 = vsel %vm94, %v48, 0
  %v102 = vsel %vm94, %v49, 0
  %v105 = vsel %vm94, %v50, 0
  %v108 = vsel %vm94, %v51, 0
  %v111 = vsel %vm94, %v52, 0
  %v114 = vsel %vm94, %v53, 0
  %v117 = vsel %vm94, %v54, 0
  %v120 = vsel %vm94, %v55, 0
  %v123 = vsel %vm94, %v56, 0
  %v126 = vsel %vm94, %v57, 0
  %v129 = vsel %vm94, %v58, 0
  %v132 = vsel %vm94, %v59, 0
  %v135 = vsel %vm94, %v60, 0
  %v138 = vsel %vm94, %v61, 0
  %v141 = vsel %vm94, %v62, 0
  %143 = vmatprep.subr.bf16.mxu0 0
  %144 = vmatpush1.bf16.msra.mxu0 %v88
  %145 = vmatprep.subr.bf16.mxu0 0
  %146 = vmatpush1.bf16.msra.mxu0 %v89
  %147 = vmatprep.subr.bf16.mxu0 0
  %148 = vmatpush1.bf16.msra.mxu0 %v90
  %149 = vmatprep.subr.bf16.mxu0 0
  %150 = vmatpush1.bf16.msra.mxu0 0
  %151 = vmatprep.subr.bf16.mxu0 0
  %152 = vmatpush1.bf16.msra.mxu0 0
  %153 = vmatprep.subr.bf16.mxu0 0
  %154 = vmatpush1.bf16.msra.mxu0 0
  %155 = vmatprep.subr.bf16.mxu0 0
  %156 = vmatpush1.bf16.msra.mxu0 0
  %157 = vmatprep.subr.bf16.mxu0 0
  %158 = vmatpush1.bf16.msra.mxu0 0
  %159 = vmatprep.subr.bf16.mxu0 0
  %160 = vmatpush1.bf16.msra.mxu0 0
  %161 = vmatprep.subr.bf16.mxu0 0
  %162 = vmatpush1.bf16.msra.mxu0 0
  %163 = vmatprep.subr.bf16.mxu0 0
  %164 = vmatpush1.bf16.msra.mxu0 0
  %165 = vmatprep.subr.bf16.mxu0 0
  %166 = vmatpush1.bf16.msra.mxu0 0
  %167 = vmatprep.subr.bf16.mxu0 0
  %168 = vmatpush1.bf16.msra.mxu0 0
  %169 = vmatprep.subr.bf16.mxu0 0
  %170 = vmatpush1.bf16.msra.mxu0 0
  %171 = vmatprep.subr.bf16.mxu0 0
  %172 = vmatpush1.bf16.msra.mxu0 0
  %173 = vmatprep.subr.bf16.mxu0 0
  %174 = vmatpush1.bf16.msra.mxu0 0
  %175 = vmatprep.mubr.bf16.mxu0 0
  %176 = vmatmul.mubr.bf16.gmra.mrb[0].mxu0 %v96
  %v177 = vpop.f32.mrb[0].mxu0
  %v178 = vadd.f32 %v74, %v177
  %v179 = vpop.f32.mrb[0].mxu0
  %v180 = vpop.f32.mrb[0].mxu0
  %v181 = vadd.f32 %v74, %v180
  %v182 = vpop.f32.mrb[0].mxu0
  %183 = vmatprep.mubr.bf16.mxu0 0
  %184 = vmatmul.mubr.bf16.gmra.mrb[0].mxu0 %v99
  %v185 = vpop.f32.mrb[0].mxu0
  %v186 = vadd.f32 %v74, %v185
  %v187 = vpop.f32.mrb[0].mxu0
  %v188 = vpop.f32.mrb[0].mxu0
  %v189 = vadd.f32 %v74, %v188
  %v190 = vpop.f32.mrb[0].mxu0
  %191 = vmatprep.mubr.bf16.mxu0 0
  %192 = vmatmul.mubr.bf16.gmra.mrb[0].mxu0 %v102
  %v193 = vpop.f32.mrb[0].mxu0
  %v194 = vadd.f32 %v74, %v193
  %v195 = vpop.f32.mrb[0].mxu0
  %v196 = vpop.f32.mrb[0].mxu0
  %v197 = vadd.f32 %v74, %v196
  %v198 = vpop.f32.mrb[0].mxu0
  %199 = vmatprep.mubr.bf16.mxu0 0
  %200 = vmatmul.mubr.bf16.gmra.mrb[0].mxu0 %v105
  %v201 = vpop.f32.mrb[0].mxu0
  %v202 = vadd.f32 %v74, %v201
  %v203 = vpop.f32.mrb[0].mxu0
  %v204 = vpop.f32.mrb[0].mxu0
  %v205 = vadd.f32 %v74, %v204
  %v206 = vpop.f32.mrb[0].mxu0
  %207 = vmatprep.mubr.bf16.mxu0 0
  %208 = vmatmul.mubr.bf16.gmra.mrb[0].mxu0 %v108
  %v209 = vpop.f32.mrb[0].mxu0
  %v210 = vadd.f32 %v74, %v209
  %v211 = vpop.f32.mrb[0].mxu0
  %v212 = vpop.f32.mrb[0].mxu0
  %v213 = vadd.f32 %v74, %v212
  %v214 = vpop.f32.mrb[0].mxu0
  %215 = vmatprep.mubr.bf16.mxu0 0
  %216 = vmatmul.mubr.bf16.gmra.mrb[0].mxu0 %v111
  %v217 = vpop.f32.mrb[0].mxu0
  %v218 = vadd.f32 %v74, %v217
  %v219 = vpop.f32.mrb[0].mxu0
  %v220 = vpop.f32.mrb[0].mxu0
  %v221 = vadd.f32 %v74, %v220
  %v222 = vpop.f32.mrb[0].mxu0
  %223 = vmatprep.mubr.bf16.mxu0 0
  %224 = vmatmul.mubr.bf16.gmra.mrb[0].mxu0 %v114
  %v225 = vpop.f32.mrb[0].mxu0
  %v226 = vadd.f32 %v74, %v225
  %v227 = vpop.f32.mrb[0].mxu0
  %v228 = vpop.f32.mrb[0].mxu0
  %v229 = vadd.f32 %v74, %v228
  %v230 = vpop.f32.mrb[0].mxu0
  %231 = vmatprep.mubr.bf16.mxu0 0
  %232 = vmatmul.mubr.bf16.gmra.mrb[0].mxu0 %v117
  %v233 = vpop.f32.mrb[0].mxu0
  %v234 = vadd.f32 %v74, %v233
  %v235 = vpop.f32.mrb[0].mxu0
  %v236 = vpop.f32.mrb[0].mxu0
  %v237 = vadd.f32 %v74, %v236
  %v238 = vpop.f32.mrb[0].mxu0
  %239 = vmatprep.mubr.bf16.mxu0 0
  %240 = vmatmul.mubr.bf16.gmra.mrb[0].mxu0 %v120
  %v241 = vpop.f32.mrb[0].mxu0
  %v242 = vadd.f32 %v74, %v241
  %v243 = vpop.f32.mrb[0].mxu0
  %v244 = vpop.f32.mrb[0].mxu0
  %v245 = vadd.f32 %v74, %v244
  %v246 = vpop.f32.mrb[0].mxu0
  %247 = vmatprep.mubr.bf16.mxu0 0
  %248 = vmatmul.mubr.bf16.gmra.mrb[0].mxu0 %v123
  %v249 = vpop.f32.mrb[0].mxu0
  %v250 = vadd.f32 %v74, %v249
  %v251 = vpop.f32.mrb[0].mxu0
  %v252 = vpop.f32.mrb[0].mxu0
  %v253 = vadd.f32 %v74, %v252
  %v254 = vpop.f32.mrb[0].mxu0
  %255 = vmatprep.mubr.bf16.mxu0 0
  %256 = vmatmul.mubr.bf16.gmra.mrb[0].mxu0 %v126
  %v257 = vpop.f32.mrb[0].mxu0
  %v258 = vadd.f32 %v74, %v257
  %v259 = vpop.f32.mrb[0].mxu0
  %v260 = vpop.f32.mrb[0].mxu0
  %v261 = vadd.f32 %v74, %v260
  %v262 = vpop.f32.mrb[0].mxu0
  %263 = vmatprep.mubr.bf16.mxu0 0
  %264 = vmatmul.mubr.bf16.gmra.mrb[0].mxu0 %v129
  %v265 = vpop.f32.mrb[0].mxu0
  %v266 = vadd.f32 %v74, %v265
  %v267 = vpop.f32.mrb[0].mxu0
  %v268 = vpop.f32.mrb[0].mxu0
  %v269 = vadd.f32 %v74, %v268
  %v270 = vpop.f32.mrb[0].mxu0
  %271 = vmatprep.mubr.bf16.mxu0 0
  %272 = vmatmul.mubr.bf16.gmra.mrb[0].mxu0 %v132
  %v273 = vpop.f32.mrb[0].mxu0
  %v274 = vadd.f32 %v74, %v273
  %v275 = vpop.f32.mrb[0].mxu0
  %v276 = vpop.f32.mrb[0].mxu0
  %v277 = vadd.f32 %v74, %v276
  %v278 = vpop.f32.mrb[0].mxu0
  %279 = vmatprep.mubr.bf16.mxu0 0
  %280 = vmatmul.mubr.bf16.gmra.mrb[0].mxu0 %v135
  %v281 = vpop.f32.mrb[0].mxu0
  %v282 = vadd.f32 %v74, %v281
  %v283 = vpop.f32.mrb[0].mxu0
  %v284 = vpop.f32.mrb[0].mxu0
  %v285 = vadd.f32 %v74, %v284
  %v286 = vpop.f32.mrb[0].mxu0
  %287 = vmatprep.mubr.bf16.mxu0 0
  %288 = vmatmul.mubr.bf16.gmra.mrb[0].mxu0 %v138
  %v289 = vpop.f32.mrb[0].mxu0
  %v290 = vadd.f32 %v74, %v289
  %v291 = vpop.f32.mrb[0].mxu0
  %v292 = vpop.f32.mrb[0].mxu0
  %v293 = vadd.f32 %v74, %v292
  %v294 = vpop.f32.mrb[0].mxu0
  %295 = vmatprep.mubr.bf16.mxu0 0
  %296 = vmatmul.mubr.bf16.gmra.mrb[0].mxu0 %v141
  %v297 = vpop.f32.mrb[0].mxu0
  %v298 = vadd.f32 %v74, %v297
  %v299 = vpop.f32.mrb[0].mxu0
  %v300 = vpop.f32.mrb[0].mxu0
  %v301 = vadd.f32 %v74, %v300
  %v302 = vpop.f32.mrb[0].mxu0
  %303 = vdwg.mxu0
  %vm304 = vcmask 261120
  %305 = vst.msk [vmem:[%s3] sm:$0xff] %vm304, %v178
  %306 = vst.msk [vmem:[%s3 + $0x8] sm:$0xff] %vm304, %v181
  %307 = vst.msk [vmem:[%s3 + $0x10] sm:$0xff] %vm304, %v186
  %308 = vst.msk [vmem:[%s3 + $0x18] sm:$0xff] %vm304, %v189
  %309 = vst.msk [vmem:[%s3 + $0x20] sm:$0xff] %vm304, %v194
  %310 = vst.msk [vmem:[%s3 + $0x28] sm:$0xff] %vm304, %v197
  %311 = vst.msk [vmem:[%s3 + $0x30] sm:$0xff] %vm304, %v202
  %312 = vst.msk [vmem:[%s3 + $0x38] sm:$0xff] %vm304, %v205
  %313 = vst.msk [vmem:[%s3 + $0x40] sm:$0xff] %vm304, %v210
  %314 = vst.msk [vmem:[%s3 + $0x48] sm:$0xff] %vm304, %v213
  %315 = vst.msk [vmem:[%s3 + $0x50] sm:$0xff] %vm304, %v218
  %316 = vst.msk [vmem:[%s3 + $0x58] sm:$0xff] %vm304, %v221
  %317 = vst.msk [vmem:[%s3 + $0x60] sm:$0xff] %vm304, %v226
  %318 = vst.msk [vmem:[%s3 + $0x68] sm:$0xff] %vm304, %v229
  %319 = vst.msk [vmem:[%s3 + $0x70] sm:$0xff] %vm304, %v234
  %320 = vst.msk [vmem:[%s3 + $0x78] sm:$0xff] %vm304, %v237
  %321 = vst.msk [vmem:[%s3 + $0x80] sm:$0xff] %vm304, %v242
  %322 = vst.msk [vmem:[%s3 + $0x88] sm:$0xff] %vm304, %v245
  %323 = vst.msk [vmem:[%s3 + $0x90] sm:$0xff] %vm304, %v250
  %324 = vst.msk [vmem:[%s3 + $0x98] sm:$0xff] %vm304, %v253
  %325 = vst.msk [vmem:[%s3 + $0xa0] sm:$0xff] %vm304, %v258
  %326 = vst.msk [vmem:[%s3 + $0xa8] sm:$0xff] %vm304, %v261
  %327 = vst.msk [vmem:[%s3 + $0xb0] sm:$0xff] %vm304, %v266
  %328 = vst.msk [vmem:[%s3 + $0xb8] sm:$0xff] %vm304, %v269
  %329 = vst.msk [vmem:[%s3 + $0xc0] sm:$0xff] %vm304, %v274
  %330 = vst.msk [vmem:[%s3 + $0xc8] sm:$0xff] %vm304, %v277
  %331 = vst.msk [vmem:[%s3 + $0xd0] sm:$0xff] %vm304, %v282
  %332 = vst.msk [vmem:[%s3 + $0xd8] sm:$0xff] %vm304, %v285
  %333 = vst.msk [vmem:[%s3 + $0xe0] sm:$0xff] %vm304, %v290
  %334 = vst.msk [vmem:[%s3 + $0xe8] sm:$0xff] %vm304, %v293
  %335 = vst.msk [vmem:[%s3 + $0xf0] sm:$0xff] %vm304, %v298
  %336 = vst.msk [vmem:[%s3 + $0xf8] sm:$0xff] %vm304, %v301
  // Predicated region
  $region14: #{vit_forward.8} parent=0 // pred_check
    _
  $region15: #{vit_forward.8} parent=0 // pred_check_branch
    %338 = sbr.rel (0) target = $region17
  $region16: #{vit_forward.8} parent=0 // pred_region
    _
  $region17: #{vit_forward.8} parent=0 // pred_fallthru
    _
  // Predicated region
  $region18: #{vit_forward.8} parent=0 // pred_check
    _
  $region19: #{vit_forward.8} parent=0 // pred_check_branch
    %340 = sbr.rel (0) target = $region21
  $region20: #{vit_forward.8} parent=0 // pred_region
    _
  $region21: #{vit_forward.8} parent=0 // pred_fallthru
    _

// kernel: vit_forward.9
$region0: #{vit_forward.9}
  #allocation0 [shape = 'u32[]', space=smem, size = 0x4, offset = 0x4, fixed_abs, tag = 'smem constant byte address 0x4 - core index']
  #allocation1 [shape = 'u32[144,128]{1,0:T(1,128)}', space=vmem, size = 0x12000, scoped, tag = 'internal scratch']
  %s0 = inlined_call_operand.vmem [shape: f32[256,32], index: 0, kind: input, shape index: {}]
  %s1 = inlined_call_operand.vmem [shape: f32[1,32], index: 1, kind: input, shape index: {}]
  %s2 = inlined_call_operand.vmem [shape: f32[1,32], index: 2, kind: input, shape index: {}]
  %s3 = inlined_call_operand.vmem [shape: bf16[32,96], index: 3, kind: input, shape index: {}]
  %s4 = inlined_call_operand.vmem [shape: f32[1,96], index: 4, kind: input, shape index: {}]
  %s5 = inlined_call_operand.vmem [shape: bf16[256,96], index: 5, kind: output, shape index: {}]
  %s6 = sld [smem:[#allocation0]]
  $region53: #{vit_forward.9} parent=0
    _
  %s8 = ssub.s32 1, %s6
  %s9 = scalar_select 0, %s8, %s6
  loop: start=0, step=1, limit=4
  $region2: #{vit_forward.9} parent=0 // loop_pre_header
    _
  $region3: #{vit_forward.9} parent=0 // loop_header
    %s11 = sphi 0, %s15
    %p12 = scmp.ge.s32.totalorder %s11, 4
    %s21 = sphi 0, %s23
    %s24 = sphi 0, %s21
    %s25 = sphi 0, %s24
    %s41 = sphi 0, %s25
    %s45 = sphi 0, %s45
    %s47 = sphi 0, %s45
    %s48 = sphi 0, %s47
    %s62 = sphi 0, %s48
    %s66 = sphi 0, %s66
    %s68 = sphi 0, %s66
    %s69 = sphi 0, %s68
    %s83 = sphi 0, %s69
    %s87 = sphi 0, %s87
    %s89 = sphi 0, %s87
    %s90 = sphi 0, %s89
    %s104 = sphi 0, %s90
    %s108 = sphi 0, %s108
    %s110 = sphi 0, %s108
    %s111 = sphi 0, %s110
    %s125 = sphi 0, %s111
    %s131 = sphi 0, %s133
    %s134 = sphi 0, %s131
    %s135 = sphi 0, %s134
    %s151 = sphi 0, %s135
  $region4: #{vit_forward.9} parent=0 // loop_header_branch
    %14 = sbr.rel (%p12) target = $region8
  $region5: #{vit_forward.9} parent=0 // loop_body
    %s16 = ssub.s32 %s11, 1
    %s17 = ssub.s32 %s11, 2
    %s18 = sadd.s32 %s11, 1
    %s19 = ssub.s32 %s11, %s18
    %p20 = scmp.eq.s32.totalorder %s19, 0
    %s22 = sadd.s32 %s21, 1
    %s23 = scalar_select %p20, %s21, %s22
    %p26 = pneg %p20
    %p27 = scmp.eq.s32.totalorder %s11, 1
    %p28 = por %p26, %p27
    %p29 = scmp.ne.s32.totalorder %s21, %s24
    %p30 = scmp.eq.s32.totalorder %s11, 0
    %p31 = por %p29, %p30
    %p32 = scmp.ne.s32.totalorder %s21, %s24
    %p33 = scmp.eq.s32.totalorder %s16, 1
    %p34 = por %p32, %p33
    %p35 = scmp.ne.s32.totalorder %s24, %s25
    %p36 = scmp.eq.s32.totalorder %s16, 0
    %p37 = por %p35, %p36
    %p38 = scmp.ne.s32.totalorder %s24, %s25
    %p39 = scmp.eq.s32.totalorder %s17, 1
    %p40 = por %p38, %p39
    %p42 = scmp.ne.s32.totalorder %s25, %s41
    %p43 = scmp.eq.s32.totalorder %s17, 0
    %p44 = por %p42, %p43
    %s46 = sadd.s32 %s45, 1
    %p49 = scmp.eq.s32.totalorder %s11, 1
    %p50 = scmp.ne.s32.totalorder %s45, %s47
    %p51 = scmp.eq.s32.totalorder %s11, 0
    %p52 = por %p50, %p51
    %p53 = scmp.ne.s32.totalorder %s45, %s47
    %p54 = scmp.eq.s32.totalorder %s16, 1
    %p55 = por %p53, %p54
    %p56 = scmp.ne.s32.totalorder %s47, %s48
    %p57 = scmp.eq.s32.totalorder %s16, 0
    %p58 = por %p56, %p57
    %p59 = scmp.ne.s32.totalorder %s47, %s48
    %p60 = scmp.eq.s32.totalorder %s17, 1
    %p61 = por %p59, %p60
    %p63 = scmp.ne.s32.totalorder %s48, %s62
    %p64 = scmp.eq.s32.totalorder %s17, 0
    %p65 = por %p63, %p64
    %s67 = sadd.s32 %s66, 1
    %p70 = scmp.eq.s32.totalorder %s11, 1
    %p71 = scmp.ne.s32.totalorder %s66, %s68
    %p72 = scmp.eq.s32.totalorder %s11, 0
    %p73 = por %p71, %p72
    %p74 = scmp.ne.s32.totalorder %s66, %s68
    %p75 = scmp.eq.s32.totalorder %s16, 1
    %p76 = por %p74, %p75
    %p77 = scmp.ne.s32.totalorder %s68, %s69
    %p78 = scmp.eq.s32.totalorder %s16, 0
    %p79 = por %p77, %p78
    %p80 = scmp.ne.s32.totalorder %s68, %s69
    %p81 = scmp.eq.s32.totalorder %s17, 1
    %p82 = por %p80, %p81
    %p84 = scmp.ne.s32.totalorder %s69, %s83
    %p85 = scmp.eq.s32.totalorder %s17, 0
    %p86 = por %p84, %p85
    %s88 = sadd.s32 %s87, 1
    %p91 = scmp.eq.s32.totalorder %s11, 1
    %p92 = scmp.ne.s32.totalorder %s87, %s89
    %p93 = scmp.eq.s32.totalorder %s11, 0
    %p94 = por %p92, %p93
    %p95 = scmp.ne.s32.totalorder %s87, %s89
    %p96 = scmp.eq.s32.totalorder %s16, 1
    %p97 = por %p95, %p96
    %p98 = scmp.ne.s32.totalorder %s89, %s90
    %p99 = scmp.eq.s32.totalorder %s16, 0
    %p100 = por %p98, %p99
    %p101 = scmp.ne.s32.totalorder %s89, %s90
    %p102 = scmp.eq.s32.totalorder %s17, 1
    %p103 = por %p101, %p102
    %p105 = scmp.ne.s32.totalorder %s90, %s104
    %p106 = scmp.eq.s32.totalorder %s17, 0
    %p107 = por %p105, %p106
    %s109 = sadd.s32 %s108, 1
    %p112 = scmp.eq.s32.totalorder %s11, 1
    %p113 = scmp.ne.s32.totalorder %s108, %s110
    %p114 = scmp.eq.s32.totalorder %s11, 0
    %p115 = por %p113, %p114
    %p116 = scmp.ne.s32.totalorder %s108, %s110
    %p117 = scmp.eq.s32.totalorder %s16, 1
    %p118 = por %p116, %p117
    %p119 = scmp.ne.s32.totalorder %s110, %s111
    %p120 = scmp.eq.s32.totalorder %s16, 0
    %p121 = por %p119, %p120
    %p122 = scmp.ne.s32.totalorder %s110, %s111
    %p123 = scmp.eq.s32.totalorder %s17, 1
    %p124 = por %p122, %p123
    %p126 = scmp.ne.s32.totalorder %s111, %s125
    %p127 = scmp.eq.s32.totalorder %s17, 0
    %p128 = por %p126, %p127
    %s129 = ssub.s32 %s11, %s18
    %p130 = scmp.eq.s32.totalorder %s129, 0
    %s132 = sadd.s32 %s131, 1
    %s133 = scalar_select %p130, %s131, %s132
    %p136 = pneg %p130
    %p137 = scmp.eq.s32.totalorder %s11, 1
    %p138 = por %p136, %p137
    %p139 = scmp.ne.s32.totalorder %s131, %s134
    %p140 = scmp.eq.s32.totalorder %s11, 0
    %p141 = por %p139, %p140
    %p142 = scmp.ne.s32.totalorder %s131, %s134
    %p143 = scmp.eq.s32.totalorder %s16, 1
    %p144 = por %p142, %p143
    %p145 = scmp.ne.s32.totalorder %s134, %s135
    %p146 = scmp.eq.s32.totalorder %s16, 0
    %p147 = por %p145, %p146
    %p148 = scmp.ne.s32.totalorder %s134, %s135
    %p149 = scmp.eq.s32.totalorder %s17, 1
    %p150 = por %p148, %p149
    %p152 = scmp.ne.s32.totalorder %s135, %s151
    %p153 = scmp.eq.s32.totalorder %s17, 0
    %p154 = por %p152, %p153
    %p155 = scmp.le.s32.totalorder 1, %s11
    %p156 = scmp.lt.s32.totalorder %s11, 3
    %p157 = pnand %p155, %p156
    %p158 = pneg %p157
    // Predicated region
    $region9: #{vit_forward.9} parent=5 // pred_check
      _
    $region10: #{vit_forward.9} parent=5 // pred_check_branch
      %160 = sbr.rel (%p157) target = $region12
    $region11: #{vit_forward.9} parent=5 // pred_region
      %s161 = ssub.s32 %s11, 1
      // Predicated region
      $region13: #{vit_forward.9} parent=11 // pred_check
        %p162 = pneg %p58
      $region14: #{vit_forward.9} parent=11 // pred_check_branch
        %164 = sbr.rel (%p162) target = $region16
      $region15: #{vit_forward.9} parent=11 // pred_region
        _
      $region16: #{vit_forward.9} parent=11 // pred_fallthru
        _
      // Predicated region
      $region17: #{vit_forward.9} parent=11 // pred_check
        %p165 = pneg %p79
      $region18: #{vit_forward.9} parent=11 // pred_check_branch
        %167 = sbr.rel (%p165) target = $region20
      $region19: #{vit_forward.9} parent=11 // pred_region
        _
      $region20: #{vit_forward.9} parent=11 // pred_fallthru
        _
      // Predicated region
      $region21: #{vit_forward.9} parent=11 // pred_check
        %p168 = pneg %p100
      $region22: #{vit_forward.9} parent=11 // pred_check_branch
        %170 = sbr.rel (%p168) target = $region24
      $region23: #{vit_forward.9} parent=11 // pred_region
        _
      $region24: #{vit_forward.9} parent=11 // pred_fallthru
        _
      // Predicated region
      $region25: #{vit_forward.9} parent=11 // pred_check
        %p171 = pneg %p121
      $region26: #{vit_forward.9} parent=11 // pred_check_branch
        %173 = sbr.rel (%p171) target = $region28
      $region27: #{vit_forward.9} parent=11 // pred_region
        _
      $region28: #{vit_forward.9} parent=11 // pred_fallthru
        _
    $region12: #{vit_forward.9} parent=5 // pred_fallthru
      _
    %p174 = scmp.lt.s32.totalorder %s11, 2
    // Predicated region
    $region29: #{vit_forward.9} parent=5 // pred_check
      %p175 = pneg %p174
    $region30: #{vit_forward.9} parent=5 // pred_check_branch
      %177 = sbr.rel (%p175) target = $region32
    $region31: #{vit_forward.9} parent=5 // pred_region
      // Predicated region
      $region33: #{vit_forward.9} parent=31 // pred_check
        %p178 = pneg %p31
      $region34: #{vit_forward.9} parent=31 // pred_check_branch
        %180 = sbr.rel (%p178) target = $region36
      $region35: #{vit_forward.9} parent=31 // pred_region
        %s181 = smul.u32 16, %s11
        %p182 = scmp.lt.s32.totalorder %s181, 31
        %s183 = scalar_select %p182, %s181, 31
        %s184 = smul.addr %s183, 8
        %s185 = scalar_lea.vmem %s0, %s184
        %s186 = smul.u32 16, %s11
      $region36: #{vit_forward.9} parent=31 // pred_fallthru
        _
    $region32: #{vit_forward.9} parent=5 // pred_fallthru
      _
    %p187 = scmp.le.s32.totalorder 1, %s11
    %p188 = scmp.lt.s32.totalorder %s11, 3
    %p189 = pnand %p187, %p188
    %p190 = pneg %p189
    // Predicated region
    $region37: #{vit_forward.9} parent=5 // pred_check
      _
    $region38: #{vit_forward.9} parent=5 // pred_check_branch
      %192 = sbr.rel (%p189) target = $region40
    $region39: #{vit_forward.9} parent=5 // pred_region
      %s193 = ssub.s32 %s11, 1
      %s194 = smul.u32 16, %s16
      %p195 = scmp.lt.s32.totalorder %s194, 31
      %s196 = scalar_select %p195, %s194, 31
      %s197 = smul.addr %s196, 8
      %s198 = scalar_lea.vmem %s0, %s197
      %p199 = pneg %p37
      %p200 = pneg %p34
      %p201 = pneg %p58
      %p202 = pneg %p55
      %p203 = pneg %p79
      %p204 = pneg %p76
      %p205 = pneg %p100
      %p206 = pneg %p97
      %p207 = pneg %p121
      %p208 = pneg %p118
      %p209 = pneg %p147
      %p210 = pneg %p144
      %s211 = smul.u32 16, %s16
      %p212 = scmp.lt.s32.totalorder %s211, 31
      %s213 = scalar_select %p212, %s211, 31
      %s214 = smul.addr %s213, 4
      %s215 = scalar_lea.vmem %s5, %s214
      %s216 = smul.u32 16, %s16
      %p217 = scmp.lt.s32.totalorder %s216, 31
      %s218 = scalar_select %p217, %s216, 31
      %s219 = smul.addr %s218, 8
      %s220 = scalar_lea.vmem %s0, %s219
      %s221 = smul.u32 16, %s16
      %s222 = smul.u32 16, %s16
      %p223 = scmp.lt.s32.totalorder %s222, 31
      %s224 = scalar_select %p223, %s222, 31
      %s225 = smul.addr %s224, 4
      %s226 = scalar_lea.vmem %s5, %s225
      %s227 = smul.u32 16, %s16
      %v229 = vld [vmem:[%s220] sm:$0xff]
      %v230 = vld [vmem:[%s220 + $0x8] sm:$0xff]
      %v231 = vld [vmem:[%s220 + $0x10] sm:$0xff]
      %v232 = vld [vmem:[%s220 + $0x18] sm:$0xff]
      %v233 = vld [vmem:[%s220 + $0x20] sm:$0xff]
      %v234 = vld [vmem:[%s220 + $0x28] sm:$0xff]
      %v235 = vld [vmem:[%s220 + $0x30] sm:$0xff]
      %v236 = vld [vmem:[%s220 + $0x38] sm:$0xff]
      %v237 = vld [vmem:[%s220 + $0x40] sm:$0xff]
      %v238 = vld [vmem:[%s220 + $0x48] sm:$0xff]
      %v239 = vld [vmem:[%s220 + $0x50] sm:$0xff]
      %v240 = vld [vmem:[%s220 + $0x58] sm:$0xff]
      %v241 = vld [vmem:[%s220 + $0x60] sm:$0xff]
      %v242 = vld [vmem:[%s220 + $0x68] sm:$0xff]
      %v243 = vld [vmem:[%s220 + $0x70] sm:$0xff]
      %v244 = vld [vmem:[%s220 + $0x78] sm:$0xff]
      %v245 = vld [vmem:[%s1] sm:$0x1]
      %v246 = vld [vmem:[%s2] sm:$0x1]
      %vm247 = vcmask 261120
      %v248 = vsel %vm247, %v229, 0.0
      %249 = vadd.xlane.f32.xlu0 %v248
      %v250 = vpop.xlane.xlu0 %249
      %v251 = vsel %vm247, %v230, 0.0
      %252 = vadd.xlane.f32.xlu0 %v251
      %v253 = vpop.xlane.xlu0 %252
      %v254 = vsel %vm247, %v231, 0.0
      %255 = vadd.xlane.f32.xlu0 %v254
      %v256 = vpop.xlane.xlu0 %255
      %v257 = vsel %vm247, %v232, 0.0
      %258 = vadd.xlane.f32.xlu0 %v257
      %v259 = vpop.xlane.xlu0 %258
      %v260 = vsel %vm247, %v233, 0.0
      %261 = vadd.xlane.f32.xlu0 %v260
      %v262 = vpop.xlane.xlu0 %261
      %v263 = vsel %vm247, %v234, 0.0
      %264 = vadd.xlane.f32.xlu0 %v263
      %v265 = vpop.xlane.xlu0 %264
      %v266 = vsel %vm247, %v235, 0.0
      %267 = vadd.xlane.f32.xlu0 %v266
      %v268 = vpop.xlane.xlu0 %267
      %v269 = vsel %vm247, %v236, 0.0
      %270 = vadd.xlane.f32.xlu0 %v269
      %v271 = vpop.xlane.xlu0 %270
      %v272 = vsel %vm247, %v237, 0.0
      %273 = vadd.xlane.f32.xlu0 %v272
      %v274 = vpop.xlane.xlu0 %273
      %v275 = vsel %vm247, %v238, 0.0
      %276 = vadd.xlane.f32.xlu0 %v275
      %v277 = vpop.xlane.xlu0 %276
      %v278 = vsel %vm247, %v239, 0.0
      %279 = vadd.xlane.f32.xlu0 %v278
      %v280 = vpop.xlane.xlu0 %279
      %v281 = vsel %vm247, %v240, 0.0
      %282 = vadd.xlane.f32.xlu0 %v281
      %v283 = vpop.xlane.xlu0 %282
      %v284 = vsel %vm247, %v241, 0.0
      %285 = vadd.xlane.f32.xlu0 %v284
      %v286 = vpop.xlane.xlu0 %285
      %v287 = vsel %vm247, %v242, 0.0
      %288 = vadd.xlane.f32.xlu0 %v287
      %v289 = vpop.xlane.xlu0 %288
      %v290 = vsel %vm247, %v243, 0.0
      %291 = vadd.xlane.f32.xlu0 %v290
      %v292 = vpop.xlane.xlu0 %291
      %v293 = vsel %vm247, %v244, 0.0
      %294 = vadd.xlane.f32.xlu0 %v293
      %v295 = vpop.xlane.xlu0 %294
      %v296 = vrcp.pop 32.0
      %v297 = vmul.f32 %v250, %v296
      %v298 = vmul.f32 %v253, %v296
      %v299 = vmul.f32 %v256, %v296
      %v300 = vmul.f32 %v259, %v296
      %v301 = vmul.f32 %v262, %v296
      %v302 = vmul.f32 %v265, %v296
      %v303 = vmul.f32 %v268, %v296
      %v304 = vmul.f32 %v271, %v296
      %v305 = vmul.f32 %v274, %v296
      %v306 = vmul.f32 %v277, %v296
      %v307 = vmul.f32 %v280, %v296
      %v308 = vmul.f32 %v283, %v296
      %v309 = vmul.f32 %v286, %v296
      %v310 = vmul.f32 %v289, %v296
      %v311 = vmul.f32 %v292, %v296
      %v312 = vmul.f32 %v295, %v296
      %v313 = vsub.f32 %v229, %v297
      %v314 = vsub.f32 %v230, %v298
      %v315 = vsub.f32 %v231, %v299
      %v316 = vsub.f32 %v232, %v300
      %v317 = vsub.f32 %v233, %v301
      %v318 = vsub.f32 %v234, %v302
      %v319 = vsub.f32 %v235, %v303
      %v320 = vsub.f32 %v236, %v304
      %v321 = vsub.f32 %v237, %v305
      %v322 = vsub.f32 %v238, %v306
      %v323 = vsub.f32 %v239, %v307
      %v324 = vsub.f32 %v240, %v308
      %v325 = vsub.f32 %v241, %v309
      %v326 = vsub.f32 %v242, %v310
      %v327 = vsub.f32 %v243, %v311
      %v328 = vsub.f32 %v244, %v312
      %v329 = vmul.f32 %v313, %v313
      %v330 = vmul.f32 %v314, %v314
      %v331 = vmul.f32 %v315, %v315
      %v332 = vmul.f32 %v316, %v316
      %v333 = vmul.f32 %v317, %v317
      %v334 = vmul.f32 %v318, %v318
      %v335 = vmul.f32 %v319, %v319
      %v336 = vmul.f32 %v320, %v320
      %v337 = vmul.f32 %v321, %v321
      %v338 = vmul.f32 %v322, %v322
      %v339 = vmul.f32 %v323, %v323
      %v340 = vmul.f32 %v324, %v324
      %v341 = vmul.f32 %v325, %v325
      %v342 = vmul.f32 %v326, %v326
      %v343 = vmul.f32 %v327, %v327
      %v344 = vmul.f32 %v328, %v328
      %v345 = vsel %vm247, %v329, 0.0
      %346 = vadd.xlane.f32.xlu0 %v345
      %v347 = vpop.xlane.xlu0 %346
      %v348 = vsel %vm247, %v330, 0.0
      %349 = vadd.xlane.f32.xlu0 %v348
      %v350 = vpop.xlane.xlu0 %349
      %v351 = vsel %vm247, %v331, 0.0
      %352 = vadd.xlane.f32.xlu0 %v351
      %v353 = vpop.xlane.xlu0 %352
      %v354 = vsel %vm247, %v332, 0.0
      %355 = vadd.xlane.f32.xlu0 %v354
      %v356 = vpop.xlane.xlu0 %355
      %v357 = vsel %vm247, %v333, 0.0
      %358 = vadd.xlane.f32.xlu0 %v357
      %v359 = vpop.xlane.xlu0 %358
      %v360 = vsel %vm247, %v334, 0.0
      %361 = vadd.xlane.f32.xlu0 %v360
      %v362 = vpop.xlane.xlu0 %361
      %v363 = vsel %vm247, %v335, 0.0
      %364 = vadd.xlane.f32.xlu0 %v363
      %v365 = vpop.xlane.xlu0 %364
      %v366 = vsel %vm247, %v336, 0.0
      %367 = vadd.xlane.f32.xlu0 %v366
      %v368 = vpop.xlane.xlu0 %367
      %v369 = vsel %vm247, %v337, 0.0
      %370 = vadd.xlane.f32.xlu0 %v369
      %v371 = vpop.xlane.xlu0 %370
      %v372 = vsel %vm247, %v338, 0.0
      %373 = vadd.xlane.f32.xlu0 %v372
      %v374 = vpop.xlane.xlu0 %373
      %v375 = vsel %vm247, %v339, 0.0
      %376 = vadd.xlane.f32.xlu0 %v375
      %v377 = vpop.xlane.xlu0 %376
      %v378 = vsel %vm247, %v340, 0.0
      %379 = vadd.xlane.f32.xlu0 %v378
      %v380 = vpop.xlane.xlu0 %379
      %v381 = vsel %vm247, %v341, 0.0
      %382 = vadd.xlane.f32.xlu0 %v381
      %v383 = vpop.xlane.xlu0 %382
      %v384 = vsel %vm247, %v342, 0.0
      %385 = vadd.xlane.f32.xlu0 %v384
      %v386 = vpop.xlane.xlu0 %385
      %v387 = vsel %vm247, %v343, 0.0
      %388 = vadd.xlane.f32.xlu0 %v387
      %v389 = vpop.xlane.xlu0 %388
      %v390 = vsel %vm247, %v344, 0.0
      %391 = vadd.xlane.f32.xlu0 %v390
      %v392 = vpop.xlane.xlu0 %391
      %v393 = vmul.f32 %v347, %v296
      %v394 = vmul.f32 %v350, %v296
      %v395 = vmul.f32 %v353, %v296
      %v396 = vmul.f32 %v356, %v296
      %v397 = vmul.f32 %v359, %v296
      %v398 = vmul.f32 %v362, %v296
      %v399 = vmul.f32 %v365, %v296
      %v400 = vmul.f32 %v368, %v296
      %v401 = vmul.f32 %v371, %v296
      %v402 = vmul.f32 %v374, %v296
      %v403 = vmul.f32 %v377, %v296
      %v404 = vmul.f32 %v380, %v296
      %v405 = vmul.f32 %v383, %v296
      %v406 = vmul.f32 %v386, %v296
      %v407 = vmul.f32 %v389, %v296
      %v408 = vmul.f32 %v392, %v296
      %v409 = vadd.f32 %v393, 1e-06
      %v410 = vadd.f32 %v394, 1e-06
      %v411 = vadd.f32 %v395, 1e-06
      %v412 = vadd.f32 %v396, 1e-06
      %v413 = vadd.f32 %v397, 1e-06
      %v414 = vadd.f32 %v398, 1e-06
      %v415 = vadd.f32 %v399, 1e-06
      %v416 = vadd.f32 %v400, 1e-06
      %v417 = vadd.f32 %v401, 1e-06
      %v418 = vadd.f32 %v402, 1e-06
      %v419 = vadd.f32 %v403, 1e-06
      %v420 = vadd.f32 %v404, 1e-06
      %v421 = vadd.f32 %v405, 1e-06
      %v422 = vadd.f32 %v406, 1e-06
      %v423 = vadd.f32 %v407, 1e-06
      %v424 = vadd.f32 %v408, 1e-06
      %v425 = vrsqrt.pop %v409
      %v426 = vrsqrt.pop %v410
      %v427 = vrsqrt.pop %v411
      %v428 = vrsqrt.pop %v412
      %v429 = vrsqrt.pop %v413
      %v430 = vrsqrt.pop %v414
      %v431 = vrsqrt.pop %v415
      %v432 = vrsqrt.pop %v416
      %v433 = vrsqrt.pop %v417
      %v434 = vrsqrt.pop %v418
      %v435 = vrsqrt.pop %v419
      %v436 = vrsqrt.pop %v420
      %v437 = vrsqrt.pop %v421
      %v438 = vrsqrt.pop %v422
      %v439 = vrsqrt.pop %v423
      %v440 = vrsqrt.pop %v424
      %v441 = vmul.f32 %v313, %v425
      %v442 = vmul.f32 %v314, %v426
      %v443 = vmul.f32 %v315, %v427
      %v444 = vmul.f32 %v316, %v428
      %v445 = vmul.f32 %v317, %v429
      %v446 = vmul.f32 %v318, %v430
      %v447 = vmul.f32 %v319, %v431
      %v448 = vmul.f32 %v320, %v432
      %v449 = vmul.f32 %v321, %v433
      %v450 = vmul.f32 %v322, %v434
      %v451 = vmul.f32 %v323, %v435
      %v452 = vmul.f32 %v324, %v436
      %v453 = vmul.f32 %v325, %v437
      %v454 = vmul.f32 %v326, %v438
      %v455 = vmul.f32 %v327, %v439
      %v456 = vmul.f32 %v328, %v440
      %v458 = vlaneseq
      %v459 = vshrl.u32 %v458, 7
      %v460 = vsub.s32 0, %v459
      %v461 = vrot.slane %v245, %v460
      %v463 = vmul.f32 %v441, %v461
      %v464 = vmul.f32 %v442, %v461
      %v465 = vmul.f32 %v443, %v461
      %v466 = vmul.f32 %v444, %v461
      %v467 = vmul.f32 %v445, %v461
      %v468 = vmul.f32 %v446, %v461
      %v469 = vmul.f32 %v447, %v461
      %v470 = vmul.f32 %v448, %v461
      %v471 = vmul.f32 %v449, %v461
      %v472 = vmul.f32 %v450, %v461
      %v473 = vmul.f32 %v451, %v461
      %v474 = vmul.f32 %v452, %v461
      %v475 = vmul.f32 %v453, %v461
      %v476 = vmul.f32 %v454, %v461
      %v477 = vmul.f32 %v455, %v461
      %v478 = vmul.f32 %v456, %v461
      %v480 = vlaneseq
      %v481 = vshrl.u32 %v480, 7
      %v482 = vsub.s32 0, %v481
      %v483 = vrot.slane %v246, %v482
      %v485 = vadd.f32 %v463, %v483
      %v486 = vadd.f32 %v464, %v483
      %v487 = vadd.f32 %v465, %v483
      %v488 = vadd.f32 %v466, %v483
      %v489 = vadd.f32 %v467, %v483
      %v490 = vadd.f32 %v468, %v483
      %v491 = vadd.f32 %v469, %v483
      %v492 = vadd.f32 %v470, %v483
      %v493 = vadd.f32 %v471, %v483
      %v494 = vadd.f32 %v472, %v483
      %v495 = vadd.f32 %v473, %v483
      %v496 = vadd.f32 %v474, %v483
      %v497 = vadd.f32 %v475, %v483
      %v498 = vadd.f32 %v476, %v483
      %v499 = vadd.f32 %v477, %v483
      %v500 = vadd.f32 %v478, %v483
      %v501 = vpack.c.bf16 %v486, %v485
      %v502 = vpack.c.bf16 %v488, %v487
      %v503 = vpack.c.bf16 %v490, %v489
      %v504 = vpack.c.bf16 %v492, %v491
      %v505 = vpack.c.bf16 %v494, %v493
      %v506 = vpack.c.bf16 %v496, %v495
      %v507 = vpack.c.bf16 %v498, %v497
      %v508 = vpack.c.bf16 %v500, %v499
      %v509 = vld [vmem:[%s3] sm:$0xf]
      %v510 = vld [vmem:[%s3 + $0x4] sm:$0xf]
      %v511 = vld [vmem:[%s3 + $0x8] sm:$0xf]
      %v512 = vld [vmem:[%s3 + $0xc] sm:$0xf]
      %v513 = vld [vmem:[%s4] sm:$0x1]
      %v515 = vlaneseq
      %v516 = vshrl.u32 %v515, 7
      %v517 = vsub.s32 0, %v516
      %v518 = vrot.slane %v513, %v517
      %v524 = vunpack.c.l.b16 %v509
      %v525 = vunpack.c.l.b16 %v510
      %v526 = vunpack.c.l.b16 %v511
      %v527 = vunpack.c.l.b16 %v512
      %v528 = vpack.c.b16 %v525, %v524
      %v529 = vpack.c.b16 %v527, %v526
      %v533 = vsel %vm247, %v501, 0
      %v536 = vsel %vm247, %v502, 0
      %v539 = vsel %vm247, %v503, 0
      %v542 = vsel %vm247, %v504, 0
      %v545 = vsel %vm247, %v505, 0
      %v548 = vsel %vm247, %v506, 0
      %v551 = vsel %vm247, %v507, 0
      %v554 = vsel %vm247, %v508, 0
      %556 = vmatprep.subr.bf16.mxu0 0
      %557 = vmatpush1.bf16.msra.mxu0 %v528
      %558 = vmatprep.subr.bf16.mxu0 0
      %559 = vmatpush1.bf16.msra.mxu0 %v529
      %560 = vmatprep.subr.bf16.mxu0 0
      %561 = vmatpush1.bf16.msra.mxu0 0
      %562 = vmatprep.subr.bf16.mxu0 0
      %563 = vmatpush1.bf16.msra.mxu0 0
      %564 = vmatprep.subr.bf16.mxu0 0
      %565 = vmatpush1.bf16.msra.mxu0 0
      %566 = vmatprep.subr.bf16.mxu0 0
      %567 = vmatpush1.bf16.msra.mxu0 0
      %568 = vmatprep.subr.bf16.mxu0 0
      %569 = vmatpush1.bf16.msra.mxu0 0
      %570 = vmatprep.subr.bf16.mxu0 0
      %571 = vmatpush1.bf16.msra.mxu0 0
      %572 = vmatprep.subr.bf16.mxu0 0
      %573 = vmatpush1.bf16.msra.mxu0 0
      %574 = vmatprep.subr.bf16.mxu0 0
      %575 = vmatpush1.bf16.msra.mxu0 0
      %576 = vmatprep.subr.bf16.mxu0 0
      %577 = vmatpush1.bf16.msra.mxu0 0
      %578 = vmatprep.subr.bf16.mxu0 0
      %579 = vmatpush1.bf16.msra.mxu0 0
      %580 = vmatprep.subr.bf16.mxu0 0
      %581 = vmatpush1.bf16.msra.mxu0 0
      %582 = vmatprep.subr.bf16.mxu0 0
      %583 = vmatpush1.bf16.msra.mxu0 0
      %584 = vmatprep.subr.bf16.mxu0 0
      %585 = vmatpush1.bf16.msra.mxu0 0
      %586 = vmatprep.subr.bf16.mxu0 0
      %587 = vmatpush1.bf16.msra.mxu0 0
      %588 = vmatprep.mubr.bf16.mxu0 0
      %589 = vmatmul.mubr.bf16.gmra.mrb[0].mxu0 %v533
      %v590 = vpop.f32.mrb[0].mxu0
      %v591 = vadd.f32 %v518, %v590
      %v592 = vpop.f32.mrb[0].mxu0
      %v593 = vpop.f32.mrb[0].mxu0
      %v594 = vadd.f32 %v518, %v593
      %v595 = vpop.f32.mrb[0].mxu0
      %596 = vmatprep.mubr.bf16.mxu0 0
      %597 = vmatmul.mubr.bf16.gmra.mrb[0].mxu0 %v536
      %v598 = vpop.f32.mrb[0].mxu0
      %v599 = vadd.f32 %v518, %v598
      %v600 = vpop.f32.mrb[0].mxu0
      %v601 = vpop.f32.mrb[0].mxu0
      %v602 = vadd.f32 %v518, %v601
      %v603 = vpop.f32.mrb[0].mxu0
      %604 = vmatprep.mubr.bf16.mxu0 0
      %605 = vmatmul.mubr.bf16.gmra.mrb[0].mxu0 %v539
      %v606 = vpop.f32.mrb[0].mxu0
      %v607 = vadd.f32 %v518, %v606
      %v608 = vpop.f32.mrb[0].mxu0
      %v609 = vpop.f32.mrb[0].mxu0
      %v610 = vadd.f32 %v518, %v609
      %v611 = vpop.f32.mrb[0].mxu0
      %612 = vmatprep.mubr.bf16.mxu0 0
      %613 = vmatmul.mubr.bf16.gmra.mrb[0].mxu0 %v542
      %v614 = vpop.f32.mrb[0].mxu0
      %v615 = vadd.f32 %v518, %v614
      %v616 = vpop.f32.mrb[0].mxu0
      %v617 = vpop.f32.mrb[0].mxu0
      %v618 = vadd.f32 %v518, %v617
      %v619 = vpop.f32.mrb[0].mxu0
      %620 = vmatprep.mubr.bf16.mxu0 0
      %621 = vmatmul.mubr.bf16.gmra.mrb[0].mxu0 %v545
      %v622 = vpop.f32.mrb[0].mxu0
      %v623 = vadd.f32 %v518, %v622
      %v624 = vpop.f32.mrb[0].mxu0
      %v625 = vpop.f32.mrb[0].mxu0
      %v626 = vadd.f32 %v518, %v625
      %v627 = vpop.f32.mrb[0].mxu0
      %628 = vmatprep.mubr.bf16.mxu0 0
      %629 = vmatmul.mubr.bf16.gmra.mrb[0].mxu0 %v548
      %v630 = vpop.f32.mrb[0].mxu0
      %v631 = vadd.f32 %v518, %v630
      %v632 = vpop.f32.mrb[0].mxu0
      %v633 = vpop.f32.mrb[0].mxu0
      %v634 = vadd.f32 %v518, %v633
      %v635 = vpop.f32.mrb[0].mxu0
      %636 = vmatprep.mubr.bf16.mxu0 0
      %637 = vmatmul.mubr.bf16.gmra.mrb[0].mxu0 %v551
      %v638 = vpop.f32.mrb[0].mxu0
      %v639 = vadd.f32 %v518, %v638
      %v640 = vpop.f32.mrb[0].mxu0
      %v641 = vpop.f32.mrb[0].mxu0
      %v642 = vadd.f32 %v518, %v641
      %v643 = vpop.f32.mrb[0].mxu0
      %644 = vmatprep.mubr.bf16.mxu0 0
      %645 = vmatmul.mubr.bf16.gmra.mrb[0].mxu0 %v554
      %v646 = vpop.f32.mrb[0].mxu0
      %v647 = vadd.f32 %v518, %v646
      %v648 = vpop.f32.mrb[0].mxu0
      %v649 = vpop.f32.mrb[0].mxu0
      %v650 = vadd.f32 %v518, %v649
      %v651 = vpop.f32.mrb[0].mxu0
      %652 = vdwg.mxu0
      %v653 = vpack.c.bf16 %v594, %v591
      %v654 = vpack.c.bf16 %v602, %v599
      %v655 = vpack.c.bf16 %v610, %v607
      %v656 = vpack.c.bf16 %v618, %v615
      %v657 = vpack.c.bf16 %v626, %v623
      %v658 = vpack.c.bf16 %v634, %v631
      %v659 = vpack.c.bf16 %v642, %v639
      %v660 = vpack.c.bf16 %v650, %v647
      %v669 = vunpack.c.l.b16 %v653
      %v670 = vunpack.c.h.b16 %v653
      %v671 = vunpack.c.l.b16 %v654
      %v672 = vunpack.c.h.b16 %v654
      %v673 = vunpack.c.l.b16 %v655
      %v674 = vunpack.c.h.b16 %v655
      %v675 = vunpack.c.l.b16 %v656
      %v676 = vunpack.c.h.b16 %v656
      %v677 = vunpack.c.l.b16 %v657
      %v678 = vunpack.c.h.b16 %v657
      %v679 = vunpack.c.l.b16 %v658
      %v680 = vunpack.c.h.b16 %v658
      %v681 = vunpack.c.l.b16 %v659
      %v682 = vunpack.c.h.b16 %v659
      %v683 = vunpack.c.l.b16 %v660
      %v684 = vunpack.c.h.b16 %v660
      %v685 = vpack.c.b16 %v669, %v669
      %v686 = vpack.c.b16 %v670, %v670
      %v687 = vpack.c.b16 %v671, %v671
      %v688 = vpack.c.b16 %v672, %v672
      %v689 = vpack.c.b16 %v673, %v673
      %v690 = vpack.c.b16 %v674, %v674
      %v691 = vpack.c.b16 %v675, %v675
      %v692 = vpack.c.b16 %v676, %v676
      %v693 = vpack.c.b16 %v677, %v677
      %v694 = vpack.c.b16 %v678, %v678
      %v695 = vpack.c.b16 %v679, %v679
      %v696 = vpack.c.b16 %v680, %v680
      %v697 = vpack.c.b16 %v681, %v681
      %v698 = vpack.c.b16 %v682, %v682
      %v699 = vpack.c.b16 %v683, %v683
      %v700 = vpack.c.b16 %v684, %v684
      %vm717 = vcmask 781312
      %718 = vst.msk [vmem:[%s226] sm:$0xf] %vm717, %v685
      %719 = vst.msk [vmem:[%s226 + $0x4] sm:$0xf] %vm717, %v686
      %720 = vst.msk [vmem:[%s226 + $0x8] sm:$0xf] %vm717, %v687
      %721 = vst.msk [vmem:[%s226 + $0xc] sm:$0xf] %vm717, %v688
      %722 = vst.msk [vmem:[%s226 + $0x10] sm:$0xf] %vm717, %v689
      %723 = vst.msk [vmem:[%s226 + $0x14] sm:$0xf] %vm717, %v690
      %724 = vst.msk [vmem:[%s226 + $0x18] sm:$0xf] %vm717, %v691
      %725 = vst.msk [vmem:[%s226 + $0x1c] sm:$0xf] %vm717, %v692
      %726 = vst.msk [vmem:[%s226 + $0x20] sm:$0xf] %vm717, %v693
      %727 = vst.msk [vmem:[%s226 + $0x24] sm:$0xf] %vm717, %v694
      %728 = vst.msk [vmem:[%s226 + $0x28] sm:$0xf] %vm717, %v695
      %729 = vst.msk [vmem:[%s226 + $0x2c] sm:$0xf] %vm717, %v696
      %730 = vst.msk [vmem:[%s226 + $0x30] sm:$0xf] %vm717, %v697
      %731 = vst.msk [vmem:[%s226 + $0x34] sm:$0xf] %vm717, %v698
      %732 = vst.msk [vmem:[%s226 + $0x38] sm:$0xf] %vm717, %v699
      %733 = vst.msk [vmem:[%s226 + $0x3c] sm:$0xf] %vm717, %v700
      %s734 = smul.u32 16, %s16
      %p735 = scmp.lt.s32.totalorder %s734, 31
      %s736 = scalar_select %p735, %s734, 31
      %s737 = smul.addr %s736, 4
      %s738 = scalar_lea.vmem %s5, %s737
      // Predicated region
      $region41: #{vit_forward.9} parent=39 // pred_check
        %p739 = pneg %p144
      $region42: #{vit_forward.9} parent=39 // pred_check_branch
        %741 = sbr.rel (%p739) target = $region44
      $region43: #{vit_forward.9} parent=39 // pred_region
        %s742 = smul.u32 16, %s16
      $region44: #{vit_forward.9} parent=39 // pred_fallthru
        _
    $region40: #{vit_forward.9} parent=5 // pred_fallthru
      _
    %p743 = scmp.le.s32.totalorder 2, %s11
    // Predicated region
    $region45: #{vit_forward.9} parent=5 // pred_check
      %p744 = pneg %p743
    $region46: #{vit_forward.9} parent=5 // pred_check_branch
      %746 = sbr.rel (%p744) target = $region48
    $region47: #{vit_forward.9} parent=5 // pred_region
      %s747 = ssub.s32 %s11, 2
      // Predicated region
      $region49: #{vit_forward.9} parent=47 // pred_check
        %p748 = pneg %p150
      $region50: #{vit_forward.9} parent=47 // pred_check_branch
        %750 = sbr.rel (%p748) target = $region52
      $region51: #{vit_forward.9} parent=47 // pred_region
        %s751 = smul.u32 16, %s17
        %p752 = scmp.lt.s32.totalorder %s751, 31
        %s753 = scalar_select %p752, %s751, 31
        %s754 = smul.addr %s753, 4
        %s755 = scalar_lea.vmem %s5, %s754
      $region52: #{vit_forward.9} parent=47 // pred_fallthru
        _
    $region48: #{vit_forward.9} parent=5 // pred_fallthru
      _
  $region6: #{vit_forward.9} parent=0 // loop_footer
    %s15 = sadd.s32 1, %s11
  $region7: #{vit_forward.9} parent=0 // loop_footer_branch
    %10 = sbr.rel target = $region3
  $region8: #{vit_forward.9} parent=0 // loop_exit
    _

// kernel: vit_forward.15
$region0: #{vit_forward.15}
  #allocation0 [shape = 'u32[]', space=smem, size = 0x4, offset = 0x4, fixed_abs, tag = 'smem constant byte address 0x4 - core index']
  #allocation1 [shape = 'u32[144,128]{1,0:T(1,128)}', space=vmem, size = 0x12000, scoped, tag = 'internal scratch']
  %s0 = inlined_call_operand.vmem [shape: f32[2,32], index: 0, kind: input, shape index: {}]
  %s1 = inlined_call_operand.vmem [shape: f32[1,32], index: 1, kind: input, shape index: {}]
  %s2 = inlined_call_operand.vmem [shape: f32[1,32], index: 2, kind: input, shape index: {}]
  %s3 = inlined_call_operand.vmem [shape: bf16[32,10], index: 3, kind: input, shape index: {}]
  %s4 = inlined_call_operand.vmem [shape: f32[1,10], index: 4, kind: input, shape index: {}]
  %s5 = inlined_call_operand.hbm [shape: f32[2,10], index: 5, kind: output, shape index: {}]
  %s6 = sld [smem:[#allocation0]]
  $region30: #{vit_forward.15} parent=0
    _
  %s8 = ssub.s32 1, %s6
  %s9 = scalar_select 0, %s8, %s6
  $region1: #{vit_forward.15} parent=0
    #allocation2 [shape = 'u8[1024]{0}', space=vmem, size = 0x400, scoped, tag = 'output window, operand 0, single buffered']
    #allocation3 [shape = 's32[1]{0}', space=sflag, size = 0x4, scoped, tag = 'scoped memory for vit_forward.15']
    %10 = vsyncpa [#allocation3], 0
    // Predicated region
    $region2: #{vit_forward.15} parent=1 // pred_check
      _
    $region3: #{vit_forward.15} parent=1 // pred_check_branch
      %12 = sbr.rel (0) target = $region5
    $region4: #{vit_forward.15} parent=1 // pred_region
      _
    $region5: #{vit_forward.15} parent=1 // pred_fallthru
      _
    // Predicated region
    $region6: #{vit_forward.15} parent=1 // pred_check
      _
    $region7: #{vit_forward.15} parent=1 // pred_check_branch
      %14 = sbr.rel (0) target = $region9
    $region8: #{vit_forward.15} parent=1 // pred_region
      _
    $region9: #{vit_forward.15} parent=1 // pred_fallthru
      _
    // Predicated region
    $region10: #{vit_forward.15} parent=1 // pred_check
      _
    $region11: #{vit_forward.15} parent=1 // pred_check_branch
      %16 = sbr.rel (0) target = $region13
    $region12: #{vit_forward.15} parent=1 // pred_region
      _
    $region13: #{vit_forward.15} parent=1 // pred_fallthru
      _
    // Predicated region
    $region14: #{vit_forward.15} parent=1 // pred_check
      _
    $region15: #{vit_forward.15} parent=1 // pred_check_branch
      %18 = sbr.rel (0) target = $region17
    $region16: #{vit_forward.15} parent=1 // pred_region
      _
    $region17: #{vit_forward.15} parent=1 // pred_fallthru
      _
    // Predicated region
    $region18: #{vit_forward.15} parent=1 // pred_check
      _
    $region19: #{vit_forward.15} parent=1 // pred_check_branch
      %20 = sbr.rel (0) target = $region21
    $region20: #{vit_forward.15} parent=1 // pred_region
      _
    $region21: #{vit_forward.15} parent=1 // pred_fallthru
      _
    %v22 = vld [vmem:[%s0] sm:$0x3]
    %v23 = vld [vmem:[%s1] sm:$0x1]
    %v24 = vld [vmem:[%s2] sm:$0x1]
    %vm25 = vcmask 254976
    %v26 = vsel %vm25, %v22, 0.0
    %27 = vadd.xlane.f32.xlu0 %v26
    %v28 = vpop.xlane.xlu0 %27
    %v29 = vrcp.pop 32.0
    %v30 = vmul.f32 %v28, %v29
    %v31 = vsub.f32 %v22, %v30
    %v32 = vmul.f32 %v31, %v31
    %v33 = vsel %vm25, %v32, 0.0
    %34 = vadd.xlane.f32.xlu0 %v33
    %v35 = vpop.xlane.xlu0 %34
    %v36 = vmul.f32 %v35, %v29
    %v37 = vadd.f32 %v36, 1e-06
    %v38 = vrsqrt.pop %v37
    %v39 = vmul.f32 %v31, %v38
    %v41 = vlaneseq
    %v42 = vshrl.u32 %v41, 7
    %v43 = vsub.s32 0, %v42
    %v44 = vrot.slane %v23, %v43
    %v46 = vmul.f32 %v39, %v44
    %v48 = vlaneseq
    %v49 = vshrl.u32 %v48, 7
    %v50 = vsub.s32 0, %v49
    %v51 = vrot.slane %v24, %v50
    %v53 = vadd.f32 %v46, %v51
    %v54 = vpack.c.bf16 %v53, %v53
    %v55 = vld [vmem:[%s3] sm:$0xf]
    %v56 = vld [vmem:[%s3 + $0x4] sm:$0xf]
    %v57 = vld [vmem:[%s3 + $0x8] sm:$0xf]
    %v58 = vld [vmem:[%s3 + $0xc] sm:$0xf]
    %v59 = vld [vmem:[%s4] sm:$0x1]
    %v61 = vlaneseq
    %v62 = vshrl.u32 %v61, 7
    %v63 = vsub.s32 0, %v62
    %v64 = vrot.slane %v59, %v63
    %v70 = vunpack.c.l.b16 %v55
    %v71 = vunpack.c.l.b16 %v56
    %v72 = vunpack.c.l.b16 %v57
    %v73 = vunpack.c.l.b16 %v58
    %v74 = vpack.c.b16 %v71, %v70
    %v75 = vpack.c.b16 %v73, %v72
    %vm78 = vcmask 261120
    %v80 = vsel %vm78, %v54, 0
    %82 = vmatprep.subr.bf16.mxu0 0
    %83 = vmatpush1.bf16.msra.mxu0 %v74
    %84 = vmatprep.subr.bf16.mxu0 0
    %85 = vmatpush1.bf16.msra.mxu0 %v75
    %86 = vmatprep.subr.bf16.mxu0 0
    %87 = vmatpush1.bf16.msra.mxu0 0
    %88 = vmatprep.subr.bf16.mxu0 0
    %89 = vmatpush1.bf16.msra.mxu0 0
    %90 = vmatprep.subr.bf16.mxu0 0
    %91 = vmatpush1.bf16.msra.mxu0 0
    %92 = vmatprep.subr.bf16.mxu0 0
    %93 = vmatpush1.bf16.msra.mxu0 0
    %94 = vmatprep.subr.bf16.mxu0 0
    %95 = vmatpush1.bf16.msra.mxu0 0
    %96 = vmatprep.subr.bf16.mxu0 0
    %97 = vmatpush1.bf16.msra.mxu0 0
    %98 = vmatprep.subr.bf16.mxu0 0
    %99 = vmatpush1.bf16.msra.mxu0 0
    %100 = vmatprep.subr.bf16.mxu0 0
    %101 = vmatpush1.bf16.msra.mxu0 0
    %102 = vmatprep.subr.bf16.mxu0 0
    %103 = vmatpush1.bf16.msra.mxu0 0
    %104 = vmatprep.subr.bf16.mxu0 0
    %105 = vmatpush1.bf16.msra.mxu0 0
    %106 = vmatprep.subr.bf16.mxu0 0
    %107 = vmatpush1.bf16.msra.mxu0 0
    %108 = vmatprep.subr.bf16.mxu0 0
    %109 = vmatpush1.bf16.msra.mxu0 0
    %110 = vmatprep.subr.bf16.mxu0 0
    %111 = vmatpush1.bf16.msra.mxu0 0
    %112 = vmatprep.subr.bf16.mxu0 0
    %113 = vmatpush1.bf16.msra.mxu0 0
    %114 = vmatprep.mubr.bf16.mxu0 0
    %115 = vmatmul.mubr.bf16.gmra.mrb[0].mxu0 %v80
    %v116 = vpop.f32.mrb[0].mxu0
    %v117 = vadd.f32 %v64, %v116
    %v118 = vpop.f32.mrb[0].mxu0
    %v119 = vpop.f32.mrb[0].mxu0
    %v120 = vpop.f32.mrb[0].mxu0
    %121 = vdwg.mxu0
    %vm122 = vcmask 74752
    %123 = vst.msk [vmem:[#allocation2] sm:$0x3] %vm122, %v117
    // Predicated region
    $region22: #{vit_forward.15} parent=1 // pred_check
      _
    $region23: #{vit_forward.15} parent=1 // pred_check_branch
      %125 = sbr.rel (0) target = $region25
    $region24: #{vit_forward.15} parent=1 // pred_region
      %s127 = ssub.s32 32, 32
      %128 = vsyncadd [#allocation3], %s127
      %s130 = sshll.u32 [#allocation2], 4
      %s131 = int_to_ptr.vmem [resolvable:$true] %s130
      %133 = dma.vmem_to_hbm [thread:$0]  %s131, 32, %s5, [#allocation3]
    $region25: #{vit_forward.15} parent=1 // pred_fallthru
      _
    // Predicated region
    $region26: #{vit_forward.15} parent=1 // pred_check
      _
    $region27: #{vit_forward.15} parent=1 // pred_check_branch
      %135 = sbr.rel (0) target = $region29
    $region28: #{vit_forward.15} parent=1 // pred_region
      %136 = dma.done [#allocation3], 32
    $region29: #{vit_forward.15} parent=1 // pred_fallthru
      _
    %137 = vsyncpa [#allocation3], 1

// kernel: vit_forward.10
$region0: #{vit_forward.10}
  #allocation0 [shape = 'u32[]', space=smem, size = 0x4, offset = 0x4, fixed_abs, tag = 'smem constant byte address 0x4 - core index']
  #allocation1 [shape = 'u32[144,128]{1,0:T(1,128)}', space=vmem, size = 0x12000, scoped, tag = 'internal scratch']
  %s0 = inlined_call_operand.vmem [shape: bf16[2,2,128,16], index: 0, kind: input, shape index: {}]
  %s1 = inlined_call_operand.vmem [shape: bf16[2,2,128,16], index: 1, kind: input, shape index: {}]
  %s2 = inlined_call_operand.vmem [shape: bf16[2,2,128,16], index: 2, kind: input, shape index: {}]
  %s3 = inlined_call_operand.vmem [shape: f32[2,128,32], index: 3, kind: input, shape index: {}]
  %s4 = inlined_call_operand.vmem [shape: bf16[2,16,32], index: 4, kind: input, shape index: {}]
  %s5 = inlined_call_operand.vmem [shape: f32[1,32], index: 5, kind: input, shape index: {}]
  %s6 = inlined_call_operand.vmem [shape: f32[2,128,32], index: 6, kind: output, shape index: {}]
  %s7 = sld [smem:[#allocation0]]
  $region57: #{vit_forward.10} parent=0
    _
  %s9 = ssub.s32 1, %s7
  %s10 = scalar_select 0, %s9, %s7
  loop: start=0, step=1, limit=4
  $region2: #{vit_forward.10} parent=0 // loop_pre_header
    _
  $region3: #{vit_forward.10} parent=0 // loop_header
    %s12 = sphi 0, %s16
    %p13 = scmp.ge.s32.totalorder %s12, 4
    %s22 = sphi 0, %s24
    %s25 = sphi 0, %s22
    %s26 = sphi 0, %s25
    %s42 = sphi 0, %s26
    %s48 = sphi 0, %s50
    %s51 = sphi 0, %s48
    %s52 = sphi 0, %s51
    %s68 = sphi 0, %s52
    %s74 = sphi 0, %s76
    %s77 = sphi 0, %s74
    %s78 = sphi 0, %s77
    %s94 = sphi 0, %s78
    %s100 = sphi 0, %s102
    %s103 = sphi 0, %s100
    %s104 = sphi 0, %s103
    %s120 = sphi 0, %s104
    %s124 = sphi 0, %s124
    %s126 = sphi 0, %s124
    %s127 = sphi 0, %s126
    %s141 = sphi 0, %s127
    %s145 = sphi 0, %s145
    %s147 = sphi 0, %s145
    %s148 = sphi 0, %s147
    %s162 = sphi 0, %s148
    %s168 = sphi 0, %s170
    %s171 = sphi 0, %s168
    %s172 = sphi 0, %s171
    %s188 = sphi 0, %s172
  $region4: #{vit_forward.10} parent=0 // loop_header_branch
    %15 = sbr.rel (%p13) target = $region8
  $region5: #{vit_forward.10} parent=0 // loop_body
    %s17 = ssub.s32 %s12, 1
    %s18 = ssub.s32 %s12, 2
    %s19 = sadd.s32 %s12, 1
    %s20 = ssub.s32 %s12, %s19
    %p21 = scmp.eq.s32.totalorder %s20, 0
    %s23 = sadd.s32 %s22, 1
    %s24 = scalar_select %p21, %s22, %s23
    %p27 = pneg %p21
    %p28 = scmp.eq.s32.totalorder %s12, 1
    %p29 = por %p27, %p28
    %p30 = scmp.ne.s32.totalorder %s22, %s25
    %p31 = scmp.eq.s32.totalorder %s12, 0
    %p32 = por %p30, %p31
    %p33 = scmp.ne.s32.totalorder %s22, %s25
    %p34 = scmp.eq.s32.totalorder %s17, 1
    %p35 = por %p33, %p34
    %p36 = scmp.ne.s32.totalorder %s25, %s26
    %p37 = scmp.eq.s32.totalorder %s17, 0
    %p38 = por %p36, %p37
    %p39 = scmp.ne.s32.totalorder %s25, %s26
    %p40 = scmp.eq.s32.totalorder %s18, 1
    %p41 = por %p39, %p40
    %p43 = scmp.ne.s32.totalorder %s26, %s42
    %p44 = scmp.eq.s32.totalorder %s18, 0
    %p45 = por %p43, %p44
    %s46 = ssub.s32 %s12, %s19
    %p47 = scmp.eq.s32.totalorder %s46, 0
    %s49 = sadd.s32 %s48, 1
    %s50 = scalar_select %p47, %s48, %s49
    %p53 = pneg %p47
    %p54 = scmp.eq.s32.totalorder %s12, 1
    %p55 = por %p53, %p54
    %p56 = scmp.ne.s32.totalorder %s48, %s51
    %p57 = scmp.eq.s32.totalorder %s12, 0
    %p58 = por %p56, %p57
    %p59 = scmp.ne.s32.totalorder %s48, %s51
    %p60 = scmp.eq.s32.totalorder %s17, 1
    %p61 = por %p59, %p60
    %p62 = scmp.ne.s32.totalorder %s51, %s52
    %p63 = scmp.eq.s32.totalorder %s17, 0
    %p64 = por %p62, %p63
    %p65 = scmp.ne.s32.totalorder %s51, %s52
    %p66 = scmp.eq.s32.totalorder %s18, 1
    %p67 = por %p65, %p66
    %p69 = scmp.ne.s32.totalorder %s52, %s68
    %p70 = scmp.eq.s32.totalorder %s18, 0
    %p71 = por %p69, %p70
    %s72 = ssub.s32 %s12, %s19
    %p73 = scmp.eq.s32.totalorder %s72, 0
    %s75 = sadd.s32 %s74, 1
    %s76 = scalar_select %p73, %s74, %s75
    %p79 = pneg %p73
    %p80 = scmp.eq.s32.totalorder %s12, 1
    %p81 = por %p79, %p80
    %p82 = scmp.ne.s32.totalorder %s74, %s77
    %p83 = scmp.eq.s32.totalorder %s12, 0
    %p84 = por %p82, %p83
    %p85 = scmp.ne.s32.totalorder %s74, %s77
    %p86 = scmp.eq.s32.totalorder %s17, 1
    %p87 = por %p85, %p86
    %p88 = scmp.ne.s32.totalorder %s77, %s78
    %p89 = scmp.eq.s32.totalorder %s17, 0
    %p90 = por %p88, %p89
    %p91 = scmp.ne.s32.totalorder %s77, %s78
    %p92 = scmp.eq.s32.totalorder %s18, 1
    %p93 = por %p91, %p92
    %p95 = scmp.ne.s32.totalorder %s78, %s94
    %p96 = scmp.eq.s32.totalorder %s18, 0
    %p97 = por %p95, %p96
    %s98 = ssub.s32 %s12, %s19
    %p99 = scmp.eq.s32.totalorder %s98, 0
    %s101 = sadd.s32 %s100, 1
    %s102 = scalar_select %p99, %s100, %s101
    %p105 = pneg %p99
    %p106 = scmp.eq.s32.totalorder %s12, 1
    %p107 = por %p105, %p106
    %p108 = scmp.ne.s32.totalorder %s100, %s103
    %p109 = scmp.eq.s32.totalorder %s12, 0
    %p110 = por %p108, %p109
    %p111 = scmp.ne.s32.totalorder %s100, %s103
    %p112 = scmp.eq.s32.totalorder %s17, 1
    %p113 = por %p111, %p112
    %p114 = scmp.ne.s32.totalorder %s103, %s104
    %p115 = scmp.eq.s32.totalorder %s17, 0
    %p116 = por %p114, %p115
    %p117 = scmp.ne.s32.totalorder %s103, %s104
    %p118 = scmp.eq.s32.totalorder %s18, 1
    %p119 = por %p117, %p118
    %p121 = scmp.ne.s32.totalorder %s104, %s120
    %p122 = scmp.eq.s32.totalorder %s18, 0
    %p123 = por %p121, %p122
    %s125 = sadd.s32 %s124, 1
    %p128 = scmp.eq.s32.totalorder %s12, 1
    %p129 = scmp.ne.s32.totalorder %s124, %s126
    %p130 = scmp.eq.s32.totalorder %s12, 0
    %p131 = por %p129, %p130
    %p132 = scmp.ne.s32.totalorder %s124, %s126
    %p133 = scmp.eq.s32.totalorder %s17, 1
    %p134 = por %p132, %p133
    %p135 = scmp.ne.s32.totalorder %s126, %s127
    %p136 = scmp.eq.s32.totalorder %s17, 0
    %p137 = por %p135, %p136
    %p138 = scmp.ne.s32.totalorder %s126, %s127
    %p139 = scmp.eq.s32.totalorder %s18, 1
    %p140 = por %p138, %p139
    %p142 = scmp.ne.s32.totalorder %s127, %s141
    %p143 = scmp.eq.s32.totalorder %s18, 0
    %p144 = por %p142, %p143
    %s146 = sadd.s32 %s145, 1
    %p149 = scmp.eq.s32.totalorder %s12, 1
    %p150 = scmp.ne.s32.totalorder %s145, %s147
    %p151 = scmp.eq.s32.totalorder %s12, 0
    %p152 = por %p150, %p151
    %p153 = scmp.ne.s32.totalorder %s145, %s147
    %p154 = scmp.eq.s32.totalorder %s17, 1
    %p155 = por %p153, %p154
    %p156 = scmp.ne.s32.totalorder %s147, %s148
    %p157 = scmp.eq.s32.totalorder %s17, 0
    %p158 = por %p156, %p157
    %p159 = scmp.ne.s32.totalorder %s147, %s148
    %p160 = scmp.eq.s32.totalorder %s18, 1
    %p161 = por %p159, %p160
    %p163 = scmp.ne.s32.totalorder %s148, %s162
    %p164 = scmp.eq.s32.totalorder %s18, 0
    %p165 = por %p163, %p164
    %s166 = ssub.s32 %s12, %s19
    %p167 = scmp.eq.s32.totalorder %s166, 0
    %s169 = sadd.s32 %s168, 1
    %s170 = scalar_select %p167, %s168, %s169
    %p173 = pneg %p167
    %p174 = scmp.eq.s32.totalorder %s12, 1
    %p175 = por %p173, %p174
    %p176 = scmp.ne.s32.totalorder %s168, %s171
    %p177 = scmp.eq.s32.totalorder %s12, 0
    %p178 = por %p176, %p177
    %p179 = scmp.ne.s32.totalorder %s168, %s171
    %p180 = scmp.eq.s32.totalorder %s17, 1
    %p181 = por %p179, %p180
    %p182 = scmp.ne.s32.totalorder %s171, %s172
    %p183 = scmp.eq.s32.totalorder %s17, 0
    %p184 = por %p182, %p183
    %p185 = scmp.ne.s32.totalorder %s171, %s172
    %p186 = scmp.eq.s32.totalorder %s18, 1
    %p187 = por %p185, %p186
    %p189 = scmp.ne.s32.totalorder %s172, %s188
    %p190 = scmp.eq.s32.totalorder %s18, 0
    %p191 = por %p189, %p190
    %p192 = scmp.le.s32.totalorder 1, %s12
    %p193 = scmp.lt.s32.totalorder %s12, 3
    %p194 = pnand %p192, %p193
    %p195 = pneg %p194
    // Predicated region
    $region9: #{vit_forward.10} parent=5 // pred_check
      _
    $region10: #{vit_forward.10} parent=5 // pred_check_branch
      %197 = sbr.rel (%p194) target = $region12
    $region11: #{vit_forward.10} parent=5 // pred_region
      %s198 = ssub.s32 %s12, 1
      // Predicated region
      $region13: #{vit_forward.10} parent=11 // pred_check
        %p199 = pneg %p137
      $region14: #{vit_forward.10} parent=11 // pred_check_branch
        %201 = sbr.rel (%p199) target = $region16
      $region15: #{vit_forward.10} parent=11 // pred_region
        _
      $region16: #{vit_forward.10} parent=11 // pred_fallthru
        _
      // Predicated region
      $region17: #{vit_forward.10} parent=11 // pred_check
        %p202 = pneg %p158
      $region18: #{vit_forward.10} parent=11 // pred_check_branch
        %204 = sbr.rel (%p202) target = $region20
      $region19: #{vit_forward.10} parent=11 // pred_region
        _
      $region20: #{vit_forward.10} parent=11 // pred_fallthru
        _
    $region12: #{vit_forward.10} parent=5 // pred_fallthru
      _
    %p205 = scmp.lt.s32.totalorder %s12, 2
    // Predicated region
    $region21: #{vit_forward.10} parent=5 // pred_check
      %p206 = pneg %p205
    $region22: #{vit_forward.10} parent=5 // pred_check_branch
      %208 = sbr.rel (%p206) target = $region24
    $region23: #{vit_forward.10} parent=5 // pred_region
      // Predicated region
      $region25: #{vit_forward.10} parent=23 // pred_check
        %p209 = pneg %p32
      $region26: #{vit_forward.10} parent=23 // pred_check_branch
        %211 = sbr.rel (%p209) target = $region28
      $region27: #{vit_forward.10} parent=23 // pred_region
        %p212 = scmp.lt.s32.totalorder %s12, 1
        %s213 = scalar_select %p212, %s12, 1
        %s214 = smul.addr %s213, 32
        %s215 = smul.addr %s214, 4
        %s216 = scalar_lea.vmem %s0, %s215
      $region28: #{vit_forward.10} parent=23 // pred_fallthru
        _
      // Predicated region
      $region29: #{vit_forward.10} parent=23 // pred_check
        %p217 = pneg %p58
      $region30: #{vit_forward.10} parent=23 // pred_check_branch
        %219 = sbr.rel (%p217) target = $region32
      $region31: #{vit_forward.10} parent=23 // pred_region
        %p220 = scmp.lt.s32.totalorder %s12, 1
        %s221 = scalar_select %p220, %s12, 1
        %s222 = smul.addr %s221, 32
        %s223 = smul.addr %s222, 4
        %s224 = scalar_lea.vmem %s1, %s223
      $region32: #{vit_forward.10} parent=23 // pred_fallthru
        _
      // Predicated region
      $region33: #{vit_forward.10} parent=23 // pred_check
        %p225 = pneg %p84
      $region34: #{vit_forward.10} parent=23 // pred_check_branch
        %227 = sbr.rel (%p225) target = $region36
      $region35: #{vit_forward.10} parent=23 // pred_region
        %p228 = scmp.lt.s32.totalorder %s12, 1
        %s229 = scalar_select %p228, %s12, 1
        %s230 = smul.addr %s229, 32
        %s231 = smul.addr %s230, 4
        %s232 = scalar_lea.vmem %s2, %s231
      $region36: #{vit_forward.10} parent=23 // pred_fallthru
        _
      // Predicated region
      $region37: #{vit_forward.10} parent=23 // pred_check
        %p233 = pneg %p110
      $region38: #{vit_forward.10} parent=23 // pred_check_branch
        %235 = sbr.rel (%p233) target = $region40
      $region39: #{vit_forward.10} parent=23 // pred_region
        %p236 = scmp.lt.s32.totalorder %s12, 1
        %s237 = scalar_select %p236, %s12, 1
        %s238 = smul.addr %s237, 16
        %s239 = smul.addr %s238, 8
        %s240 = scalar_lea.vmem %s3, %s239
      $region40: #{vit_forward.10} parent=23 // pred_fallthru
        _
    $region24: #{vit_forward.10} parent=5 // pred_fallthru
      _
    %p241 = scmp.le.s32.totalorder 1, %s12
    %p242 = scmp.lt.s32.totalorder %s12, 3
    %p243 = pnand %p241, %p242
    %p244 = pneg %p243
    // Predicated region
    $region41: #{vit_forward.10} parent=5 // pred_check
      _
    $region42: #{vit_forward.10} parent=5 // pred_check_branch
      %246 = sbr.rel (%p243) target = $region44
    $region43: #{vit_forward.10} parent=5 // pred_region
      %s247 = ssub.s32 %s12, 1
      %p248 = scmp.lt.s32.totalorder %s17, 1
      %s249 = scalar_select %p248, %s17, 1
      %s250 = smul.addr %s249, 32
      %s251 = smul.addr %s250, 4
      %s252 = scalar_lea.vmem %s0, %s251
      %p253 = pneg %p38
      %p254 = pneg %p35
      %p255 = scmp.lt.s32.totalorder %s17, 1
      %s256 = scalar_select %p255, %s17, 1
      %s257 = smul.addr %s256, 32
      %s258 = smul.addr %s257, 4
      %s259 = scalar_lea.vmem %s1, %s258
      %p260 = pneg %p64
      %p261 = pneg %p61
      %p262 = scmp.lt.s32.totalorder %s17, 1
      %s263 = scalar_select %p262, %s17, 1
      %s264 = smul.addr %s263, 32
      %s265 = smul.addr %s264, 4
      %s266 = scalar_lea.vmem %s2, %s265
      %p267 = pneg %p90
      %p268 = pneg %p87
      %p269 = scmp.lt.s32.totalorder %s17, 1
      %s270 = scalar_select %p269, %s17, 1
      %s271 = smul.addr %s270, 16
      %s272 = smul.addr %s271, 8
      %s273 = scalar_lea.vmem %s3, %s272
      %p274 = pneg %p116
      %p275 = pneg %p113
      %p276 = pneg %p137
      %p277 = pneg %p134
      %p278 = pneg %p158
      %p279 = pneg %p155
      %p280 = pneg %p184
      %p281 = pneg %p181
      %p282 = scmp.lt.s32.totalorder %s17, 1
      %s283 = scalar_select %p282, %s17, 1
      %s284 = smul.addr %s283, 16
      %s285 = smul.addr %s284, 8
      %s286 = scalar_lea.vmem %s6, %s285
      %p287 = scmp.lt.s32.totalorder %s17, 1
      %s288 = scalar_select %p287, %s17, 1
      %s289 = smul.addr %s288, 32
      %s290 = smul.addr %s289, 4
      %s291 = scalar_lea.vmem %s0, %s290
      %p292 = scmp.lt.s32.totalorder %s17, 1
      %s293 = scalar_select %p292, %s17, 1
      %s294 = smul.addr %s293, 32
      %s295 = smul.addr %s294, 4
      %s296 = scalar_lea.vmem %s1, %s295
      %p297 = scmp.lt.s32.totalorder %s17, 1
      %s298 = scalar_select %p297, %s17, 1
      %s299 = smul.addr %s298, 32
      %s300 = smul.addr %s299, 4
      %s301 = scalar_lea.vmem %s2, %s300
      %p302 = scmp.lt.s32.totalorder %s17, 1
      %s303 = scalar_select %p302, %s17, 1
      %s304 = smul.addr %s303, 16
      %s305 = smul.addr %s304, 8
      %s306 = scalar_lea.vmem %s3, %s305
      %p307 = scmp.lt.s32.totalorder %s17, 1
      %s308 = scalar_select %p307, %s17, 1
      %s309 = smul.addr %s308, 16
      %s310 = smul.addr %s309, 8
      %s311 = scalar_lea.vmem %s6, %s310
      %v313 = vld [vmem:[%s291] sm:$0xf]
      %v314 = vld [vmem:[%s291 + $0x4] sm:$0xf]
      %v315 = vld [vmem:[%s291 + $0x8] sm:$0xf]
      %v316 = vld [vmem:[%s291 + $0xc] sm:$0xf]
      %v317 = vld [vmem:[%s291 + $0x10] sm:$0xf]
      %v318 = vld [vmem:[%s291 + $0x14] sm:$0xf]
      %v319 = vld [vmem:[%s291 + $0x18] sm:$0xf]
      %v320 = vld [vmem:[%s291 + $0x1c] sm:$0xf]
      %v321 = vld [vmem:[%s291 + $0x20] sm:$0xf]
      %v322 = vld [vmem:[%s291 + $0x24] sm:$0xf]
      %v323 = vld [vmem:[%s291 + $0x28] sm:$0xf]
      %v324 = vld [vmem:[%s291 + $0x2c] sm:$0xf]
      %v325 = vld [vmem:[%s291 + $0x30] sm:$0xf]
      %v326 = vld [vmem:[%s291 + $0x34] sm:$0xf]
      %v327 = vld [vmem:[%s291 + $0x38] sm:$0xf]
      %v328 = vld [vmem:[%s291 + $0x3c] sm:$0xf]
      %v329 = vld [vmem:[%s291 + $0x40] sm:$0xf]
      %v330 = vld [vmem:[%s291 + $0x44] sm:$0xf]
      %v331 = vld [vmem:[%s291 + $0x48] sm:$0xf]
      %v332 = vld [vmem:[%s291 + $0x4c] sm:$0xf]
      %v333 = vld [vmem:[%s291 + $0x50] sm:$0xf]
      %v334 = vld [vmem:[%s291 + $0x54] sm:$0xf]
      %v335 = vld [vmem:[%s291 + $0x58] sm:$0xf]
      %v336 = vld [vmem:[%s291 + $0x5c] sm:$0xf]
      %v337 = vld [vmem:[%s291 + $0x60] sm:$0xf]
      %v338 = vld [vmem:[%s291 + $0x64] sm:$0xf]
      %v339 = vld [vmem:[%s291 + $0x68] sm:$0xf]
      %v340 = vld [vmem:[%s291 + $0x6c] sm:$0xf]
      %v341 = vld [vmem:[%s291 + $0x70] sm:$0xf]
      %v342 = vld [vmem:[%s291 + $0x74] sm:$0xf]
      %v343 = vld [vmem:[%s291 + $0x78] sm:$0xf]
      %v344 = vld [vmem:[%s291 + $0x7c] sm:$0xf]
      %v345 = vld [vmem:[%s296] sm:$0xf]
      %v346 = vld [vmem:[%s296 + $0x4] sm:$0xf]
      %v347 = vld [vmem:[%s296 + $0x8] sm:$0xf]
      %v348 = vld [vmem:[%s296 + $0xc] sm:$0xf]
      %v349 = vld [vmem:[%s296 + $0x10] sm:$0xf]
      %v350 = vld [vmem:[%s296 + $0x14] sm:$0xf]
      %v351 = vld [vmem:[%s296 + $0x18] sm:$0xf]
      %v352 = vld [vmem:[%s296 + $0x1c] sm:$0xf]
      %v353 = vld [vmem:[%s296 + $0x20] sm:$0xf]
      %v354 = vld [vmem:[%s296 + $0x24] sm:$0xf]
      %v355 = vld [vmem:[%s296 + $0x28] sm:$0xf]
      %v356 = vld [vmem:[%s296 + $0x2c] sm:$0xf]
      %v357 = vld [vmem:[%s296 + $0x30] sm:$0xf]
      %v358 = vld [vmem:[%s296 + $0x34] sm:$0xf]
      %v359 = vld [vmem:[%s296 + $0x38] sm:$0xf]
      %v360 = vld [vmem:[%s296 + $0x3c] sm:$0xf]
      %v361 = vld [vmem:[%s296 + $0x40] sm:$0xf]
      %v362 = vld [vmem:[%s296 + $0x44] sm:$0xf]
      %v363 = vld [vmem:[%s296 + $0x48] sm:$0xf]
      %v364 = vld [vmem:[%s296 + $0x4c] sm:$0xf]
      %v365 = vld [vmem:[%s296 + $0x50] sm:$0xf]
      %v366 = vld [vmem:[%s296 + $0x54] sm:$0xf]
      %v367 = vld [vmem:[%s296 + $0x58] sm:$0xf]
      %v368 = vld [vmem:[%s296 + $0x5c] sm:$0xf]
      %v369 = vld [vmem:[%s296 + $0x60] sm:$0xf]
      %v370 = vld [vmem:[%s296 + $0x64] sm:$0xf]
      %v371 = vld [vmem:[%s296 + $0x68] sm:$0xf]
      %v372 = vld [vmem:[%s296 + $0x6c] sm:$0xf]
      %v373 = vld [vmem:[%s296 + $0x70] sm:$0xf]
      %v374 = vld [vmem:[%s296 + $0x74] sm:$0xf]
      %v375 = vld [vmem:[%s296 + $0x78] sm:$0xf]
      %v376 = vld [vmem:[%s296 + $0x7c] sm:$0xf]
      %v377 = vld [vmem:[%s301] sm:$0xf]
      %v378 = vld [vmem:[%s301 + $0x4] sm:$0xf]
      %v379 = vld [vmem:[%s301 + $0x8] sm:$0xf]
      %v380 = vld [vmem:[%s301 + $0xc] sm:$0xf]
      %v381 = vld [vmem:[%s301 + $0x10] sm:$0xf]
      %v382 = vld [vmem:[%s301 + $0x14] sm:$0xf]
      %v383 = vld [vmem:[%s301 + $0x18] sm:$0xf]
      %v384 = vld [vmem:[%s301 + $0x1c] sm:$0xf]
      %v385 = vld [vmem:[%s301 + $0x20] sm:$0xf]
      %v386 = vld [vmem:[%s301 + $0x24] sm:$0xf]
      %v387 = vld [vmem:[%s301 + $0x28] sm:$0xf]
      %v388 = vld [vmem:[%s301 + $0x2c] sm:$0xf]
      %v389 = vld [vmem:[%s301 + $0x30] sm:$0xf]
      %v390 = vld [vmem:[%s301 + $0x34] sm:$0xf]
      %v391 = vld [vmem:[%s301 + $0x38] sm:$0xf]
      %v392 = vld [vmem:[%s301 + $0x3c] sm:$0xf]
      %v393 = vld [vmem:[%s301 + $0x40] sm:$0xf]
      %v394 = vld [vmem:[%s301 + $0x44] sm:$0xf]
      %v395 = vld [vmem:[%s301 + $0x48] sm:$0xf]
      %v396 = vld [vmem:[%s301 + $0x4c] sm:$0xf]
      %v397 = vld [vmem:[%s301 + $0x50] sm:$0xf]
      %v398 = vld [vmem:[%s301 + $0x54] sm:$0xf]
      %v399 = vld [vmem:[%s301 + $0x58] sm:$0xf]
      %v400 = vld [vmem:[%s301 + $0x5c] sm:$0xf]
      %v401 = vld [vmem:[%s301 + $0x60] sm:$0xf]
      %v402 = vld [vmem:[%s301 + $0x64] sm:$0xf]
      %v403 = vld [vmem:[%s301 + $0x68] sm:$0xf]
      %v404 = vld [vmem:[%s301 + $0x6c] sm:$0xf]
      %v405 = vld [vmem:[%s301 + $0x70] sm:$0xf]
      %v406 = vld [vmem:[%s301 + $0x74] sm:$0xf]
      %v407 = vld [vmem:[%s301 + $0x78] sm:$0xf]
      %v408 = vld [vmem:[%s301 + $0x7c] sm:$0xf]
      %v425 = vunpack.c.l.b16 %v313
      %v426 = vunpack.c.l.b16 %v314
      %v427 = vunpack.c.l.b16 %v315
      %v428 = vunpack.c.l.b16 %v316
      %v429 = vunpack.c.l.b16 %v317
      %v430 = vunpack.c.l.b16 %v318
      %v431 = vunpack.c.l.b16 %v319
      %v432 = vunpack.c.l.b16 %v320
      %v433 = vunpack.c.l.b16 %v321
      %v434 = vunpack.c.l.b16 %v322
      %v435 = vunpack.c.l.b16 %v323
      %v436 = vunpack.c.l.b16 %v324
      %v437 = vunpack.c.l.b16 %v325
      %v438 = vunpack.c.l.b16 %v326
      %v439 = vunpack.c.l.b16 %v327
      %v440 = vunpack.c.l.b16 %v328
      %v441 = vpack.c.b16 %v426, %v425
      %v442 = vpack.c.b16 %v428, %v427
      %v443 = vpack.c.b16 %v430, %v429
      %v444 = vpack.c.b16 %v432, %v431
      %v445 = vpack.c.b16 %v434, %v433
      %v446 = vpack.c.b16 %v436, %v435
      %v447 = vpack.c.b16 %v438, %v437
      %v448 = vpack.c.b16 %v440, %v439
      %v465 = vunpack.c.l.b16 %v345
      %v466 = vunpack.c.l.b16 %v346
      %v467 = vunpack.c.l.b16 %v347
      %v468 = vunpack.c.l.b16 %v348
      %v469 = vunpack.c.l.b16 %v349
      %v470 = vunpack.c.l.b16 %v350
      %v471 = vunpack.c.l.b16 %v351
      %v472 = vunpack.c.l.b16 %v352
      %v473 = vunpack.c.l.b16 %v353
      %v474 = vunpack.c.l.b16 %v354
      %v475 = vunpack.c.l.b16 %v355
      %v476 = vunpack.c.l.b16 %v356
      %v477 = vunpack.c.l.b16 %v357
      %v478 = vunpack.c.l.b16 %v358
      %v479 = vunpack.c.l.b16 %v359
      %v480 = vunpack.c.l.b16 %v360
      %v481 = vpack.c.b16 %v466, %v465
      %v482 = vpack.c.b16 %v468, %v467
      %v483 = vpack.c.b16 %v470, %v469
      %v484 = vpack.c.b16 %v472, %v471
      %v485 = vpack.c.b16 %v474, %v473
      %v486 = vpack.c.b16 %v476, %v475
      %v487 = vpack.c.b16 %v478, %v477
      %v488 = vpack.c.b16 %v480, %v479
      %vm489 = vcmask 130048
      %v491 = vsel %vm489, %v441, 0
      %v494 = vsel %vm489, %v442, 0
      %v497 = vsel %vm489, %v443, 0
      %v500 = vsel %vm489, %v444, 0
      %v503 = vsel %vm489, %v445, 0
      %v506 = vsel %vm489, %v446, 0
      %v509 = vsel %vm489, %v447, 0
      %v512 = vsel %vm489, %v448, 0
      %v515 = vsel %vm489, %v481, 0
      %v518 = vsel %vm489, %v482, 0
      %v521 = vsel %vm489, %v483, 0
      %v524 = vsel %vm489, %v484, 0
      %v527 = vsel %vm489, %v485, 0
      %v530 = vsel %vm489, %v486, 0
      %v533 = vsel %vm489, %v487, 0
      %v536 = vsel %vm489, %v488, 0
      %538 = vmatprep.subr.bf16.mxu0 0
      %539 = vmatpush1.bf16.xpose.msra.mxu0 %v515
      %540 = vmatprep.subr.bf16.mxu0 0
      %541 = vmatpush1.bf16.xpose.msra.mxu0 %v518
      %542 = vmatprep.subr.bf16.mxu0 0
      %543 = vmatpush1.bf16.xpose.msra.mxu0 %v521
      %544 = vmatprep.subr.bf16.mxu0 0
      %545 = vmatpush1.bf16.xpose.msra.mxu0 %v524
      %546 = vmatprep.subr.bf16.mxu0 0
      %547 = vmatpush1.bf16.xpose.msra.mxu0 %v527
      %548 = vmatprep.subr.bf16.mxu0 0
      %549 = vmatpush1.bf16.xpose.msra.mxu0 %v530
      %550 = vmatprep.subr.bf16.mxu0 0
      %551 = vmatpush1.bf16.xpose.msra.mxu0 %v533
      %552 = vmatprep.subr.bf16.mxu0 0
      %553 = vmatpush1.bf16.xpose.msra.mxu0 %v536
      %554 = vmatprep.subr.bf16.mxu0 0
      %555 = vmatpush1.bf16.xpose.msra.mxu0 0
      %556 = vmatprep.subr.bf16.mxu0 0
      %557 = vmatpush1.bf16.xpose.msra.mxu0 0
      %558 = vmatprep.subr.bf16.mxu0 0
      %559 = vmatpush1.bf16.xpose.msra.mxu0 0
      %560 = vmatprep.subr.bf16.mxu0 0
      %561 = vmatpush1.bf16.xpose.msra.mxu0 0
      %562 = vmatprep.subr.bf16.mxu0 0
      %563 = vmatpush1.bf16.xpose.msra.mxu0 0
      %564 = vmatprep.subr.bf16.mxu0 0
      %565 = vmatpush1.bf16.xpose.msra.mxu0 0
      %566 = vmatprep.subr.bf16.mxu0 0
      %567 = vmatpush1.bf16.xpose.msra.mxu0 0
      %568 = vmatprep.subr.bf16.mxu0 0
      %569 = vmatpush1.bf16.xpose.msra.mxu0 0
      %570 = vmatprep.mubr.bf16.mxu0 0
      %571 = vmatmul.mubr.bf16.gmra.mrb[0].mxu0 %v491
      %v572 = vpop.f32.mrb[0].mxu0
      %v573 = vadd.f32 0.0, %v572
      %v574 = vpop.f32.mrb[0].mxu0
      %v575 = vpop.f32.mrb[0].mxu0
      %v576 = vadd.f32 0.0, %v575
      %v577 = vpop.f32.mrb[0].mxu0
      %578 = vmatprep.mubr.bf16.mxu0 0
      %579 = vmatmul.mubr.bf16.gmra.mrb[0].mxu0 %v494
      %v580 = vpop.f32.mrb[0].mxu0
      %v581 = vadd.f32 0.0, %v580
      %v582 = vpop.f32.mrb[0].mxu0
      %v583 = vpop.f32.mrb[0].mxu0
      %v584 = vadd.f32 0.0, %v583
      %v585 = vpop.f32.mrb[0].mxu0
      %586 = vmatprep.mubr.bf16.mxu0 0
      %587 = vmatmul.mubr.bf16.gmra.mrb[0].mxu0 %v497
      %v588 = vpop.f32.mrb[0].mxu0
      %v589 = vadd.f32 0.0, %v588
      %v590 = vpop.f32.mrb[0].mxu0
      %v591 = vpop.f32.mrb[0].mxu0
      %v592 = vadd.f32 0.0, %v591
      %v593 = vpop.f32.mrb[0].mxu0
      %594 = vmatprep.mubr.bf16.mxu0 0
      %595 = vmatmul.mubr.bf16.gmra.mrb[0].mxu0 %v500
      %v596 = vpop.f32.mrb[0].mxu0
      %v597 = vadd.f32 0.0, %v596
      %v598 = vpop.f32.mrb[0].mxu0
      %v599 = vpop.f32.mrb[0].mxu0
      %v600 = vadd.f32 0.0, %v599
      %v601 = vpop.f32.mrb[0].mxu0
      %602 = vmatprep.mubr.bf16.mxu0 0
      %603 = vmatmul.mubr.bf16.gmra.mrb[0].mxu0 %v503
      %v604 = vpop.f32.mrb[0].mxu0
      %v605 = vadd.f32 0.0, %v604
      %v606 = vpop.f32.mrb[0].mxu0
      %v607 = vpop.f32.mrb[0].mxu0
      %v608 = vadd.f32 0.0, %v607
      %v609 = vpop.f32.mrb[0].mxu0
      %610 = vmatprep.mubr.bf16.mxu0 0
      %611 = vmatmul.mubr.bf16.gmra.mrb[0].mxu0 %v506
      %v612 = vpop.f32.mrb[0].mxu0
      %v613 = vadd.f32 0.0, %v612
      %v614 = vpop.f32.mrb[0].mxu0
      %v615 = vpop.f32.mrb[0].mxu0
      %v616 = vadd.f32 0.0, %v615
      %v617 = vpop.f32.mrb[0].mxu0
      %618 = vmatprep.mubr.bf16.mxu0 0
      %619 = vmatmul.mubr.bf16.gmra.mrb[0].mxu0 %v509
      %v620 = vpop.f32.mrb[0].mxu0
      %v621 = vadd.f32 0.0, %v620
      %v622 = vpop.f32.mrb[0].mxu0
      %v623 = vpop.f32.mrb[0].mxu0
      %v624 = vadd.f32 0.0, %v623
      %v625 = vpop.f32.mrb[0].mxu0
      %626 = vmatprep.mubr.bf16.mxu0 0
      %627 = vmatmul.mubr.bf16.gmra.mrb[0].mxu0 %v512
      %v628 = vpop.f32.mrb[0].mxu0
      %v629 = vadd.f32 0.0, %v628
      %v630 = vpop.f32.mrb[0].mxu0
      %v631 = vpop.f32.mrb[0].mxu0
      %v632 = vadd.f32 0.0, %v631
      %v633 = vpop.f32.mrb[0].mxu0
      %634 = vdwg.mxu0
      %v651 = vunpack.c.l.b16 %v329
      %v652 = vunpack.c.l.b16 %v330
      %v653 = vunpack.c.l.b16 %v331
      %v654 = vunpack.c.l.b16 %v332
      %v655 = vunpack.c.l.b16 %v333
      %v656 = vunpack.c.l.b16 %v334
      %v657 = vunpack.c.l.b16 %v335
      %v658 = vunpack.c.l.b16 %v336
      %v659 = vunpack.c.l.b16 %v337
      %v660 = vunpack.c.l.b16 %v338
      %v661 = vunpack.c.l.b16 %v339
      %v662 = vunpack.c.l.b16 %v340
      %v663 = vunpack.c.l.b16 %v341
      %v664 = vunpack.c.l.b16 %v342
      %v665 = vunpack.c.l.b16 %v343
      %v666 = vunpack.c.l.b16 %v344
      %v667 = vpack.c.b16 %v652, %v651
      %v668 = vpack.c.b16 %v654, %v653
      %v669 = vpack.c.b16 %v656, %v655
      %v670 = vpack.c.b16 %v658, %v657
      %v671 = vpack.c.b16 %v660, %v659
      %v672 = vpack.c.b16 %v662, %v661
      %v673 = vpack.c.b16 %v664, %v663
      %v674 = vpack.c.b16 %v666, %v665
      %v691 = vunpack.c.l.b16 %v361
      %v692 = vunpack.c.l.b16 %v362
      %v693 = vunpack.c.l.b16 %v363
      %v694 = vunpack.c.l.b16 %v364
      %v695 = vunpack.c.l.b16 %v365
      %v696 = vunpack.c.l.b16 %v366
      %v697 = vunpack.c.l.b16 %v367
      %v698 = vunpack.c.l.b16 %v368
      %v699 = vunpack.c.l.b16 %v369
      %v700 = vunpack.c.l.b16 %v370
      %v701 = vunpack.c.l.b16 %v371
      %v702 = vunpack.c.l.b16 %v372
      %v703 = vunpack.c.l.b16 %v373
      %v704 = vunpack.c.l.b16 %v374
      %v705 = vunpack.c.l.b16 %v375
      %v706 = vunpack.c.l.b16 %v376
      %v707 = vpack.c.b16 %v692, %v691
      %v708 = vpack.c.b16 %v694, %v693
      %v709 = vpack.c.b16 %v696, %v695
      %v710 = vpack.c.b16 %v698, %v697
      %v711 = vpack.c.b16 %v700, %v699
      %v712 = vpack.c.b16 %v702, %v701
      %v713 = vpack.c.b16 %v704, %v703
      %v714 = vpack.c.b16 %v706, %v705
      %v716 = vsel %vm489, %v667, 0
      %v719 = vsel %vm489, %v668, 0
      %v722 = vsel %vm489, %v669, 0
      %v725 = vsel %vm489, %v670, 0
      %v728 = vsel %vm489, %v671, 0
      %v731 = vsel %vm489, %v672, 0
      %v734 = vsel %vm489, %v673, 0
      %v737 = vsel %vm489, %v674, 0
      %v740 = vsel %vm489, %v707, 0
      %v743 = vsel %vm489, %v708, 0
      %v746 = vsel %vm489, %v709, 0
      %v749 = vsel %vm489, %v710, 0
      %v752 = vsel %vm489, %v711, 0
      %v755 = vsel %vm489, %v712, 0
      %v758 = vsel %vm489, %v713, 0
      %v761 = vsel %vm489, %v714, 0
      %763 = vmatprep.subr.bf16.mxu0 0
      %764 = vmatpush1.bf16.xpose.msra.mxu0 %v740
      %765 = vmatprep.subr.bf16.mxu0 0
      %766 = vmatpush1.bf16.xpose.msra.mxu0 %v743
      %767 = vmatprep.subr.bf16.mxu0 0
      %768 = vmatpush1.bf16.xpose.msra.mxu0 %v746
      %769 = vmatprep.subr.bf16.mxu0 0
      %770 = vmatpush1.bf16.xpose.msra.mxu0 %v749
      %771 = vmatprep.subr.bf16.mxu0 0
      %772 = vmatpush1.bf16.xpose.msra.mxu0 %v752
      %773 = vmatprep.subr.bf16.mxu0 0
      %774 = vmatpush1.bf16.xpose.msra.mxu0 %v755
      %775 = vmatprep.subr.bf16.mxu0 0
      %776 = vmatpush1.bf16.xpose.msra.mxu0 %v758
      %777 = vmatprep.subr.bf16.mxu0 0
      %778 = vmatpush1.bf16.xpose.msra.mxu0 %v761
      %779 = vmatprep.subr.bf16.mxu0 0
      %780 = vmatpush1.bf16.xpose.msra.mxu0 0
      %781 = vmatprep.subr.bf16.mxu0 0
      %782 = vmatpush1.bf16.xpose.msra.mxu0 0
      %783 = vmatprep.subr.bf16.mxu0 0
      %784 = vmatpush1.bf16.xpose.msra.mxu0 0
      %785 = vmatprep.subr.bf16.mxu0 0
      %786 = vmatpush1.bf16.xpose.msra.mxu0 0
      %787 = vmatprep.subr.bf16.mxu0 0
      %788 = vmatpush1.bf16.xpose.msra.mxu0 0
      %789 = vmatprep.subr.bf16.mxu0 0
      %790 = vmatpush1.bf16.xpose.msra.mxu0 0
      %791 = vmatprep.subr.bf16.mxu0 0
      %792 = vmatpush1.bf16.xpose.msra.mxu0 0
      %793 = vmatprep.subr.bf16.mxu0 0
      %794 = vmatpush1.bf16.xpose.msra.mxu0 0
      %795 = vmatprep.mubr.bf16.mxu0 0
      %796 = vmatmul.mubr.bf16.gmra.mrb[0].mxu0 %v716
      %v797 = vpop.f32.mrb[0].mxu0
      %v798 = vadd.f32 0.0, %v797
      %v799 = vpop.f32.mrb[0].mxu0
      %v800 = vpop.f32.mrb[0].mxu0
      %v801 = vadd.f32 0.0, %v800
      %v802 = vpop.f32.mrb[0].mxu0
      %803 = vmatprep.mubr.bf16.mxu0 0
      %804 = vmatmul.mubr.bf16.gmra.mrb[0].mxu0 %v719
      %v805 = vpop.f32.mrb[0].mxu0
      %v806 = vadd.f32 0.0, %v805
      %v807 = vpop.f32.mrb[0].mxu0
      %v808 = vpop.f32.mrb[0].mxu0
      %v809 = vadd.f32 0.0, %v808
      %v810 = vpop.f32.mrb[0].mxu0
      %811 = vmatprep.mubr.bf16.mxu0 0
      %812 = vmatmul.mubr.bf16.gmra.mrb[0].mxu0 %v722
      %v813 = vpop.f32.mrb[0].mxu0
      %v814 = vadd.f32 0.0, %v813
      %v815 = vpop.f32.mrb[0].mxu0
      %v816 = vpop.f32.mrb[0].mxu0
      %v817 = vadd.f32 0.0, %v816
      %v818 = vpop.f32.mrb[0].mxu0
      %819 = vmatprep.mubr.bf16.mxu0 0
      %820 = vmatmul.mubr.bf16.gmra.mrb[0].mxu0 %v725
      %v821 = vpop.f32.mrb[0].mxu0
      %v822 = vadd.f32 0.0, %v821
      %v823 = vpop.f32.mrb[0].mxu0
      %v824 = vpop.f32.mrb[0].mxu0
      %v825 = vadd.f32 0.0, %v824
      %v826 = vpop.f32.mrb[0].mxu0
      %827 = vmatprep.mubr.bf16.mxu0 0
      %828 = vmatmul.mubr.bf16.gmra.mrb[0].mxu0 %v728
      %v829 = vpop.f32.mrb[0].mxu0
      %v830 = vadd.f32 0.0, %v829
      %v831 = vpop.f32.mrb[0].mxu0
      %v832 = vpop.f32.mrb[0].mxu0
      %v833 = vadd.f32 0.0, %v832
      %v834 = vpop.f32.mrb[0].mxu0
      %835 = vmatprep.mubr.bf16.mxu0 0
      %836 = vmatmul.mubr.bf16.gmra.mrb[0].mxu0 %v731
      %v837 = vpop.f32.mrb[0].mxu0
      %v838 = vadd.f32 0.0, %v837
      %v839 = vpop.f32.mrb[0].mxu0
      %v840 = vpop.f32.mrb[0].mxu0
      %v841 = vadd.f32 0.0, %v840
      %v842 = vpop.f32.mrb[0].mxu0
      %843 = vmatprep.mubr.bf16.mxu0 0
      %844 = vmatmul.mubr.bf16.gmra.mrb[0].mxu0 %v734
      %v845 = vpop.f32.mrb[0].mxu0
      %v846 = vadd.f32 0.0, %v845
      %v847 = vpop.f32.mrb[0].mxu0
      %v848 = vpop.f32.mrb[0].mxu0
      %v849 = vadd.f32 0.0, %v848
      %v850 = vpop.f32.mrb[0].mxu0
      %851 = vmatprep.mubr.bf16.mxu0 0
      %852 = vmatmul.mubr.bf16.gmra.mrb[0].mxu0 %v737
      %v853 = vpop.f32.mrb[0].mxu0
      %v854 = vadd.f32 0.0, %v853
      %v855 = vpop.f32.mrb[0].mxu0
      %v856 = vpop.f32.mrb[0].mxu0
      %v857 = vadd.f32 0.0, %v856
      %v858 = vpop.f32.mrb[0].mxu0
      %859 = vdwg.mxu0
      %v860 = vmul.f32 %v573, 0.25
      %v861 = vmul.f32 %v576, 0.25
      %v862 = vmul.f32 %v581, 0.25
      %v863 = vmul.f32 %v584, 0.25
      %v864 = vmul.f32 %v589, 0.25
      %v865 = vmul.f32 %v592, 0.25
      %v866 = vmul.f32 %v597, 0.25
      %v867 = vmul.f32 %v600, 0.25
      %v868 = vmul.f32 %v605, 0.25
      %v869 = vmul.f32 %v608, 0.25
      %v870 = vmul.f32 %v613, 0.25
      %v871 = vmul.f32 %v616, 0.25
      %v872 = vmul.f32 %v621, 0.25
      %v873 = vmul.f32 %v624, 0.25
      %v874 = vmul.f32 %v629, 0.25
      %v875 = vmul.f32 %v632, 0.25
      %v876 = vmul.f32 %v798, 0.25
      %v877 = vmul.f32 %v801, 0.25
      %v878 = vmul.f32 %v806, 0.25
      %v879 = vmul.f32 %v809, 0.25
      %v880 = vmul.f32 %v814, 0.25
      %v881 = vmul.f32 %v817, 0.25
      %v882 = vmul.f32 %v822, 0.25
      %v883 = vmul.f32 %v825, 0.25
      %v884 = vmul.f32 %v830, 0.25
      %v885 = vmul.f32 %v833, 0.25
      %v886 = vmul.f32 %v838, 0.25
      %v887 = vmul.f32 %v841, 0.25
      %v888 = vmul.f32 %v846, 0.25
      %v889 = vmul.f32 %v849, 0.25
      %v890 = vmul.f32 %v854, 0.25
      %v891 = vmul.f32 %v857, 0.25
      %v892 = vlaneseq
      %v893 = vand.u32 %v892, 127
      %vm894 = vcmp.lt.s32.totalorder %v893, 17
      %v895 = vsel %vm894, %v860, -1e+30
      %v896 = vsel %vm894, %v861, -1e+30
      %v897 = vsel %vm894, %v862, -1e+30
      %v898 = vsel %vm894, %v863, -1e+30
      %v899 = vsel %vm894, %v864, -1e+30
      %v900 = vsel %vm894, %v865, -1e+30
      %v901 = vsel %vm894, %v866, -1e+30
      %v902 = vsel %vm894, %v867, -1e+30
      %v903 = vsel %vm894, %v868, -1e+30
      %v904 = vsel %vm894, %v869, -1e+30
      %v905 = vsel %vm894, %v870, -1e+30
      %v906 = vsel %vm894, %v871, -1e+30
      %v907 = vsel %vm894, %v872, -1e+30
      %v908 = vsel %vm894, %v873, -1e+30
      %v909 = vsel %vm894, %v874, -1e+30
      %v910 = vsel %vm894, %v875, -1e+30
      %v911 = vsel %vm894, %v876, -1e+30
      %v912 = vsel %vm894, %v877, -1e+30
      %v913 = vsel %vm894, %v878, -1e+30
      %v914 = vsel %vm894, %v879, -1e+30
      %v915 = vsel %vm894, %v880, -1e+30
      %v916 = vsel %vm894, %v881, -1e+30
      %v917 = vsel %vm894, %v882, -1e+30
      %v918 = vsel %vm894, %v883, -1e+30
      %v919 = vsel %vm894, %v884, -1e+30
      %v920 = vsel %vm894, %v885, -1e+30
      %v921 = vsel %vm894, %v886, -1e+30
      %v922 = vsel %vm894, %v887, -1e+30
      %v923 = vsel %vm894, %v888, -1e+30
      %v924 = vsel %vm894, %v889, -1e+30
      %v925 = vsel %vm894, %v890, -1e+30
      %v926 = vsel %vm894, %v891, -1e+30
      %927 = vmax.xlane.f32.xlu0 %v895
      %v928 = vpop.xlane.xlu0 %927
      %929 = vmax.xlane.f32.xlu0 %v896
      %v930 = vpop.xlane.xlu0 %929
      %931 = vmax.xlane.f32.xlu0 %v897
      %v932 = vpop.xlane.xlu0 %931
      %933 = vmax.xlane.f32.xlu0 %v898
      %v934 = vpop.xlane.xlu0 %933
      %935 = vmax.xlane.f32.xlu0 %v899
      %v936 = vpop.xlane.xlu0 %935
      %937 = vmax.xlane.f32.xlu0 %v900
      %v938 = vpop.xlane.xlu0 %937
      %939 = vmax.xlane.f32.xlu0 %v901
      %v940 = vpop.xlane.xlu0 %939
      %941 = vmax.xlane.f32.xlu0 %v902
      %v942 = vpop.xlane.xlu0 %941
      %943 = vmax.xlane.f32.xlu0 %v903
      %v944 = vpop.xlane.xlu0 %943
      %945 = vmax.xlane.f32.xlu0 %v904
      %v946 = vpop.xlane.xlu0 %945
      %947 = vmax.xlane.f32.xlu0 %v905
      %v948 = vpop.xlane.xlu0 %947
      %949 = vmax.xlane.f32.xlu0 %v906
      %v950 = vpop.xlane.xlu0 %949
      %951 = vmax.xlane.f32.xlu0 %v907
      %v952 = vpop.xlane.xlu0 %951
      %953 = vmax.xlane.f32.xlu0 %v908
      %v954 = vpop.xlane.xlu0 %953
      %955 = vmax.xlane.f32.xlu0 %v909
      %v956 = vpop.xlane.xlu0 %955
      %957 = vmax.xlane.f32.xlu0 %v910
      %v958 = vpop.xlane.xlu0 %957
      %959 = vmax.xlane.f32.xlu0 %v911
      %v960 = vpop.xlane.xlu0 %959
      %961 = vmax.xlane.f32.xlu0 %v912
      %v962 = vpop.xlane.xlu0 %961
      %963 = vmax.xlane.f32.xlu0 %v913
      %v964 = vpop.xlane.xlu0 %963
      %965 = vmax.xlane.f32.xlu0 %v914
      %v966 = vpop.xlane.xlu0 %965
      %967 = vmax.xlane.f32.xlu0 %v915
      %v968 = vpop.xlane.xlu0 %967
      %969 = vmax.xlane.f32.xlu0 %v916
      %v970 = vpop.xlane.xlu0 %969
      %971 = vmax.xlane.f32.xlu0 %v917
      %v972 = vpop.xlane.xlu0 %971
      %973 = vmax.xlane.f32.xlu0 %v918
      %v974 = vpop.xlane.xlu0 %973
      %975 = vmax.xlane.f32.xlu0 %v919
      %v976 = vpop.xlane.xlu0 %975
      %977 = vmax.xlane.f32.xlu0 %v920
      %v978 = vpop.xlane.xlu0 %977
      %979 = vmax.xlane.f32.xlu0 %v921
      %v980 = vpop.xlane.xlu0 %979
      %981 = vmax.xlane.f32.xlu0 %v922
      %v982 = vpop.xlane.xlu0 %981
      %983 = vmax.xlane.f32.xlu0 %v923
      %v984 = vpop.xlane.xlu0 %983
      %985 = vmax.xlane.f32.xlu0 %v924
      %v986 = vpop.xlane.xlu0 %985
      %987 = vmax.xlane.f32.xlu0 %v925
      %v988 = vpop.xlane.xlu0 %987
      %989 = vmax.xlane.f32.xlu0 %v926
      %v990 = vpop.xlane.xlu0 %989
      %v991 = vsub.f32 %v895, %v928
      %v992 = vsub.f32 %v896, %v930
      %v993 = vsub.f32 %v897, %v932
      %v994 = vsub.f32 %v898, %v934
      %v995 = vsub.f32 %v899, %v936
      %v996 = vsub.f32 %v900, %v938
      %v997 = vsub.f32 %v901, %v940
      %v998 = vsub.f32 %v902, %v942
      %v999 = vsub.f32 %v903, %v944
      %v1000 = vsub.f32 %v904, %v946
      %v1001 = vsub.f32 %v905, %v948
      %v1002 = vsub.f32 %v906, %v950
      %v1003 = vsub.f32 %v907, %v952
      %v1004 = vsub.f32 %v908, %v954
      %v1005 = vsub.f32 %v909, %v956
      %v1006 = vsub.f32 %v910, %v958
      %v1007 = vsub.f32 %v911, %v960
      %v1008 = vsub.f32 %v912, %v962
      %v1009 = vsub.f32 %v913, %v964
      %v1010 = vsub.f32 %v914, %v966
      %v1011 = vsub.f32 %v915, %v968
      %v1012 = vsub.f32 %v916, %v970
      %v1013 = vsub.f32 %v917, %v972
      %v1014 = vsub.f32 %v918, %v974
      %v1015 = vsub.f32 %v919, %v976
      %v1016 = vsub.f32 %v920, %v978
      %v1017 = vsub.f32 %v921, %v980
      %v1018 = vsub.f32 %v922, %v982
      %v1019 = vsub.f32 %v923, %v984
      %v1020 = vsub.f32 %v924, %v986
      %v1021 = vsub.f32 %v925, %v988
      %v1022 = vsub.f32 %v926, %v990
      %v1023 = vmul.f32 %v991, 1.442695
      %v1024 = vpow.pop %v1023
      %v1025 = vmul.f32 %v992, 1.442695
      %v1026 = vpow.pop %v1025
      %v1027 = vmul.f32 %v993, 1.442695
      %v1028 = vpow.pop %v1027
      %v1029 = vmul.f32 %v994, 1.442695
      %v1030 = vpow.pop %v1029
      %v1031 = vmul.f32 %v995, 1.442695
      %v1032 = vpow.pop %v1031
      %v1033 = vmul.f32 %v996, 1.442695
      %v1034 = vpow.pop %v1033
      %v1035 = vmul.f32 %v997, 1.442695
      %v1036 = vpow.pop %v1035
      %v1037 = vmul.f32 %v998, 1.442695
      %v1038 = vpow.pop %v1037
      %v1039 = vmul.f32 %v999, 1.442695
      %v1040 = vpow.pop %v1039
      %v1041 = vmul.f32 %v1000, 1.442695
      %v1042 = vpow.pop %v1041
      %v1043 = vmul.f32 %v1001, 1.442695
      %v1044 = vpow.pop %v1043
      %v1045 = vmul.f32 %v1002, 1.442695
      %v1046 = vpow.pop %v1045
      %v1047 = vmul.f32 %v1003, 1.442695
      %v1048 = vpow.pop %v1047
      %v1049 = vmul.f32 %v1004, 1.442695
      %v1050 = vpow.pop %v1049
      %v1051 = vmul.f32 %v1005, 1.442695
      %v1052 = vpow.pop %v1051
      %v1053 = vmul.f32 %v1006, 1.442695
      %v1054 = vpow.pop %v1053
      %v1055 = vmul.f32 %v1007, 1.442695
      %v1056 = vpow.pop %v1055
      %v1057 = vmul.f32 %v1008, 1.442695
      %v1058 = vpow.pop %v1057
      %v1059 = vmul.f32 %v1009, 1.442695
      %v1060 = vpow.pop %v1059
      %v1061 = vmul.f32 %v1010, 1.442695
      %v1062 = vpow.pop %v1061
      %v1063 = vmul.f32 %v1011, 1.442695
      %v1064 = vpow.pop %v1063
      %v1065 = vmul.f32 %v1012, 1.442695
      %v1066 = vpow.pop %v1065
      %v1067 = vmul.f32 %v1013, 1.442695
      %v1068 = vpow.pop %v1067
      %v1069 = vmul.f32 %v1014, 1.442695
      %v1070 = vpow.pop %v1069
      %v1071 = vmul.f32 %v1015, 1.442695
      %v1072 = vpow.pop %v1071
      %v1073 = vmul.f32 %v1016, 1.442695
      %v1074 = vpow.pop %v1073
      %v1075 = vmul.f32 %v1017, 1.442695
      %v1076 = vpow.pop %v1075
      %v1077 = vmul.f32 %v1018, 1.442695
      %v1078 = vpow.pop %v1077
      %v1079 = vmul.f32 %v1019, 1.442695
      %v1080 = vpow.pop %v1079
      %v1081 = vmul.f32 %v1020, 1.442695
      %v1082 = vpow.pop %v1081
      %v1083 = vmul.f32 %v1021, 1.442695
      %v1084 = vpow.pop %v1083
      %v1085 = vmul.f32 %v1022, 1.442695
      %v1086 = vpow.pop %v1085
      %1087 = vadd.xlane.f32.xlu0 %v1024
      %v1088 = vpop.xlane.xlu0 %1087
      %1089 = vadd.xlane.f32.xlu0 %v1026
      %v1090 = vpop.xlane.xlu0 %1089
      %1091 = vadd.xlane.f32.xlu0 %v1028
      %v1092 = vpop.xlane.xlu0 %1091
      %1093 = vadd.xlane.f32.xlu0 %v1030
      %v1094 = vpop.xlane.xlu0 %1093
      %1095 = vadd.xlane.f32.xlu0 %v1032
      %v1096 = vpop.xlane.xlu0 %1095
      %1097 = vadd.xlane.f32.xlu0 %v1034
      %v1098 = vpop.xlane.xlu0 %1097
      %1099 = vadd.xlane.f32.xlu0 %v1036
      %v1100 = vpop.xlane.xlu0 %1099
      %1101 = vadd.xlane.f32.xlu0 %v1038
      %v1102 = vpop.xlane.xlu0 %1101
      %1103 = vadd.xlane.f32.xlu0 %v1040
      %v1104 = vpop.xlane.xlu0 %1103
      %1105 = vadd.xlane.f32.xlu0 %v1042
      %v1106 = vpop.xlane.xlu0 %1105
      %1107 = vadd.xlane.f32.xlu0 %v1044
      %v1108 = vpop.xlane.xlu0 %1107
      %1109 = vadd.xlane.f32.xlu0 %v1046
      %v1110 = vpop.xlane.xlu0 %1109
      %1111 = vadd.xlane.f32.xlu0 %v1048
      %v1112 = vpop.xlane.xlu0 %1111
      %1113 = vadd.xlane.f32.xlu0 %v1050
      %v1114 = vpop.xlane.xlu0 %1113
      %1115 = vadd.xlane.f32.xlu0 %v1052
      %v1116 = vpop.xlane.xlu0 %1115
      %1117 = vadd.xlane.f32.xlu0 %v1054
      %v1118 = vpop.xlane.xlu0 %1117
      %1119 = vadd.xlane.f32.xlu0 %v1056
      %v1120 = vpop.xlane.xlu0 %1119
      %1121 = vadd.xlane.f32.xlu0 %v1058
      %v1122 = vpop.xlane.xlu0 %1121
      %1123 = vadd.xlane.f32.xlu0 %v1060
      %v1124 = vpop.xlane.xlu0 %1123
      %1125 = vadd.xlane.f32.xlu0 %v1062
      %v1126 = vpop.xlane.xlu0 %1125
      %1127 = vadd.xlane.f32.xlu0 %v1064
      %v1128 = vpop.xlane.xlu0 %1127
      %1129 = vadd.xlane.f32.xlu0 %v1066
      %v1130 = vpop.xlane.xlu0 %1129
      %1131 = vadd.xlane.f32.xlu0 %v1068
      %v1132 = vpop.xlane.xlu0 %1131
      %1133 = vadd.xlane.f32.xlu0 %v1070
      %v1134 = vpop.xlane.xlu0 %1133
      %1135 = vadd.xlane.f32.xlu0 %v1072
      %v1136 = vpop.xlane.xlu0 %1135
      %1137 = vadd.xlane.f32.xlu0 %v1074
      %v1138 = vpop.xlane.xlu0 %1137
      %1139 = vadd.xlane.f32.xlu0 %v1076
      %v1140 = vpop.xlane.xlu0 %1139
      %1141 = vadd.xlane.f32.xlu0 %v1078
      %v1142 = vpop.xlane.xlu0 %1141
      %1143 = vadd.xlane.f32.xlu0 %v1080
      %v1144 = vpop.xlane.xlu0 %1143
      %1145 = vadd.xlane.f32.xlu0 %v1082
      %v1146 = vpop.xlane.xlu0 %1145
      %1147 = vadd.xlane.f32.xlu0 %v1084
      %v1148 = vpop.xlane.xlu0 %1147
      %1149 = vadd.xlane.f32.xlu0 %v1086
      %v1150 = vpop.xlane.xlu0 %1149
      %v1151 = vrcp.pop %v1088
      %v1152 = vrcp.pop %v1090
      %v1153 = vrcp.pop %v1092
      %v1154 = vrcp.pop %v1094
      %v1155 = vrcp.pop %v1096
      %v1156 = vrcp.pop %v1098
      %v1157 = vrcp.pop %v1100
      %v1158 = vrcp.pop %v1102
      %v1159 = vrcp.pop %v1104
      %v1160 = vrcp.pop %v1106
      %v1161 = vrcp.pop %v1108
      %v1162 = vrcp.pop %v1110
      %v1163 = vrcp.pop %v1112
      %v1164 = vrcp.pop %v1114
      %v1165 = vrcp.pop %v1116
      %v1166 = vrcp.pop %v1118
      %v1167 = vrcp.pop %v1120
      %v1168 = vrcp.pop %v1122
      %v1169 = vrcp.pop %v1124
      %v1170 = vrcp.pop %v1126
      %v1171 = vrcp.pop %v1128
      %v1172 = vrcp.pop %v1130
      %v1173 = vrcp.pop %v1132
      %v1174 = vrcp.pop %v1134
      %v1175 = vrcp.pop %v1136
      %v1176 = vrcp.pop %v1138
      %v1177 = vrcp.pop %v1140
      %v1178 = vrcp.pop %v1142
      %v1179 = vrcp.pop %v1144
      %v1180 = vrcp.pop %v1146
      %v1181 = vrcp.pop %v1148
      %v1182 = vrcp.pop %v1150
      %v1183 = vmul.f32 %v1024, %v1151
      %v1184 = vmul.f32 %v1026, %v1152
      %v1185 = vmul.f32 %v1028, %v1153
      %v1186 = vmul.f32 %v1030, %v1154
      %v1187 = vmul.f32 %v1032, %v1155
      %v1188 = vmul.f32 %v1034, %v1156
      %v1189 = vmul.f32 %v1036, %v1157
      %v1190 = vmul.f32 %v1038, %v1158
      %v1191 = vmul.f32 %v1040, %v1159
      %v1192 = vmul.f32 %v1042, %v1160
      %v1193 = vmul.f32 %v1044, %v1161
      %v1194 = vmul.f32 %v1046, %v1162
      %v1195 = vmul.f32 %v1048, %v1163
      %v1196 = vmul.f32 %v1050, %v1164
      %v1197 = vmul.f32 %v1052, %v1165
      %v1198 = vmul.f32 %v1054, %v1166
      %v1199 = vmul.f32 %v1056, %v1167
      %v1200 = vmul.f32 %v1058, %v1168
      %v1201 = vmul.f32 %v1060, %v1169
      %v1202 = vmul.f32 %v1062, %v1170
      %v1203 = vmul.f32 %v1064, %v1171
      %v1204 = vmul.f32 %v1066, %v1172
      %v1205 = vmul.f32 %v1068, %v1173
      %v1206 = vmul.f32 %v1070, %v1174
      %v1207 = vmul.f32 %v1072, %v1175
      %v1208 = vmul.f32 %v1074, %v1176
      %v1209 = vmul.f32 %v1076, %v1177
      %v1210 = vmul.f32 %v1078, %v1178
      %v1211 = vmul.f32 %v1080, %v1179
      %v1212 = vmul.f32 %v1082, %v1180
      %v1213 = vmul.f32 %v1084, %v1181
      %v1214 = vmul.f32 %v1086, %v1182
      %v1215 = vpack.c.bf16 %v1184, %v1183
      %v1216 = vpack.c.bf16 %v1186, %v1185
      %v1217 = vpack.c.bf16 %v1188, %v1187
      %v1218 = vpack.c.bf16 %v1190, %v1189
      %v1219 = vpack.c.bf16 %v1192, %v1191
      %v1220 = vpack.c.bf16 %v1194, %v1193
      %v1221 = vpack.c.bf16 %v1196, %v1195
      %v1222 = vpack.c.bf16 %v1198, %v1197
      %v1223 = vpack.c.bf16 %v1200, %v1199
      %v1224 = vpack.c.bf16 %v1202, %v1201
      %v1225 = vpack.c.bf16 %v1204, %v1203
      %v1226 = vpack.c.bf16 %v1206, %v1205
      %v1227 = vpack.c.bf16 %v1208, %v1207
      %v1228 = vpack.c.bf16 %v1210, %v1209
      %v1229 = vpack.c.bf16 %v1212, %v1211
      %v1230 = vpack.c.bf16 %v1214, %v1213
      %v1247 = vunpack.c.l.b16 %v377
      %v1248 = vunpack.c.l.b16 %v378
      %v1249 = vunpack.c.l.b16 %v379
      %v1250 = vunpack.c.l.b16 %v380
      %v1251 = vunpack.c.l.b16 %v381
      %v1252 = vunpack.c.l.b16 %v382
      %v1253 = vunpack.c.l.b16 %v383
      %v1254 = vunpack.c.l.b16 %v384
      %v1255 = vunpack.c.l.b16 %v385
      %v1256 = vunpack.c.l.b16 %v386
      %v1257 = vunpack.c.l.b16 %v387
      %v1258 = vunpack.c.l.b16 %v388
      %v1259 = vunpack.c.l.b16 %v389
      %v1260 = vunpack.c.l.b16 %v390
      %v1261 = vunpack.c.l.b16 %v391
      %v1262 = vunpack.c.l.b16 %v392
      %v1263 = vpack.c.b16 %v1248, %v1247
      %v1264 = vpack.c.b16 %v1250, %v1249
      %v1265 = vpack.c.b16 %v1252, %v1251
      %v1266 = vpack.c.b16 %v1254, %v1253
      %v1267 = vpack.c.b16 %v1256, %v1255
      %v1268 = vpack.c.b16 %v1258, %v1257
      %v1269 = vpack.c.b16 %v1260, %v1259
      %v1270 = vpack.c.b16 %v1262, %v1261
      %1279 = vmatprep.subr.bf16.mxu0 0
      %1280 = vmatpush1.bf16.msra.mxu0 %v1263
      %1281 = vmatprep.subr.bf16.mxu0 0
      %1282 = vmatpush1.bf16.msra.mxu0 %v1264
      %1283 = vmatprep.subr.bf16.mxu0 0
      %1284 = vmatpush1.bf16.msra.mxu0 %v1265
      %1285 = vmatprep.subr.bf16.mxu0 0
      %1286 = vmatpush1.bf16.msra.mxu0 %v1266
      %1287 = vmatprep.subr.bf16.mxu0 0
      %1288 = vmatpush1.bf16.msra.mxu0 %v1267
      %1289 = vmatprep.subr.bf16.mxu0 0
      %1290 = vmatpush1.bf16.msra.mxu0 %v1268
      %1291 = vmatprep.subr.bf16.mxu0 0
      %1292 = vmatpush1.bf16.msra.mxu0 %v1269
      %1293 = vmatprep.subr.bf16.mxu0 0
      %1294 = vmatpush1.bf16.msra.mxu0 %v1270
      %1295 = vmatprep.subr.bf16.mxu0 0
      %1296 = vmatpush1.bf16.msra.mxu0 0
      %1297 = vmatprep.subr.bf16.mxu0 0
      %1298 = vmatpush1.bf16.msra.mxu0 0
      %1299 = vmatprep.subr.bf16.mxu0 0
      %1300 = vmatpush1.bf16.msra.mxu0 0
      %1301 = vmatprep.subr.bf16.mxu0 0
      %1302 = vmatpush1.bf16.msra.mxu0 0
      %1303 = vmatprep.subr.bf16.mxu0 0
      %1304 = vmatpush1.bf16.msra.mxu0 0
      %1305 = vmatprep.subr.bf16.mxu0 0
      %1306 = vmatpush1.bf16.msra.mxu0 0
      %1307 = vmatprep.subr.bf16.mxu0 0
      %1308 = vmatpush1.bf16.msra.mxu0 0
      %1309 = vmatprep.subr.bf16.mxu0 0
      %1310 = vmatpush1.bf16.msra.mxu0 0
      %1311 = vmatprep.mubr.bf16.mxu0 0
      %1312 = vmatmul.mubr.bf16.gmra.mrb[0].mxu0 %v1215
      %v1313 = vpop.f32.mrb[0].mxu0
      %v1314 = vadd.f32 0.0, %v1313
      %v1315 = vpop.f32.mrb[0].mxu0
      %v1316 = vpop.f32.mrb[0].mxu0
      %v1317 = vadd.f32 0.0, %v1316
      %v1318 = vpop.f32.mrb[0].mxu0
      %1319 = vmatprep.mubr.bf16.mxu0 0
      %1320 = vmatmul.mubr.bf16.gmra.mrb[0].mxu0 %v1216
      %v1321 = vpop.f32.mrb[0].mxu0
      %v1322 = vadd.f32 0.0, %v1321
      %v1323 = vpop.f32.mrb[0].mxu0
      %v1324 = vpop.f32.mrb[0].mxu0
      %v1325 = vadd.f32 0.0, %v1324
      %v1326 = vpop.f32.mrb[0].mxu0
      %1327 = vmatprep.mubr.bf16.mxu0 0
      %1328 = vmatmul.mubr.bf16.gmra.mrb[0].mxu0 %v1217
      %v1329 = vpop.f32.mrb[0].mxu0
      %v1330 = vadd.f32 0.0, %v1329
      %v1331 = vpop.f32.mrb[0].mxu0
      %v1332 = vpop.f32.mrb[0].mxu0
      %v1333 = vadd.f32 0.0, %v1332
      %v1334 = vpop.f32.mrb[0].mxu0
      %1335 = vmatprep.mubr.bf16.mxu0 0
      %1336 = vmatmul.mubr.bf16.gmra.mrb[0].mxu0 %v1218
      %v1337 = vpop.f32.mrb[0].mxu0
      %v1338 = vadd.f32 0.0, %v1337
      %v1339 = vpop.f32.mrb[0].mxu0
      %v1340 = vpop.f32.mrb[0].mxu0
      %v1341 = vadd.f32 0.0, %v1340
      %v1342 = vpop.f32.mrb[0].mxu0
      %1343 = vmatprep.mubr.bf16.mxu0 0
      %1344 = vmatmul.mubr.bf16.gmra.mrb[0].mxu0 %v1219
      %v1345 = vpop.f32.mrb[0].mxu0
      %v1346 = vadd.f32 0.0, %v1345
      %v1347 = vpop.f32.mrb[0].mxu0
      %v1348 = vpop.f32.mrb[0].mxu0
      %v1349 = vadd.f32 0.0, %v1348
      %v1350 = vpop.f32.mrb[0].mxu0
      %1351 = vmatprep.mubr.bf16.mxu0 0
      %1352 = vmatmul.mubr.bf16.gmra.mrb[0].mxu0 %v1220
      %v1353 = vpop.f32.mrb[0].mxu0
      %v1354 = vadd.f32 0.0, %v1353
      %v1355 = vpop.f32.mrb[0].mxu0
      %v1356 = vpop.f32.mrb[0].mxu0
      %v1357 = vadd.f32 0.0, %v1356
      %v1358 = vpop.f32.mrb[0].mxu0
      %1359 = vmatprep.mubr.bf16.mxu0 0
      %1360 = vmatmul.mubr.bf16.gmra.mrb[0].mxu0 %v1221
      %v1361 = vpop.f32.mrb[0].mxu0
      %v1362 = vadd.f32 0.0, %v1361
      %v1363 = vpop.f32.mrb[0].mxu0
      %v1364 = vpop.f32.mrb[0].mxu0
      %v1365 = vadd.f32 0.0, %v1364
      %v1366 = vpop.f32.mrb[0].mxu0
      %1367 = vmatprep.mubr.bf16.mxu0 0
      %1368 = vmatmul.mubr.bf16.gmra.mrb[0].mxu0 %v1222
      %v1369 = vpop.f32.mrb[0].mxu0
      %v1370 = vadd.f32 0.0, %v1369
      %v1371 = vpop.f32.mrb[0].mxu0
      %v1372 = vpop.f32.mrb[0].mxu0
      %v1373 = vadd.f32 0.0, %v1372
      %v1374 = vpop.f32.mrb[0].mxu0
      %1375 = vdwg.mxu0
      %v1392 = vunpack.c.l.b16 %v393
      %v1393 = vunpack.c.l.b16 %v394
      %v1394 = vunpack.c.l.b16 %v395
      %v1395 = vunpack.c.l.b16 %v396
      %v1396 = vunpack.c.l.b16 %v397
      %v1397 = vunpack.c.l.b16 %v398
      %v1398 = vunpack.c.l.b16 %v399
      %v1399 = vunpack.c.l.b16 %v400
      %v1400 = vunpack.c.l.b16 %v401
      %v1401 = vunpack.c.l.b16 %v402
      %v1402 = vunpack.c.l.b16 %v403
      %v1403 = vunpack.c.l.b16 %v404
      %v1404 = vunpack.c.l.b16 %v405
      %v1405 = vunpack.c.l.b16 %v406
      %v1406 = vunpack.c.l.b16 %v407
      %v1407 = vunpack.c.l.b16 %v408
      %v1408 = vpack.c.b16 %v1393, %v1392
      %v1409 = vpack.c.b16 %v1395, %v1394
      %v1410 = vpack.c.b16 %v1397, %v1396
      %v1411 = vpack.c.b16 %v1399, %v1398
      %v1412 = vpack.c.b16 %v1401, %v1400
      %v1413 = vpack.c.b16 %v1403, %v1402
      %v1414 = vpack.c.b16 %v1405, %v1404
      %v1415 = vpack.c.b16 %v1407, %v1406
      %1424 = vmatprep.subr.bf16.mxu0 0
      %1425 = vmatpush1.bf16.msra.mxu0 %v1408
      %1426 = vmatprep.subr.bf16.mxu0 0
      %1427 = vmatpush1.bf16.msra.mxu0 %v1409
      %1428 = vmatprep.subr.bf16.mxu0 0
      %1429 = vmatpush1.bf16.msra.mxu0 %v1410
      %1430 = vmatprep.subr.bf16.mxu0 0
      %1431 = vmatpush1.bf16.msra.mxu0 %v1411
      %1432 = vmatprep.subr.bf16.mxu0 0
      %1433 = vmatpush1.bf16.msra.mxu0 %v1412
      %1434 = vmatprep.subr.bf16.mxu0 0
      %1435 = vmatpush1.bf16.msra.mxu0 %v1413
      %1436 = vmatprep.subr.bf16.mxu0 0
      %1437 = vmatpush1.bf16.msra.mxu0 %v1414
      %1438 = vmatprep.subr.bf16.mxu0 0
      %1439 = vmatpush1.bf16.msra.mxu0 %v1415
      %1440 = vmatprep.subr.bf16.mxu0 0
      %1441 = vmatpush1.bf16.msra.mxu0 0
      %1442 = vmatprep.subr.bf16.mxu0 0
      %1443 = vmatpush1.bf16.msra.mxu0 0
      %1444 = vmatprep.subr.bf16.mxu0 0
      %1445 = vmatpush1.bf16.msra.mxu0 0
      %1446 = vmatprep.subr.bf16.mxu0 0
      %1447 = vmatpush1.bf16.msra.mxu0 0
      %1448 = vmatprep.subr.bf16.mxu0 0
      %1449 = vmatpush1.bf16.msra.mxu0 0
      %1450 = vmatprep.subr.bf16.mxu0 0
      %1451 = vmatpush1.bf16.msra.mxu0 0
      %1452 = vmatprep.subr.bf16.mxu0 0
      %1453 = vmatpush1.bf16.msra.mxu0 0
      %1454 = vmatprep.subr.bf16.mxu0 0
      %1455 = vmatpush1.bf16.msra.mxu0 0
      %1456 = vmatprep.mubr.bf16.mxu0 0
      %1457 = vmatmul.mubr.bf16.gmra.mrb[0].mxu0 %v1223
      %v1458 = vpop.f32.mrb[0].mxu0
      %v1459 = vadd.f32 0.0, %v1458
      %v1460 = vpop.f32.mrb[0].mxu0
      %v1461 = vpop.f32.mrb[0].mxu0
      %v1462 = vadd.f32 0.0, %v1461
      %v1463 = vpop.f32.mrb[0].mxu0
      %1464 = vmatprep.mubr.bf16.mxu0 0
      %1465 = vmatmul.mubr.bf16.gmra.mrb[0].mxu0 %v1224
      %v1466 = vpop.f32.mrb[0].mxu0
      %v1467 = vadd.f32 0.0, %v1466
      %v1468 = vpop.f32.mrb[0].mxu0
      %v1469 = vpop.f32.mrb[0].mxu0
      %v1470 = vadd.f32 0.0, %v1469
      %v1471 = vpop.f32.mrb[0].mxu0
      %1472 = vmatprep.mubr.bf16.mxu0 0
      %1473 = vmatmul.mubr.bf16.gmra.mrb[0].mxu0 %v1225
      %v1474 = vpop.f32.mrb[0].mxu0
      %v1475 = vadd.f32 0.0, %v1474
      %v1476 = vpop.f32.mrb[0].mxu0
      %v1477 = vpop.f32.mrb[0].mxu0
      %v1478 = vadd.f32 0.0, %v1477
      %v1479 = vpop.f32.mrb[0].mxu0
      %1480 = vmatprep.mubr.bf16.mxu0 0
      %1481 = vmatmul.mubr.bf16.gmra.mrb[0].mxu0 %v1226
      %v1482 = vpop.f32.mrb[0].mxu0
      %v1483 = vadd.f32 0.0, %v1482
      %v1484 = vpop.f32.mrb[0].mxu0
      %v1485 = vpop.f32.mrb[0].mxu0
      %v1486 = vadd.f32 0.0, %v1485
      %v1487 = vpop.f32.mrb[0].mxu0
      %1488 = vmatprep.mubr.bf16.mxu0 0
      %1489 = vmatmul.mubr.bf16.gmra.mrb[0].mxu0 %v1227
      %v1490 = vpop.f32.mrb[0].mxu0
      %v1491 = vadd.f32 0.0, %v1490
      %v1492 = vpop.f32.mrb[0].mxu0
      %v1493 = vpop.f32.mrb[0].mxu0
      %v1494 = vadd.f32 0.0, %v1493
      %v1495 = vpop.f32.mrb[0].mxu0
      %1496 = vmatprep.mubr.bf16.mxu0 0
      %1497 = vmatmul.mubr.bf16.gmra.mrb[0].mxu0 %v1228
      %v1498 = vpop.f32.mrb[0].mxu0
      %v1499 = vadd.f32 0.0, %v1498
      %v1500 = vpop.f32.mrb[0].mxu0
      %v1501 = vpop.f32.mrb[0].mxu0
      %v1502 = vadd.f32 0.0, %v1501
      %v1503 = vpop.f32.mrb[0].mxu0
      %1504 = vmatprep.mubr.bf16.mxu0 0
      %1505 = vmatmul.mubr.bf16.gmra.mrb[0].mxu0 %v1229
      %v1506 = vpop.f32.mrb[0].mxu0
      %v1507 = vadd.f32 0.0, %v1506
      %v1508 = vpop.f32.mrb[0].mxu0
      %v1509 = vpop.f32.mrb[0].mxu0
      %v1510 = vadd.f32 0.0, %v1509
      %v1511 = vpop.f32.mrb[0].mxu0
      %1512 = vmatprep.mubr.bf16.mxu0 0
      %1513 = vmatmul.mubr.bf16.gmra.mrb[0].mxu0 %v1230
      %v1514 = vpop.f32.mrb[0].mxu0
      %v1515 = vadd.f32 0.0, %v1514
      %v1516 = vpop.f32.mrb[0].mxu0
      %v1517 = vpop.f32.mrb[0].mxu0
      %v1518 = vadd.f32 0.0, %v1517
      %v1519 = vpop.f32.mrb[0].mxu0
      %1520 = vdwg.mxu0
      %v1521 = vpack.c.bf16 %v1317, %v1314
      %v1522 = vpack.c.bf16 %v1325, %v1322
      %v1523 = vpack.c.bf16 %v1333, %v1330
      %v1524 = vpack.c.bf16 %v1341, %v1338
      %v1525 = vpack.c.bf16 %v1349, %v1346
      %v1526 = vpack.c.bf16 %v1357, %v1354
      %v1527 = vpack.c.bf16 %v1365, %v1362
      %v1528 = vpack.c.bf16 %v1373, %v1370
      %v1529 = vpack.c.bf16 %v1462, %v1459
      %v1530 = vpack.c.bf16 %v1470, %v1467
      %v1531 = vpack.c.bf16 %v1478, %v1475
      %v1532 = vpack.c.bf16 %v1486, %v1483
      %v1533 = vpack.c.bf16 %v1494, %v1491
      %v1534 = vpack.c.bf16 %v1502, %v1499
      %v1535 = vpack.c.bf16 %v1510, %v1507
      %v1536 = vpack.c.bf16 %v1518, %v1515
      %v1537 = vld [vmem:[%s4] sm:$0xf]
      %v1538 = vld [vmem:[%s4 + $0x4] sm:$0xf]
      %v1539 = vld [vmem:[%s4 + $0x8] sm:$0xf]
      %v1540 = vld [vmem:[%s4 + $0xc] sm:$0xf]
      %v1543 = vunpack.c.l.b16 %v1537
      %v1544 = vunpack.c.l.b16 %v1538
      %v1545 = vpack.c.b16 %v1544, %v1543
      %v1548 = vsel %vm489, %v1521, 0
      %v1551 = vsel %vm489, %v1522, 0
      %v1554 = vsel %vm489, %v1523, 0
      %v1557 = vsel %vm489, %v1524, 0
      %v1560 = vsel %vm489, %v1525, 0
      %v1563 = vsel %vm489, %v1526, 0
      %v1566 = vsel %vm489, %v1527, 0
      %v1569 = vsel %vm489, %v1528, 0
      %1571 = vmatprep.subr.bf16.mxu0 0
      %1572 = vmatpush1.bf16.msra.mxu0 %v1545
      %1573 = vmatprep.subr.bf16.mxu0 0
      %1574 = vmatpush1.bf16.msra.mxu0 0
      %1575 = vmatprep.subr.bf16.mxu0 0
      %1576 = vmatpush1.bf16.msra.mxu0 0
      %1577 = vmatprep.subr.bf16.mxu0 0
      %1578 = vmatpush1.bf16.msra.mxu0 0
      %1579 = vmatprep.subr.bf16.mxu0 0
      %1580 = vmatpush1.bf16.msra.mxu0 0
      %1581 = vmatprep.subr.bf16.mxu0 0
      %1582 = vmatpush1.bf16.msra.mxu0 0
      %1583 = vmatprep.subr.bf16.mxu0 0
      %1584 = vmatpush1.bf16.msra.mxu0 0
      %1585 = vmatprep.subr.bf16.mxu0 0
      %1586 = vmatpush1.bf16.msra.mxu0 0
      %1587 = vmatprep.subr.bf16.mxu0 0
      %1588 = vmatpush1.bf16.msra.mxu0 0
      %1589 = vmatprep.subr.bf16.mxu0 0
      %1590 = vmatpush1.bf16.msra.mxu0 0
      %1591 = vmatprep.subr.bf16.mxu0 0
      %1592 = vmatpush1.bf16.msra.mxu0 0
      %1593 = vmatprep.subr.bf16.mxu0 0
      %1594 = vmatpush1.bf16.msra.mxu0 0
      %1595 = vmatprep.subr.bf16.mxu0 0
      %1596 = vmatpush1.bf16.msra.mxu0 0
      %1597 = vmatprep.subr.bf16.mxu0 0
      %1598 = vmatpush1.bf16.msra.mxu0 0
      %1599 = vmatprep.subr.bf16.mxu0 0
      %1600 = vmatpush1.bf16.msra.mxu0 0
      %1601 = vmatprep.subr.bf16.mxu0 0
      %1602 = vmatpush1.bf16.msra.mxu0 0
      %1603 = vmatprep.mubr.bf16.mxu0 0
      %1604 = vmatmul.mubr.bf16.gmra.mrb[0].mxu0 %v1548
      %v1605 = vpop.f32.mrb[0].mxu0
      %v1606 = vadd.f32 0.0, %v1605
      %v1607 = vpop.f32.mrb[0].mxu0
      %v1608 = vpop.f32.mrb[0].mxu0
      %v1609 = vadd.f32 0.0, %v1608
      %v1610 = vpop.f32.mrb[0].mxu0
      %1611 = vmatprep.mubr.bf16.mxu0 0
      %1612 = vmatmul.mubr.bf16.gmra.mrb[0].mxu0 %v1551
      %v1613 = vpop.f32.mrb[0].mxu0
      %v1614 = vadd.f32 0.0, %v1613
      %v1615 = vpop.f32.mrb[0].mxu0
      %v1616 = vpop.f32.mrb[0].mxu0
      %v1617 = vadd.f32 0.0, %v1616
      %v1618 = vpop.f32.mrb[0].mxu0
      %1619 = vmatprep.mubr.bf16.mxu0 0
      %1620 = vmatmul.mubr.bf16.gmra.mrb[0].mxu0 %v1554
      %v1621 = vpop.f32.mrb[0].mxu0
      %v1622 = vadd.f32 0.0, %v1621
      %v1623 = vpop.f32.mrb[0].mxu0
      %v1624 = vpop.f32.mrb[0].mxu0
      %v1625 = vadd.f32 0.0, %v1624
      %v1626 = vpop.f32.mrb[0].mxu0
      %1627 = vmatprep.mubr.bf16.mxu0 0
      %1628 = vmatmul.mubr.bf16.gmra.mrb[0].mxu0 %v1557
      %v1629 = vpop.f32.mrb[0].mxu0
      %v1630 = vadd.f32 0.0, %v1629
      %v1631 = vpop.f32.mrb[0].mxu0
      %v1632 = vpop.f32.mrb[0].mxu0
      %v1633 = vadd.f32 0.0, %v1632
      %v1634 = vpop.f32.mrb[0].mxu0
      %1635 = vmatprep.mubr.bf16.mxu0 0
      %1636 = vmatmul.mubr.bf16.gmra.mrb[0].mxu0 %v1560
      %v1637 = vpop.f32.mrb[0].mxu0
      %v1638 = vadd.f32 0.0, %v1637
      %v1639 = vpop.f32.mrb[0].mxu0
      %v1640 = vpop.f32.mrb[0].mxu0
      %v1641 = vadd.f32 0.0, %v1640
      %v1642 = vpop.f32.mrb[0].mxu0
      %1643 = vmatprep.mubr.bf16.mxu0 0
      %1644 = vmatmul.mubr.bf16.gmra.mrb[0].mxu0 %v1563
      %v1645 = vpop.f32.mrb[0].mxu0
      %v1646 = vadd.f32 0.0, %v1645
      %v1647 = vpop.f32.mrb[0].mxu0
      %v1648 = vpop.f32.mrb[0].mxu0
      %v1649 = vadd.f32 0.0, %v1648
      %v1650 = vpop.f32.mrb[0].mxu0
      %1651 = vmatprep.mubr.bf16.mxu0 0
      %1652 = vmatmul.mubr.bf16.gmra.mrb[0].mxu0 %v1566
      %v1653 = vpop.f32.mrb[0].mxu0
      %v1654 = vadd.f32 0.0, %v1653
      %v1655 = vpop.f32.mrb[0].mxu0
      %v1656 = vpop.f32.mrb[0].mxu0
      %v1657 = vadd.f32 0.0, %v1656
      %v1658 = vpop.f32.mrb[0].mxu0
      %1659 = vmatprep.mubr.bf16.mxu0 0
      %1660 = vmatmul.mubr.bf16.gmra.mrb[0].mxu0 %v1569
      %v1661 = vpop.f32.mrb[0].mxu0
      %v1662 = vadd.f32 0.0, %v1661
      %v1663 = vpop.f32.mrb[0].mxu0
      %v1664 = vpop.f32.mrb[0].mxu0
      %v1665 = vadd.f32 0.0, %v1664
      %v1666 = vpop.f32.mrb[0].mxu0
      %1667 = vdwg.mxu0
      %v1670 = vunpack.c.l.b16 %v1539
      %v1671 = vunpack.c.l.b16 %v1540
      %v1672 = vpack.c.b16 %v1671, %v1670
      %v1675 = vsel %vm489, %v1529, 0
      %v1678 = vsel %vm489, %v1530, 0
      %v1681 = vsel %vm489, %v1531, 0
      %v1684 = vsel %vm489, %v1532, 0
      %v1687 = vsel %vm489, %v1533, 0
      %v1690 = vsel %vm489, %v1534, 0
      %v1693 = vsel %vm489, %v1535, 0
      %v1696 = vsel %vm489, %v1536, 0
      %1698 = vmatprep.subr.bf16.mxu0 0
      %1699 = vmatpush1.bf16.msra.mxu0 %v1672
      %1700 = vmatprep.subr.bf16.mxu0 0
      %1701 = vmatpush1.bf16.msra.mxu0 0
      %1702 = vmatprep.subr.bf16.mxu0 0
      %1703 = vmatpush1.bf16.msra.mxu0 0
      %1704 = vmatprep.subr.bf16.mxu0 0
      %1705 = vmatpush1.bf16.msra.mxu0 0
      %1706 = vmatprep.subr.bf16.mxu0 0
      %1707 = vmatpush1.bf16.msra.mxu0 0
      %1708 = vmatprep.subr.bf16.mxu0 0
      %1709 = vmatpush1.bf16.msra.mxu0 0
      %1710 = vmatprep.subr.bf16.mxu0 0
      %1711 = vmatpush1.bf16.msra.mxu0 0
      %1712 = vmatprep.subr.bf16.mxu0 0
      %1713 = vmatpush1.bf16.msra.mxu0 0
      %1714 = vmatprep.subr.bf16.mxu0 0
      %1715 = vmatpush1.bf16.msra.mxu0 0
      %1716 = vmatprep.subr.bf16.mxu0 0
      %1717 = vmatpush1.bf16.msra.mxu0 0
      %1718 = vmatprep.subr.bf16.mxu0 0
      %1719 = vmatpush1.bf16.msra.mxu0 0
      %1720 = vmatprep.subr.bf16.mxu0 0
      %1721 = vmatpush1.bf16.msra.mxu0 0
      %1722 = vmatprep.subr.bf16.mxu0 0
      %1723 = vmatpush1.bf16.msra.mxu0 0
      %1724 = vmatprep.subr.bf16.mxu0 0
      %1725 = vmatpush1.bf16.msra.mxu0 0
      %1726 = vmatprep.subr.bf16.mxu0 0
      %1727 = vmatpush1.bf16.msra.mxu0 0
      %1728 = vmatprep.subr.bf16.mxu0 0
      %1729 = vmatpush1.bf16.msra.mxu0 0
      %1730 = vmatprep.mubr.bf16.mxu0 0
      %1731 = vmatmul.mubr.bf16.gmra.mrb[0].mxu0 %v1675
      %v1732 = vpop.f32.mrb[0].mxu0
      %v1733 = vadd.f32 0.0, %v1732
      %v1734 = vpop.f32.mrb[0].mxu0
      %v1735 = vpop.f32.mrb[0].mxu0
      %v1736 = vadd.f32 0.0, %v1735
      %v1737 = vpop.f32.mrb[0].mxu0
      %1738 = vmatprep.mubr.bf16.mxu0 0
      %1739 = vmatmul.mubr.bf16.gmra.mrb[0].mxu0 %v1678
      %v1740 = vpop.f32.mrb[0].mxu0
      %v1741 = vadd.f32 0.0, %v1740
      %v1742 = vpop.f32.mrb[0].mxu0
      %v1743 = vpop.f32.mrb[0].mxu0
      %v1744 = vadd.f32 0.0, %v1743
      %v1745 = vpop.f32.mrb[0].mxu0
      %1746 = vmatprep.mubr.bf16.mxu0 0
      %1747 = vmatmul.mubr.bf16.gmra.mrb[0].mxu0 %v1681
      %v1748 = vpop.f32.mrb[0].mxu0
      %v1749 = vadd.f32 0.0, %v1748
      %v1750 = vpop.f32.mrb[0].mxu0
      %v1751 = vpop.f32.mrb[0].mxu0
      %v1752 = vadd.f32 0.0, %v1751
      %v1753 = vpop.f32.mrb[0].mxu0
      %1754 = vmatprep.mubr.bf16.mxu0 0
      %1755 = vmatmul.mubr.bf16.gmra.mrb[0].mxu0 %v1684
      %v1756 = vpop.f32.mrb[0].mxu0
      %v1757 = vadd.f32 0.0, %v1756
      %v1758 = vpop.f32.mrb[0].mxu0
      %v1759 = vpop.f32.mrb[0].mxu0
      %v1760 = vadd.f32 0.0, %v1759
      %v1761 = vpop.f32.mrb[0].mxu0
      %1762 = vmatprep.mubr.bf16.mxu0 0
      %1763 = vmatmul.mubr.bf16.gmra.mrb[0].mxu0 %v1687
      %v1764 = vpop.f32.mrb[0].mxu0
      %v1765 = vadd.f32 0.0, %v1764
      %v1766 = vpop.f32.mrb[0].mxu0
      %v1767 = vpop.f32.mrb[0].mxu0
      %v1768 = vadd.f32 0.0, %v1767
      %v1769 = vpop.f32.mrb[0].mxu0
      %1770 = vmatprep.mubr.bf16.mxu0 0
      %1771 = vmatmul.mubr.bf16.gmra.mrb[0].mxu0 %v1690
      %v1772 = vpop.f32.mrb[0].mxu0
      %v1773 = vadd.f32 0.0, %v1772
      %v1774 = vpop.f32.mrb[0].mxu0
      %v1775 = vpop.f32.mrb[0].mxu0
      %v1776 = vadd.f32 0.0, %v1775
      %v1777 = vpop.f32.mrb[0].mxu0
      %1778 = vmatprep.mubr.bf16.mxu0 0
      %1779 = vmatmul.mubr.bf16.gmra.mrb[0].mxu0 %v1693
      %v1780 = vpop.f32.mrb[0].mxu0
      %v1781 = vadd.f32 0.0, %v1780
      %v1782 = vpop.f32.mrb[0].mxu0
      %v1783 = vpop.f32.mrb[0].mxu0
      %v1784 = vadd.f32 0.0, %v1783
      %v1785 = vpop.f32.mrb[0].mxu0
      %1786 = vmatprep.mubr.bf16.mxu0 0
      %1787 = vmatmul.mubr.bf16.gmra.mrb[0].mxu0 %v1696
      %v1788 = vpop.f32.mrb[0].mxu0
      %v1789 = vadd.f32 0.0, %v1788
      %v1790 = vpop.f32.mrb[0].mxu0
      %v1791 = vpop.f32.mrb[0].mxu0
      %v1792 = vadd.f32 0.0, %v1791
      %v1793 = vpop.f32.mrb[0].mxu0
      %1794 = vdwg.mxu0
      %vm1795 = vcmask 261120
      %v1796 = vsel %vm1795, %v1606, 0.0
      %v1797 = vsel %vm1795, %v1733, 0.0
      %v1798 = vadd.f32 %v1796, %v1797
      %v1799 = vsel %vm1795, %v1609, 0.0
      %v1800 = vsel %vm1795, %v1736, 0.0
      %v1801 = vadd.f32 %v1799, %v1800
      %v1802 = vsel %vm1795, %v1614, 0.0
      %v1803 = vsel %vm1795, %v1741, 0.0
      %v1804 = vadd.f32 %v1802, %v1803
      %v1805 = vsel %vm1795, %v1617, 0.0
      %v1806 = vsel %vm1795, %v1744, 0.0
      %v1807 = vadd.f32 %v1805, %v1806
      %v1808 = vsel %vm1795, %v1622, 0.0
      %v1809 = vsel %vm1795, %v1749, 0.0
      %v1810 = vadd.f32 %v1808, %v1809
      %v1811 = vsel %vm1795, %v1625, 0.0
      %v1812 = vsel %vm1795, %v1752, 0.0
      %v1813 = vadd.f32 %v1811, %v1812
      %v1814 = vsel %vm1795, %v1630, 0.0
      %v1815 = vsel %vm1795, %v1757, 0.0
      %v1816 = vadd.f32 %v1814, %v1815
      %v1817 = vsel %vm1795, %v1633, 0.0
      %v1818 = vsel %vm1795, %v1760, 0.0
      %v1819 = vadd.f32 %v1817, %v1818
      %v1820 = vsel %vm1795, %v1638, 0.0
      %v1821 = vsel %vm1795, %v1765, 0.0
      %v1822 = vadd.f32 %v1820, %v1821
      %v1823 = vsel %vm1795, %v1641, 0.0
      %v1824 = vsel %vm1795, %v1768, 0.0
      %v1825 = vadd.f32 %v1823, %v1824
      %v1826 = vsel %vm1795, %v1646, 0.0
      %v1827 = vsel %vm1795, %v1773, 0.0
      %v1828 = vadd.f32 %v1826, %v1827
      %v1829 = vsel %vm1795, %v1649, 0.0
      %v1830 = vsel %vm1795, %v1776, 0.0
      %v1831 = vadd.f32 %v1829, %v1830
      %v1832 = vsel %vm1795, %v1654, 0.0
      %v1833 = vsel %vm1795, %v1781, 0.0
      %v1834 = vadd.f32 %v1832, %v1833
      %v1835 = vsel %vm1795, %v1657, 0.0
      %v1836 = vsel %vm1795, %v1784, 0.0
      %v1837 = vadd.f32 %v1835, %v1836
      %v1838 = vsel %vm1795, %v1662, 0.0
      %v1839 = vsel %vm1795, %v1789, 0.0
      %v1840 = vadd.f32 %v1838, %v1839
      %v1841 = vsel %vm1795, %v1665, 0.0
      %v1842 = vsel %vm1795, %v1792, 0.0
      %v1843 = vadd.f32 %v1841, %v1842
      %v1844 = vld [vmem:[%s5] sm:$0x1]
      %v1846 = vlaneseq
      %v1847 = vshrl.u32 %v1846, 7
      %v1848 = vsub.s32 0, %v1847
      %v1849 = vrot.slane %v1844, %v1848
      %v1851 = vadd.f32 %v1798, %v1849
      %v1852 = vadd.f32 %v1801, %v1849
      %v1853 = vadd.f32 %v1804, %v1849
      %v1854 = vadd.f32 %v1807, %v1849
      %v1855 = vadd.f32 %v1810, %v1849
      %v1856 = vadd.f32 %v1813, %v1849
      %v1857 = vadd.f32 %v1816, %v1849
      %v1858 = vadd.f32 %v1819, %v1849
      %v1859 = vadd.f32 %v1822, %v1849
      %v1860 = vadd.f32 %v1825, %v1849
      %v1861 = vadd.f32 %v1828, %v1849
      %v1862 = vadd.f32 %v1831, %v1849
      %v1863 = vadd.f32 %v1834, %v1849
      %v1864 = vadd.f32 %v1837, %v1849
      %v1865 = vadd.f32 %v1840, %v1849
      %v1866 = vadd.f32 %v1843, %v1849
      %v1867 = vld [vmem:[%s306] sm:$0xff]
      %v1868 = vld [vmem:[%s306 + $0x8] sm:$0xff]
      %v1869 = vld [vmem:[%s306 + $0x10] sm:$0xff]
      %v1870 = vld [vmem:[%s306 + $0x18] sm:$0xff]
      %v1871 = vld [vmem:[%s306 + $0x20] sm:$0xff]
      %v1872 = vld [vmem:[%s306 + $0x28] sm:$0xff]
      %v1873 = vld [vmem:[%s306 + $0x30] sm:$0xff]
      %v1874 = vld [vmem:[%s306 + $0x38] sm:$0xff]
      %v1875 = vld [vmem:[%s306 + $0x40] sm:$0xff]
      %v1876 = vld [vmem:[%s306 + $0x48] sm:$0xff]
      %v1877 = vld [vmem:[%s306 + $0x50] sm:$0xff]
      %v1878 = vld [vmem:[%s306 + $0x58] sm:$0xff]
      %v1879 = vld [vmem:[%s306 + $0x60] sm:$0xff]
      %v1880 = vld [vmem:[%s306 + $0x68] sm:$0xff]
      %v1881 = vld [vmem:[%s306 + $0x70] sm:$0xff]
      %v1882 = vld [vmem:[%s306 + $0x78] sm:$0xff]
      %v1883 = vadd.f32 %v1867, %v1851
      %v1884 = vadd.f32 %v1868, %v1852
      %v1885 = vadd.f32 %v1869, %v1853
      %v1886 = vadd.f32 %v1870, %v1854
      %v1887 = vadd.f32 %v1871, %v1855
      %v1888 = vadd.f32 %v1872, %v1856
      %v1889 = vadd.f32 %v1873, %v1857
      %v1890 = vadd.f32 %v1874, %v1858
      %v1891 = vadd.f32 %v1875, %v1859
      %v1892 = vadd.f32 %v1876, %v1860
      %v1893 = vadd.f32 %v1877, %v1861
      %v1894 = vadd.f32 %v1878, %v1862
      %v1895 = vadd.f32 %v1879, %v1863
      %v1896 = vadd.f32 %v1880, %v1864
      %v1897 = vadd.f32 %v1881, %v1865
      %v1898 = vadd.f32 %v1882, %v1866
      %1899 = vst.msk [vmem:[%s311] sm:$0xff] %vm1795, %v1883
      %1900 = vst.msk [vmem:[%s311 + $0x8] sm:$0xff] %vm1795, %v1884
      %1901 = vst.msk [vmem:[%s311 + $0x10] sm:$0xff] %vm1795, %v1885
      %1902 = vst.msk [vmem:[%s311 + $0x18] sm:$0xff] %vm1795, %v1886
      %1903 = vst.msk [vmem:[%s311 + $0x20] sm:$0xff] %vm1795, %v1887
      %1904 = vst.msk [vmem:[%s311 + $0x28] sm:$0xff] %vm1795, %v1888
      %1905 = vst.msk [vmem:[%s311 + $0x30] sm:$0xff] %vm1795, %v1889
      %1906 = vst.msk [vmem:[%s311 + $0x38] sm:$0xff] %vm1795, %v1890
      %1907 = vst.msk [vmem:[%s311 + $0x40] sm:$0xff] %vm1795, %v1891
      %1908 = vst.msk [vmem:[%s311 + $0x48] sm:$0xff] %vm1795, %v1892
      %1909 = vst.msk [vmem:[%s311 + $0x50] sm:$0xff] %vm1795, %v1893
      %1910 = vst.msk [vmem:[%s311 + $0x58] sm:$0xff] %vm1795, %v1894
      %1911 = vst.msk [vmem:[%s311 + $0x60] sm:$0xff] %vm1795, %v1895
      %1912 = vst.msk [vmem:[%s311 + $0x68] sm:$0xff] %vm1795, %v1896
      %1913 = vst.msk [vmem:[%s311 + $0x70] sm:$0xff] %vm1795, %v1897
      %1914 = vst.msk [vmem:[%s311 + $0x78] sm:$0xff] %vm1795, %v1898
      %p1915 = scmp.lt.s32.totalorder %s17, 1
      %s1916 = scalar_select %p1915, %s17, 1
      %s1917 = smul.addr %s1916, 16
      %s1918 = smul.addr %s1917, 8
      %s1919 = scalar_lea.vmem %s6, %s1918
      // Predicated region
      $region45: #{vit_forward.10} parent=43 // pred_check
        %p1920 = pneg %p181
      $region46: #{vit_forward.10} parent=43 // pred_check_branch
        %1922 = sbr.rel (%p1920) target = $region48
      $region47: #{vit_forward.10} parent=43 // pred_region
        _
      $region48: #{vit_forward.10} parent=43 // pred_fallthru
        _
    $region44: #{vit_forward.10} parent=5 // pred_fallthru
      _
    %p1923 = scmp.le.s32.totalorder 2, %s12
    // Predicated region
    $region49: #{vit_forward.10} parent=5 // pred_check
      %p1924 = pneg %p1923
    $region50: #{vit_forward.10} parent=5 // pred_check_branch
      %1926 = sbr.rel (%p1924) target = $region52
    $region51: #{vit_forward.10} parent=5 // pred_region
      %s1927 = ssub.s32 %s12, 2
      // Predicated region
      $region53: #{vit_forward.10} parent=51 // pred_check
        %p1928 = pneg %p187
      $region54: #{vit_forward.10} parent=51 // pred_check_branch
        %1930 = sbr.rel (%p1928) target = $region56
      $region55: #{vit_forward.10} parent=51 // pred_region
        %p1931 = scmp.lt.s32.totalorder %s18, 1
        %s1932 = scalar_select %p1931, %s18, 1
        %s1933 = smul.addr %s1932, 16
        %s1934 = smul.addr %s1933, 8
        %s1935 = scalar_lea.vmem %s6, %s1934
      $region56: #{vit_forward.10} parent=51 // pred_fallthru
        _
    $region52: #{vit_forward.10} parent=5 // pred_fallthru
      _
  $region6: #{vit_forward.10} parent=0 // loop_footer
    %s16 = sadd.s32 1, %s12
  $region7: #{vit_forward.10} parent=0 // loop_footer_branch
    %11 = sbr.rel target = $region3
  $region8: #{vit_forward.10} parent=0 // loop_exit
    _

// kernel: vit_forward.11
$region0: #{vit_forward.11}
  #allocation0 [shape = 'u32[]', space=smem, size = 0x4, offset = 0x4, fixed_abs, tag = 'smem constant byte address 0x4 - core index']
  #allocation1 [shape = 'u32[144,128]{1,0:T(1,128)}', space=vmem, size = 0x12000, scoped, tag = 'internal scratch']
  %s0 = inlined_call_operand.vmem [shape: f32[256,32], index: 0, kind: input, shape index: {}]
  %s1 = inlined_call_operand.vmem [shape: f32[1,32], index: 1, kind: input, shape index: {}]
  %s2 = inlined_call_operand.vmem [shape: f32[1,32], index: 2, kind: input, shape index: {}]
  %s3 = inlined_call_operand.vmem [shape: bf16[32,64], index: 3, kind: input, shape index: {}]
  %s4 = inlined_call_operand.vmem [shape: f32[1,64], index: 4, kind: input, shape index: {}]
  %s5 = inlined_call_operand.vmem [shape: bf16[64,32], index: 5, kind: input, shape index: {}]
  %s6 = inlined_call_operand.vmem [shape: f32[1,32], index: 6, kind: input, shape index: {}]
  %s7 = inlined_call_operand.vmem [shape: f32[256,32], index: 7, kind: output, shape index: {}]
  %s8 = sld [smem:[#allocation0]]
  $region61: #{vit_forward.11} parent=0
    _
  %s10 = ssub.s32 1, %s8
  %s11 = scalar_select 0, %s10, %s8
  loop: start=0, step=1, limit=4
  $region2: #{vit_forward.11} parent=0 // loop_pre_header
    _
  $region3: #{vit_forward.11} parent=0 // loop_header
    %s13 = sphi 0, %s17
    %p14 = scmp.ge.s32.totalorder %s13, 4
    %s23 = sphi 0, %s25
    %s26 = sphi 0, %s23
    %s27 = sphi 0, %s26
    %s43 = sphi 0, %s27
    %s47 = sphi 0, %s47
    %s49 = sphi 0, %s47
    %s50 = sphi 0, %s49
    %s64 = sphi 0, %s50
    %s68 = sphi 0, %s68
    %s70 = sphi 0, %s68
    %s71 = sphi 0, %s70
    %s85 = sphi 0, %s71
    %s89 = sphi 0, %s89
    %s91 = sphi 0, %s89
    %s92 = sphi 0, %s91
    %s106 = sphi 0, %s92
    %s110 = sphi 0, %s110
    %s112 = sphi 0, %s110
    %s113 = sphi 0, %s112
    %s127 = sphi 0, %s113
    %s131 = sphi 0, %s131
    %s133 = sphi 0, %s131
    %s134 = sphi 0, %s133
    %s148 = sphi 0, %s134
    %s152 = sphi 0, %s152
    %s154 = sphi 0, %s152
    %s155 = sphi 0, %s154
    %s169 = sphi 0, %s155
    %s175 = sphi 0, %s177
    %s178 = sphi 0, %s175
    %s179 = sphi 0, %s178
    %s195 = sphi 0, %s179
  $region4: #{vit_forward.11} parent=0 // loop_header_branch
    %16 = sbr.rel (%p14) target = $region8
  $region5: #{vit_forward.11} parent=0 // loop_body
    %s18 = ssub.s32 %s13, 1
    %s19 = ssub.s32 %s13, 2
    %s20 = sadd.s32 %s13, 1
    %s21 = ssub.s32 %s13, %s20
    %p22 = scmp.eq.s32.totalorder %s21, 0
    %s24 = sadd.s32 %s23, 1
    %s25 = scalar_select %p22, %s23, %s24
    %p28 = pneg %p22
    %p29 = scmp.eq.s32.totalorder %s13, 1
    %p30 = por %p28, %p29
    %p31 = scmp.ne.s32.totalorder %s23, %s26
    %p32 = scmp.eq.s32.totalorder %s13, 0
    %p33 = por %p31, %p32
    %p34 = scmp.ne.s32.totalorder %s23, %s26
    %p35 = scmp.eq.s32.totalorder %s18, 1
    %p36 = por %p34, %p35
    %p37 = scmp.ne.s32.totalorder %s26, %s27
    %p38 = scmp.eq.s32.totalorder %s18, 0
    %p39 = por %p37, %p38
    %p40 = scmp.ne.s32.totalorder %s26, %s27
    %p41 = scmp.eq.s32.totalorder %s19, 1
    %p42 = por %p40, %p41
    %p44 = scmp.ne.s32.totalorder %s27, %s43
    %p45 = scmp.eq.s32.totalorder %s19, 0
    %p46 = por %p44, %p45
    %s48 = sadd.s32 %s47, 1
    %p51 = scmp.eq.s32.totalorder %s13, 1
    %p52 = scmp.ne.s32.totalorder %s47, %s49
    %p53 = scmp.eq.s32.totalorder %s13, 0
    %p54 = por %p52, %p53
    %p55 = scmp.ne.s32.totalorder %s47, %s49
    %p56 = scmp.eq.s32.totalorder %s18, 1
    %p57 = por %p55, %p56
    %p58 = scmp.ne.s32.totalorder %s49, %s50
    %p59 = scmp.eq.s32.totalorder %s18, 0
    %p60 = por %p58, %p59
    %p61 = scmp.ne.s32.totalorder %s49, %s50
    %p62 = scmp.eq.s32.totalorder %s19, 1
    %p63 = por %p61, %p62
    %p65 = scmp.ne.s32.totalorder %s50, %s64
    %p66 = scmp.eq.s32.totalorder %s19, 0
    %p67 = por %p65, %p66
    %s69 = sadd.s32 %s68, 1
    %p72 = scmp.eq.s32.totalorder %s13, 1
    %p73 = scmp.ne.s32.totalorder %s68, %s70
    %p74 = scmp.eq.s32.totalorder %s13, 0
    %p75 = por %p73, %p74
    %p76 = scmp.ne.s32.totalorder %s68, %s70
    %p77 = scmp.eq.s32.totalorder %s18, 1
    %p78 = por %p76, %p77
    %p79 = scmp.ne.s32.totalorder %s70, %s71
    %p80 = scmp.eq.s32.totalorder %s18, 0
    %p81 = por %p79, %p80
    %p82 = scmp.ne.s32.totalorder %s70, %s71
    %p83 = scmp.eq.s32.totalorder %s19, 1
    %p84 = por %p82, %p83
    %p86 = scmp.ne.s32.totalorder %s71, %s85
    %p87 = scmp.eq.s32.totalorder %s19, 0
    %p88 = por %p86, %p87
    %s90 = sadd.s32 %s89, 1
    %p93 = scmp.eq.s32.totalorder %s13, 1
    %p94 = scmp.ne.s32.totalorder %s89, %s91
    %p95 = scmp.eq.s32.totalorder %s13, 0
    %p96 = por %p94, %p95
    %p97 = scmp.ne.s32.totalorder %s89, %s91
    %p98 = scmp.eq.s32.totalorder %s18, 1
    %p99 = por %p97, %p98
    %p100 = scmp.ne.s32.totalorder %s91, %s92
    %p101 = scmp.eq.s32.totalorder %s18, 0
    %p102 = por %p100, %p101
    %p103 = scmp.ne.s32.totalorder %s91, %s92
    %p104 = scmp.eq.s32.totalorder %s19, 1
    %p105 = por %p103, %p104
    %p107 = scmp.ne.s32.totalorder %s92, %s106
    %p108 = scmp.eq.s32.totalorder %s19, 0
    %p109 = por %p107, %p108
    %s111 = sadd.s32 %s110, 1
    %p114 = scmp.eq.s32.totalorder %s13, 1
    %p115 = scmp.ne.s32.totalorder %s110, %s112
    %p116 = scmp.eq.s32.totalorder %s13, 0
    %p117 = por %p115, %p116
    %p118 = scmp.ne.s32.totalorder %s110, %s112
    %p119 = scmp.eq.s32.totalorder %s18, 1
    %p120 = por %p118, %p119
    %p121 = scmp.ne.s32.totalorder %s112, %s113
    %p122 = scmp.eq.s32.totalorder %s18, 0
    %p123 = por %p121, %p122
    %p124 = scmp.ne.s32.totalorder %s112, %s113
    %p125 = scmp.eq.s32.totalorder %s19, 1
    %p126 = por %p124, %p125
    %p128 = scmp.ne.s32.totalorder %s113, %s127
    %p129 = scmp.eq.s32.totalorder %s19, 0
    %p130 = por %p128, %p129
    %s132 = sadd.s32 %s131, 1
    %p135 = scmp.eq.s32.totalorder %s13, 1
    %p136 = scmp.ne.s32.totalorder %s131, %s133
    %p137 = scmp.eq.s32.totalorder %s13, 0
    %p138 = por %p136, %p137
    %p139 = scmp.ne.s32.totalorder %s131, %s133
    %p140 = scmp.eq.s32.totalorder %s18, 1
    %p141 = por %p139, %p140
    %p142 = scmp.ne.s32.totalorder %s133, %s134
    %p143 = scmp.eq.s32.totalorder %s18, 0
    %p144 = por %p142, %p143
    %p145 = scmp.ne.s32.totalorder %s133, %s134
    %p146 = scmp.eq.s32.totalorder %s19, 1
    %p147 = por %p145, %p146
    %p149 = scmp.ne.s32.totalorder %s134, %s148
    %p150 = scmp.eq.s32.totalorder %s19, 0
    %p151 = por %p149, %p150
    %s153 = sadd.s32 %s152, 1
    %p156 = scmp.eq.s32.totalorder %s13, 1
    %p157 = scmp.ne.s32.totalorder %s152, %s154
    %p158 = scmp.eq.s32.totalorder %s13, 0
    %p159 = por %p157, %p158
    %p160 = scmp.ne.s32.totalorder %s152, %s154
    %p161 = scmp.eq.s32.totalorder %s18, 1
    %p162 = por %p160, %p161
    %p163 = scmp.ne.s32.totalorder %s154, %s155
    %p164 = scmp.eq.s32.totalorder %s18, 0
    %p165 = por %p163, %p164
    %p166 = scmp.ne.s32.totalorder %s154, %s155
    %p167 = scmp.eq.s32.totalorder %s19, 1
    %p168 = por %p166, %p167
    %p170 = scmp.ne.s32.totalorder %s155, %s169
    %p171 = scmp.eq.s32.totalorder %s19, 0
    %p172 = por %p170, %p171
    %s173 = ssub.s32 %s13, %s20
    %p174 = scmp.eq.s32.totalorder %s173, 0
    %s176 = sadd.s32 %s175, 1
    %s177 = scalar_select %p174, %s175, %s176
    %p180 = pneg %p174
    %p181 = scmp.eq.s32.totalorder %s13, 1
    %p182 = por %p180, %p181
    %p183 = scmp.ne.s32.totalorder %s175, %s178
    %p184 = scmp.eq.s32.totalorder %s13, 0
    %p185 = por %p183, %p184
    %p186 = scmp.ne.s32.totalorder %s175, %s178
    %p187 = scmp.eq.s32.totalorder %s18, 1
    %p188 = por %p186, %p187
    %p189 = scmp.ne.s32.totalorder %s178, %s179
    %p190 = scmp.eq.s32.totalorder %s18, 0
    %p191 = por %p189, %p190
    %p192 = scmp.ne.s32.totalorder %s178, %s179
    %p193 = scmp.eq.s32.totalorder %s19, 1
    %p194 = por %p192, %p193
    %p196 = scmp.ne.s32.totalorder %s179, %s195
    %p197 = scmp.eq.s32.totalorder %s19, 0
    %p198 = por %p196, %p197
    %p199 = scmp.le.s32.totalorder 1, %s13
    %p200 = scmp.lt.s32.totalorder %s13, 3
    %p201 = pnand %p199, %p200
    %p202 = pneg %p201
    // Predicated region
    $region9: #{vit_forward.11} parent=5 // pred_check
      _
    $region10: #{vit_forward.11} parent=5 // pred_check_branch
      %204 = sbr.rel (%p201) target = $region12
    $region11: #{vit_forward.11} parent=5 // pred_region
      %s205 = ssub.s32 %s13, 1
      // Predicated region
      $region13: #{vit_forward.11} parent=11 // pred_check
        %p206 = pneg %p60
      $region14: #{vit_forward.11} parent=11 // pred_check_branch
        %208 = sbr.rel (%p206) target = $region16
      $region15: #{vit_forward.11} parent=11 // pred_region
        _
      $region16: #{vit_forward.11} parent=11 // pred_fallthru
        _
      // Predicated region
      $region17: #{vit_forward.11} parent=11 // pred_check
        %p209 = pneg %p81
      $region18: #{vit_forward.11} parent=11 // pred_check_branch
        %211 = sbr.rel (%p209) target = $region20
      $region19: #{vit_forward.11} parent=11 // pred_region
        _
      $region20: #{vit_forward.11} parent=11 // pred_fallthru
        _
      // Predicated region
      $region21: #{vit_forward.11} parent=11 // pred_check
        %p212 = pneg %p102
      $region22: #{vit_forward.11} parent=11 // pred_check_branch
        %214 = sbr.rel (%p212) target = $region24
      $region23: #{vit_forward.11} parent=11 // pred_region
        _
      $region24: #{vit_forward.11} parent=11 // pred_fallthru
        _
      // Predicated region
      $region25: #{vit_forward.11} parent=11 // pred_check
        %p215 = pneg %p123
      $region26: #{vit_forward.11} parent=11 // pred_check_branch
        %217 = sbr.rel (%p215) target = $region28
      $region27: #{vit_forward.11} parent=11 // pred_region
        _
      $region28: #{vit_forward.11} parent=11 // pred_fallthru
        _
      // Predicated region
      $region29: #{vit_forward.11} parent=11 // pred_check
        %p218 = pneg %p144
      $region30: #{vit_forward.11} parent=11 // pred_check_branch
        %220 = sbr.rel (%p218) target = $region32
      $region31: #{vit_forward.11} parent=11 // pred_region
        _
      $region32: #{vit_forward.11} parent=11 // pred_fallthru
        _
      // Predicated region
      $region33: #{vit_forward.11} parent=11 // pred_check
        %p221 = pneg %p165
      $region34: #{vit_forward.11} parent=11 // pred_check_branch
        %223 = sbr.rel (%p221) target = $region36
      $region35: #{vit_forward.11} parent=11 // pred_region
        _
      $region36: #{vit_forward.11} parent=11 // pred_fallthru
        _
    $region12: #{vit_forward.11} parent=5 // pred_fallthru
      _
    %p224 = scmp.lt.s32.totalorder %s13, 2
    // Predicated region
    $region37: #{vit_forward.11} parent=5 // pred_check
      %p225 = pneg %p224
    $region38: #{vit_forward.11} parent=5 // pred_check_branch
      %227 = sbr.rel (%p225) target = $region40
    $region39: #{vit_forward.11} parent=5 // pred_region
      // Predicated region
      $region41: #{vit_forward.11} parent=39 // pred_check
        %p228 = pneg %p33
      $region42: #{vit_forward.11} parent=39 // pred_check_branch
        %230 = sbr.rel (%p228) target = $region44
      $region43: #{vit_forward.11} parent=39 // pred_region
        %s231 = smul.u32 16, %s13
        %p232 = scmp.lt.s32.totalorder %s231, 31
        %s233 = scalar_select %p232, %s231, 31
        %s234 = smul.addr %s233, 8
        %s235 = scalar_lea.vmem %s0, %s234
        %s236 = smul.u32 16, %s13
      $region44: #{vit_forward.11} parent=39 // pred_fallthru
        _
    $region40: #{vit_forward.11} parent=5 // pred_fallthru
      _
    %p237 = scmp.le.s32.totalorder 1, %s13
    %p238 = scmp.lt.s32.totalorder %s13, 3
    %p239 = pnand %p237, %p238
    %p240 = pneg %p239
    // Predicated region
    $region45: #{vit_forward.11} parent=5 // pred_check
      _
    $region46: #{vit_forward.11} parent=5 // pred_check_branch
      %242 = sbr.rel (%p239) target = $region48
    $region47: #{vit_forward.11} parent=5 // pred_region
      %s243 = ssub.s32 %s13, 1
      %s244 = smul.u32 16, %s18
      %p245 = scmp.lt.s32.totalorder %s244, 31
      %s246 = scalar_select %p245, %s244, 31
      %s247 = smul.addr %s246, 8
      %s248 = scalar_lea.vmem %s0, %s247
      %p249 = pneg %p39
      %p250 = pneg %p36
      %p251 = pneg %p60
      %p252 = pneg %p57
      %p253 = pneg %p81
      %p254 = pneg %p78
      %p255 = pneg %p102
      %p256 = pneg %p99
      %p257 = pneg %p123
      %p258 = pneg %p120
      %p259 = pneg %p144
      %p260 = pneg %p141
      %p261 = pneg %p165
      %p262 = pneg %p162
      %p263 = pneg %p191
      %p264 = pneg %p188
      %s265 = smul.u32 16, %s18
      %p266 = scmp.lt.s32.totalorder %s265, 31
      %s267 = scalar_select %p266, %s265, 31
      %s268 = smul.addr %s267, 8
      %s269 = scalar_lea.vmem %s7, %s268
      %s270 = smul.u32 16, %s18
      %p271 = scmp.lt.s32.totalorder %s270, 31
      %s272 = scalar_select %p271, %s270, 31
      %s273 = smul.addr %s272, 8
      %s274 = scalar_lea.vmem %s0, %s273
      %s275 = smul.u32 16, %s18
      %s276 = smul.u32 16, %s18
      %p277 = scmp.lt.s32.totalorder %s276, 31
      %s278 = scalar_select %p277, %s276, 31
      %s279 = smul.addr %s278, 8
      %s280 = scalar_lea.vmem %s7, %s279
      %s281 = smul.u32 16, %s18
      %v283 = vld [vmem:[%s274] sm:$0xff]
      %v284 = vld [vmem:[%s274 + $0x8] sm:$0xff]
      %v285 = vld [vmem:[%s274 + $0x10] sm:$0xff]
      %v286 = vld [vmem:[%s274 + $0x18] sm:$0xff]
      %v287 = vld [vmem:[%s274 + $0x20] sm:$0xff]
      %v288 = vld [vmem:[%s274 + $0x28] sm:$0xff]
      %v289 = vld [vmem:[%s274 + $0x30] sm:$0xff]
      %v290 = vld [vmem:[%s274 + $0x38] sm:$0xff]
      %v291 = vld [vmem:[%s274 + $0x40] sm:$0xff]
      %v292 = vld [vmem:[%s274 + $0x48] sm:$0xff]
      %v293 = vld [vmem:[%s274 + $0x50] sm:$0xff]
      %v294 = vld [vmem:[%s274 + $0x58] sm:$0xff]
      %v295 = vld [vmem:[%s274 + $0x60] sm:$0xff]
      %v296 = vld [vmem:[%s274 + $0x68] sm:$0xff]
      %v297 = vld [vmem:[%s274 + $0x70] sm:$0xff]
      %v298 = vld [vmem:[%s274 + $0x78] sm:$0xff]
      %v299 = vld [vmem:[%s1] sm:$0x1]
      %v300 = vld [vmem:[%s2] sm:$0x1]
      %vm301 = vcmask 261120
      %v302 = vsel %vm301, %v283, 0.0
      %303 = vadd.xlane.f32.xlu0 %v302
      %v304 = vpop.xlane.xlu0 %303
      %v305 = vsel %vm301, %v284, 0.0
      %306 = vadd.xlane.f32.xlu0 %v305
      %v307 = vpop.xlane.xlu0 %306
      %v308 = vsel %vm301, %v285, 0.0
      %309 = vadd.xlane.f32.xlu0 %v308
      %v310 = vpop.xlane.xlu0 %309
      %v311 = vsel %vm301, %v286, 0.0
      %312 = vadd.xlane.f32.xlu0 %v311
      %v313 = vpop.xlane.xlu0 %312
      %v314 = vsel %vm301, %v287, 0.0
      %315 = vadd.xlane.f32.xlu0 %v314
      %v316 = vpop.xlane.xlu0 %315
      %v317 = vsel %vm301, %v288, 0.0
      %318 = vadd.xlane.f32.xlu0 %v317
      %v319 = vpop.xlane.xlu0 %318
      %v320 = vsel %vm301, %v289, 0.0
      %321 = vadd.xlane.f32.xlu0 %v320
      %v322 = vpop.xlane.xlu0 %321
      %v323 = vsel %vm301, %v290, 0.0
      %324 = vadd.xlane.f32.xlu0 %v323
      %v325 = vpop.xlane.xlu0 %324
      %v326 = vsel %vm301, %v291, 0.0
      %327 = vadd.xlane.f32.xlu0 %v326
      %v328 = vpop.xlane.xlu0 %327
      %v329 = vsel %vm301, %v292, 0.0
      %330 = vadd.xlane.f32.xlu0 %v329
      %v331 = vpop.xlane.xlu0 %330
      %v332 = vsel %vm301, %v293, 0.0
      %333 = vadd.xlane.f32.xlu0 %v332
      %v334 = vpop.xlane.xlu0 %333
      %v335 = vsel %vm301, %v294, 0.0
      %336 = vadd.xlane.f32.xlu0 %v335
      %v337 = vpop.xlane.xlu0 %336
      %v338 = vsel %vm301, %v295, 0.0
      %339 = vadd.xlane.f32.xlu0 %v338
      %v340 = vpop.xlane.xlu0 %339
      %v341 = vsel %vm301, %v296, 0.0
      %342 = vadd.xlane.f32.xlu0 %v341
      %v343 = vpop.xlane.xlu0 %342
      %v344 = vsel %vm301, %v297, 0.0
      %345 = vadd.xlane.f32.xlu0 %v344
      %v346 = vpop.xlane.xlu0 %345
      %v347 = vsel %vm301, %v298, 0.0
      %348 = vadd.xlane.f32.xlu0 %v347
      %v349 = vpop.xlane.xlu0 %348
      %v350 = vrcp.pop 32.0
      %v351 = vmul.f32 %v304, %v350
      %v352 = vmul.f32 %v307, %v350
      %v353 = vmul.f32 %v310, %v350
      %v354 = vmul.f32 %v313, %v350
      %v355 = vmul.f32 %v316, %v350
      %v356 = vmul.f32 %v319, %v350
      %v357 = vmul.f32 %v322, %v350
      %v358 = vmul.f32 %v325, %v350
      %v359 = vmul.f32 %v328, %v350
      %v360 = vmul.f32 %v331, %v350
      %v361 = vmul.f32 %v334, %v350
      %v362 = vmul.f32 %v337, %v350
      %v363 = vmul.f32 %v340, %v350
      %v364 = vmul.f32 %v343, %v350
      %v365 = vmul.f32 %v346, %v350
      %v366 = vmul.f32 %v349, %v350
      %v367 = vsub.f32 %v283, %v351
      %v368 = vsub.f32 %v284, %v352
      %v369 = vsub.f32 %v285, %v353
      %v370 = vsub.f32 %v286, %v354
      %v371 = vsub.f32 %v287, %v355
      %v372 = vsub.f32 %v288, %v356
      %v373 = vsub.f32 %v289, %v357
      %v374 = vsub.f32 %v290, %v358
      %v375 = vsub.f32 %v291, %v359
      %v376 = vsub.f32 %v292, %v360
      %v377 = vsub.f32 %v293, %v361
      %v378 = vsub.f32 %v294, %v362
      %v379 = vsub.f32 %v295, %v363
      %v380 = vsub.f32 %v296, %v364
      %v381 = vsub.f32 %v297, %v365
      %v382 = vsub.f32 %v298, %v366
      %v383 = vmul.f32 %v367, %v367
      %v384 = vmul.f32 %v368, %v368
      %v385 = vmul.f32 %v369, %v369
      %v386 = vmul.f32 %v370, %v370
      %v387 = vmul.f32 %v371, %v371
      %v388 = vmul.f32 %v372, %v372
      %v389 = vmul.f32 %v373, %v373
      %v390 = vmul.f32 %v374, %v374
      %v391 = vmul.f32 %v375, %v375
      %v392 = vmul.f32 %v376, %v376
      %v393 = vmul.f32 %v377, %v377
      %v394 = vmul.f32 %v378, %v378
      %v395 = vmul.f32 %v379, %v379
      %v396 = vmul.f32 %v380, %v380
      %v397 = vmul.f32 %v381, %v381
      %v398 = vmul.f32 %v382, %v382
      %v399 = vsel %vm301, %v383, 0.0
      %400 = vadd.xlane.f32.xlu0 %v399
      %v401 = vpop.xlane.xlu0 %400
      %v402 = vsel %vm301, %v384, 0.0
      %403 = vadd.xlane.f32.xlu0 %v402
      %v404 = vpop.xlane.xlu0 %403
      %v405 = vsel %vm301, %v385, 0.0
      %406 = vadd.xlane.f32.xlu0 %v405
      %v407 = vpop.xlane.xlu0 %406
      %v408 = vsel %vm301, %v386, 0.0
      %409 = vadd.xlane.f32.xlu0 %v408
      %v410 = vpop.xlane.xlu0 %409
      %v411 = vsel %vm301, %v387, 0.0
      %412 = vadd.xlane.f32.xlu0 %v411
      %v413 = vpop.xlane.xlu0 %412
      %v414 = vsel %vm301, %v388, 0.0
      %415 = vadd.xlane.f32.xlu0 %v414
      %v416 = vpop.xlane.xlu0 %415
      %v417 = vsel %vm301, %v389, 0.0
      %418 = vadd.xlane.f32.xlu0 %v417
      %v419 = vpop.xlane.xlu0 %418
      %v420 = vsel %vm301, %v390, 0.0
      %421 = vadd.xlane.f32.xlu0 %v420
      %v422 = vpop.xlane.xlu0 %421
      %v423 = vsel %vm301, %v391, 0.0
      %424 = vadd.xlane.f32.xlu0 %v423
      %v425 = vpop.xlane.xlu0 %424
      %v426 = vsel %vm301, %v392, 0.0
      %427 = vadd.xlane.f32.xlu0 %v426
      %v428 = vpop.xlane.xlu0 %427
      %v429 = vsel %vm301, %v393, 0.0
      %430 = vadd.xlane.f32.xlu0 %v429
      %v431 = vpop.xlane.xlu0 %430
      %v432 = vsel %vm301, %v394, 0.0
      %433 = vadd.xlane.f32.xlu0 %v432
      %v434 = vpop.xlane.xlu0 %433
      %v435 = vsel %vm301, %v395, 0.0
      %436 = vadd.xlane.f32.xlu0 %v435
      %v437 = vpop.xlane.xlu0 %436
      %v438 = vsel %vm301, %v396, 0.0
      %439 = vadd.xlane.f32.xlu0 %v438
      %v440 = vpop.xlane.xlu0 %439
      %v441 = vsel %vm301, %v397, 0.0
      %442 = vadd.xlane.f32.xlu0 %v441
      %v443 = vpop.xlane.xlu0 %442
      %v444 = vsel %vm301, %v398, 0.0
      %445 = vadd.xlane.f32.xlu0 %v444
      %v446 = vpop.xlane.xlu0 %445
      %v447 = vmul.f32 %v401, %v350
      %v448 = vmul.f32 %v404, %v350
      %v449 = vmul.f32 %v407, %v350
      %v450 = vmul.f32 %v410, %v350
      %v451 = vmul.f32 %v413, %v350
      %v452 = vmul.f32 %v416, %v350
      %v453 = vmul.f32 %v419, %v350
      %v454 = vmul.f32 %v422, %v350
      %v455 = vmul.f32 %v425, %v350
      %v456 = vmul.f32 %v428, %v350
      %v457 = vmul.f32 %v431, %v350
      %v458 = vmul.f32 %v434, %v350
      %v459 = vmul.f32 %v437, %v350
      %v460 = vmul.f32 %v440, %v350
      %v461 = vmul.f32 %v443, %v350
      %v462 = vmul.f32 %v446, %v350
      %v463 = vadd.f32 %v447, 1e-06
      %v464 = vadd.f32 %v448, 1e-06
      %v465 = vadd.f32 %v449, 1e-06
      %v466 = vadd.f32 %v450, 1e-06
      %v467 = vadd.f32 %v451, 1e-06
      %v468 = vadd.f32 %v452, 1e-06
      %v469 = vadd.f32 %v453, 1e-06
      %v470 = vadd.f32 %v454, 1e-06
      %v471 = vadd.f32 %v455, 1e-06
      %v472 = vadd.f32 %v456, 1e-06
      %v473 = vadd.f32 %v457, 1e-06
      %v474 = vadd.f32 %v458, 1e-06
      %v475 = vadd.f32 %v459, 1e-06
      %v476 = vadd.f32 %v460, 1e-06
      %v477 = vadd.f32 %v461, 1e-06
      %v478 = vadd.f32 %v462, 1e-06
      %v479 = vrsqrt.pop %v463
      %v480 = vrsqrt.pop %v464
      %v481 = vrsqrt.pop %v465
      %v482 = vrsqrt.pop %v466
      %v483 = vrsqrt.pop %v467
      %v484 = vrsqrt.pop %v468
      %v485 = vrsqrt.pop %v469
      %v486 = vrsqrt.pop %v470
      %v487 = vrsqrt.pop %v471
      %v488 = vrsqrt.pop %v472
      %v489 = vrsqrt.pop %v473
      %v490 = vrsqrt.pop %v474
      %v491 = vrsqrt.pop %v475
      %v492 = vrsqrt.pop %v476
      %v493 = vrsqrt.pop %v477
      %v494 = vrsqrt.pop %v478
      %v495 = vmul.f32 %v367, %v479
      %v496 = vmul.f32 %v368, %v480
      %v497 = vmul.f32 %v369, %v481
      %v498 = vmul.f32 %v370, %v482
      %v499 = vmul.f32 %v371, %v483
      %v500 = vmul.f32 %v372, %v484
      %v501 = vmul.f32 %v373, %v485
      %v502 = vmul.f32 %v374, %v486
      %v503 = vmul.f32 %v375, %v487
      %v504 = vmul.f32 %v376, %v488
      %v505 = vmul.f32 %v377, %v489
      %v506 = vmul.f32 %v378, %v490
      %v507 = vmul.f32 %v379, %v491
      %v508 = vmul.f32 %v380, %v492
      %v509 = vmul.f32 %v381, %v493
      %v510 = vmul.f32 %v382, %v494
      %v512 = vlaneseq
      %v513 = vshrl.u32 %v512, 7
      %v514 = vsub.s32 0, %v513
      %v515 = vrot.slane %v299, %v514
      %v517 = vmul.f32 %v495, %v515
      %v518 = vmul.f32 %v496, %v515
      %v519 = vmul.f32 %v497, %v515
      %v520 = vmul.f32 %v498, %v515
      %v521 = vmul.f32 %v499, %v515
      %v522 = vmul.f32 %v500, %v515
      %v523 = vmul.f32 %v501, %v515
      %v524 = vmul.f32 %v502, %v515
      %v525 = vmul.f32 %v503, %v515
      %v526 = vmul.f32 %v504, %v515
      %v527 = vmul.f32 %v505, %v515
      %v528 = vmul.f32 %v506, %v515
      %v529 = vmul.f32 %v507, %v515
      %v530 = vmul.f32 %v508, %v515
      %v531 = vmul.f32 %v509, %v515
      %v532 = vmul.f32 %v510, %v515
      %v534 = vlaneseq
      %v535 = vshrl.u32 %v534, 7
      %v536 = vsub.s32 0, %v535
      %v537 = vrot.slane %v300, %v536
      %v539 = vadd.f32 %v517, %v537
      %v540 = vadd.f32 %v518, %v537
      %v541 = vadd.f32 %v519, %v537
      %v542 = vadd.f32 %v520, %v537
      %v543 = vadd.f32 %v521, %v537
      %v544 = vadd.f32 %v522, %v537
      %v545 = vadd.f32 %v523, %v537
      %v546 = vadd.f32 %v524, %v537
      %v547 = vadd.f32 %v525, %v537
      %v548 = vadd.f32 %v526, %v537
      %v549 = vadd.f32 %v527, %v537
      %v550 = vadd.f32 %v528, %v537
      %v551 = vadd.f32 %v529, %v537
      %v552 = vadd.f32 %v530, %v537
      %v553 = vadd.f32 %v531, %v537
      %v554 = vadd.f32 %v532, %v537
      %v555 = vpack.c.bf16 %v540, %v539
      %v556 = vpack.c.bf16 %v542, %v541
      %v557 = vpack.c.bf16 %v544, %v543
      %v558 = vpack.c.bf16 %v546, %v545
      %v559 = vpack.c.bf16 %v548, %v547
      %v560 = vpack.c.bf16 %v550, %v549
      %v561 = vpack.c.bf16 %v552, %v551
      %v562 = vpack.c.bf16 %v554, %v553
      %v563 = vld [vmem:[%s3] sm:$0xf]
      %v564 = vld [vmem:[%s3 + $0x4] sm:$0xf]
      %v565 = vld [vmem:[%s3 + $0x8] sm:$0xf]
      %v566 = vld [vmem:[%s3 + $0xc] sm:$0xf]
      %v567 = vld [vmem:[%s4] sm:$0x1]
      %v569 = vlaneseq
      %v570 = vshrl.u32 %v569, 7
      %v571 = vsub.s32 0, %v570
      %v572 = vrot.slane %v567, %v571
      %v578 = vunpack.c.l.b16 %v563
      %v579 = vunpack.c.l.b16 %v564
      %v580 = vunpack.c.l.b16 %v565
      %v581 = vunpack.c.l.b16 %v566
      %v582 = vpack.c.b16 %v579, %v578
      %v583 = vpack.c.b16 %v581, %v580
      %v587 = vsel %vm301, %v555, 0
      %v590 = vsel %vm301, %v556, 0
      %v593 = vsel %vm301, %v557, 0
      %v596 = vsel %vm301, %v558, 0
      %v599 = vsel %vm301, %v559, 0
      %v602 = vsel %vm301, %v560, 0
      %v605 = vsel %vm301, %v561, 0
      %v608 = vsel %vm301, %v562, 0
      %610 = vmatprep.subr.bf16.mxu0 0
      %611 = vmatpush1.bf16.msra.mxu0 %v582
      %612 = vmatprep.subr.bf16.mxu0 0
      %613 = vmatpush1.bf16.msra.mxu0 %v583
      %614 = vmatprep.subr.bf16.mxu0 0
      %615 = vmatpush1.bf16.msra.mxu0 0
      %616 = vmatprep.subr.bf16.mxu0 0
      %617 = vmatpush1.bf16.msra.mxu0 0
      %618 = vmatprep.subr.bf16.mxu0 0
      %619 = vmatpush1.bf16.msra.mxu0 0
      %620 = vmatprep.subr.bf16.mxu0 0
      %621 = vmatpush1.bf16.msra.mxu0 0
      %622 = vmatprep.subr.bf16.mxu0 0
      %623 = vmatpush1.bf16.msra.mxu0 0
      %624 = vmatprep.subr.bf16.mxu0 0
      %625 = vmatpush1.bf16.msra.mxu0 0
      %626 = vmatprep.subr.bf16.mxu0 0
      %627 = vmatpush1.bf16.msra.mxu0 0
      %628 = vmatprep.subr.bf16.mxu0 0
      %629 = vmatpush1.bf16.msra.mxu0 0
      %630 = vmatprep.subr.bf16.mxu0 0
      %631 = vmatpush1.bf16.msra.mxu0 0
      %632 = vmatprep.subr.bf16.mxu0 0
      %633 = vmatpush1.bf16.msra.mxu0 0
      %634 = vmatprep.subr.bf16.mxu0 0
      %635 = vmatpush1.bf16.msra.mxu0 0
      %636 = vmatprep.subr.bf16.mxu0 0
      %637 = vmatpush1.bf16.msra.mxu0 0
      %638 = vmatprep.subr.bf16.mxu0 0
      %639 = vmatpush1.bf16.msra.mxu0 0
      %640 = vmatprep.subr.bf16.mxu0 0
      %641 = vmatpush1.bf16.msra.mxu0 0
      %642 = vmatprep.mubr.bf16.mxu0 0
      %643 = vmatmul.mubr.bf16.gmra.mrb[0].mxu0 %v587
      %v644 = vpop.f32.mrb[0].mxu0
      %v645 = vadd.f32 %v572, %v644
      %v646 = vpop.f32.mrb[0].mxu0
      %v647 = vpop.f32.mrb[0].mxu0
      %v648 = vadd.f32 %v572, %v647
      %v649 = vpop.f32.mrb[0].mxu0
      %650 = vmatprep.mubr.bf16.mxu0 0
      %651 = vmatmul.mubr.bf16.gmra.mrb[0].mxu0 %v590
      %v652 = vpop.f32.mrb[0].mxu0
      %v653 = vadd.f32 %v572, %v652
      %v654 = vpop.f32.mrb[0].mxu0
      %v655 = vpop.f32.mrb[0].mxu0
      %v656 = vadd.f32 %v572, %v655
      %v657 = vpop.f32.mrb[0].mxu0
      %658 = vmatprep.mubr.bf16.mxu0 0
      %659 = vmatmul.mubr.bf16.gmra.mrb[0].mxu0 %v593
      %v660 = vpop.f32.mrb[0].mxu0
      %v661 = vadd.f32 %v572, %v660
      %v662 = vpop.f32.mrb[0].mxu0
      %v663 = vpop.f32.mrb[0].mxu0
      %v664 = vadd.f32 %v572, %v663
      %v665 = vpop.f32.mrb[0].mxu0
      %666 = vmatprep.mubr.bf16.mxu0 0
      %667 = vmatmul.mubr.bf16.gmra.mrb[0].mxu0 %v596
      %v668 = vpop.f32.mrb[0].mxu0
      %v669 = vadd.f32 %v572, %v668
      %v670 = vpop.f32.mrb[0].mxu0
      %v671 = vpop.f32.mrb[0].mxu0
      %v672 = vadd.f32 %v572, %v671
      %v673 = vpop.f32.mrb[0].mxu0
      %674 = vmatprep.mubr.bf16.mxu0 0
      %675 = vmatmul.mubr.bf16.gmra.mrb[0].mxu0 %v599
      %v676 = vpop.f32.mrb[0].mxu0
      %v677 = vadd.f32 %v572, %v676
      %v678 = vpop.f32.mrb[0].mxu0
      %v679 = vpop.f32.mrb[0].mxu0
      %v680 = vadd.f32 %v572, %v679
      %v681 = vpop.f32.mrb[0].mxu0
      %682 = vmatprep.mubr.bf16.mxu0 0
      %683 = vmatmul.mubr.bf16.gmra.mrb[0].mxu0 %v602
      %v684 = vpop.f32.mrb[0].mxu0
      %v685 = vadd.f32 %v572, %v684
      %v686 = vpop.f32.mrb[0].mxu0
      %v687 = vpop.f32.mrb[0].mxu0
      %v688 = vadd.f32 %v572, %v687
      %v689 = vpop.f32.mrb[0].mxu0
      %690 = vmatprep.mubr.bf16.mxu0 0
      %691 = vmatmul.mubr.bf16.gmra.mrb[0].mxu0 %v605
      %v692 = vpop.f32.mrb[0].mxu0
      %v693 = vadd.f32 %v572, %v692
      %v694 = vpop.f32.mrb[0].mxu0
      %v695 = vpop.f32.mrb[0].mxu0
      %v696 = vadd.f32 %v572, %v695
      %v697 = vpop.f32.mrb[0].mxu0
      %698 = vmatprep.mubr.bf16.mxu0 0
      %699 = vmatmul.mubr.bf16.gmra.mrb[0].mxu0 %v608
      %v700 = vpop.f32.mrb[0].mxu0
      %v701 = vadd.f32 %v572, %v700
      %v702 = vpop.f32.mrb[0].mxu0
      %v703 = vpop.f32.mrb[0].mxu0
      %v704 = vadd.f32 %v572, %v703
      %v705 = vpop.f32.mrb[0].mxu0
      %706 = vdwg.mxu0
      %v707 = vmul.f32 %v645, 0.5
      %v708 = vmul.f32 %v648, 0.5
      %v709 = vmul.f32 %v653, 0.5
      %v710 = vmul.f32 %v656, 0.5
      %v711 = vmul.f32 %v661, 0.5
      %v712 = vmul.f32 %v664, 0.5
      %v713 = vmul.f32 %v669, 0.5
      %v714 = vmul.f32 %v672, 0.5
      %v715 = vmul.f32 %v677, 0.5
      %v716 = vmul.f32 %v680, 0.5
      %v717 = vmul.f32 %v685, 0.5
      %v718 = vmul.f32 %v688, 0.5
      %v719 = vmul.f32 %v693, 0.5
      %v720 = vmul.f32 %v696, 0.5
      %v721 = vmul.f32 %v701, 0.5
      %v722 = vmul.f32 %v704, 0.5
      %v723 = vmul.f32 %v645, 0.70710677
      %v724 = vmul.f32 %v648, 0.70710677
      %v725 = vmul.f32 %v653, 0.70710677
      %v726 = vmul.f32 %v656, 0.70710677
      %v727 = vmul.f32 %v661, 0.70710677
      %v728 = vmul.f32 %v664, 0.70710677
      %v729 = vmul.f32 %v669, 0.70710677
      %v730 = vmul.f32 %v672, 0.70710677
      %v731 = vmul.f32 %v677, 0.70710677
      %v732 = vmul.f32 %v680, 0.70710677
      %v733 = vmul.f32 %v685, 0.70710677
      %v734 = vmul.f32 %v688, 0.70710677
      %v735 = vmul.f32 %v693, 0.70710677
      %v736 = vmul.f32 %v696, 0.70710677
      %v737 = vmul.f32 %v701, 0.70710677
      %v738 = vmul.f32 %v704, 0.70710677
      %vm739 = vcmp.ge.f32.partialorder %v723, 0.0
      %vm740 = vcmp.ge.f32.partialorder %v724, 0.0
      %vm741 = vcmp.ge.f32.partialorder %v725, 0.0
      %vm742 = vcmp.ge.f32.partialorder %v726, 0.0
      %vm743 = vcmp.ge.f32.partialorder %v727, 0.0
      %vm744 = vcmp.ge.f32.partialorder %v728, 0.0
      %vm745 = vcmp.ge.f32.partialorder %v729, 0.0
      %vm746 = vcmp.ge.f32.partialorder %v730, 0.0
      %vm747 = vcmp.ge.f32.partialorder %v731, 0.0
      %vm748 = vcmp.ge.f32.partialorder %v732, 0.0
      %vm749 = vcmp.ge.f32.partialorder %v733, 0.0
      %vm750 = vcmp.ge.f32.partialorder %v734, 0.0
      %vm751 = vcmp.ge.f32.partialorder %v735, 0.0
      %vm752 = vcmp.ge.f32.partialorder %v736, 0.0
      %vm753 = vcmp.ge.f32.partialorder %v737, 0.0
      %vm754 = vcmp.ge.f32.partialorder %v738, 0.0
      %v755 = vsel %vm739, 1.0, -1.0
      %v756 = vsel %vm740, 1.0, -1.0
      %v757 = vsel %vm741, 1.0, -1.0
      %v758 = vsel %vm742, 1.0, -1.0
      %v759 = vsel %vm743, 1.0, -1.0
      %v760 = vsel %vm744, 1.0, -1.0
      %v761 = vsel %vm745, 1.0, -1.0
      %v762 = vsel %vm746, 1.0, -1.0
      %v763 = vsel %vm747, 1.0, -1.0
      %v764 = vsel %vm748, 1.0, -1.0
      %v765 = vsel %vm749, 1.0, -1.0
      %v766 = vsel %vm750, 1.0, -1.0
      %v767 = vsel %vm751, 1.0, -1.0
      %v768 = vsel %vm752, 1.0, -1.0
      %v769 = vsel %vm753, 1.0, -1.0
      %v770 = vsel %vm754, 1.0, -1.0
      %v771 = vand.u32 2147483647, %v723
      %v772 = vand.u32 2147483647, %v724
      %v773 = vand.u32 2147483647, %v725
      %v774 = vand.u32 2147483647, %v726
      %v775 = vand.u32 2147483647, %v727
      %v776 = vand.u32 2147483647, %v728
      %v777 = vand.u32 2147483647, %v729
      %v778 = vand.u32 2147483647, %v730
      %v779 = vand.u32 2147483647, %v731
      %v780 = vand.u32 2147483647, %v732
      %v781 = vand.u32 2147483647, %v733
      %v782 = vand.u32 2147483647, %v734
      %v783 = vand.u32 2147483647, %v735
      %v784 = vand.u32 2147483647, %v736
      %v785 = vand.u32 2147483647, %v737
      %v786 = vand.u32 2147483647, %v738
      %v787 = vmul.f32 %v771, 0.3275911
      %v788 = vmul.f32 %v772, 0.3275911
      %v789 = vmul.f32 %v773, 0.3275911
      %v790 = vmul.f32 %v774, 0.3275911
      %v791 = vmul.f32 %v775, 0.3275911
      %v792 = vmul.f32 %v776, 0.3275911
      %v793 = vmul.f32 %v777, 0.3275911
      %v794 = vmul.f32 %v778, 0.3275911
      %v795 = vmul.f32 %v779, 0.3275911
      %v796 = vmul.f32 %v780, 0.3275911
      %v797 = vmul.f32 %v781, 0.3275911
      %v798 = vmul.f32 %v782, 0.3275911
      %v799 = vmul.f32 %v783, 0.3275911
      %v800 = vmul.f32 %v784, 0.3275911
      %v801 = vmul.f32 %v785, 0.3275911
      %v802 = vmul.f32 %v786, 0.3275911
      %v803 = vadd.f32 %v787, 1.0
      %v804 = vadd.f32 %v788, 1.0
      %v805 = vadd.f32 %v789, 1.0
      %v806 = vadd.f32 %v790, 1.0
      %v807 = vadd.f32 %v791, 1.0
      %v808 = vadd.f32 %v792, 1.0
      %v809 = vadd.f32 %v793, 1.0
      %v810 = vadd.f32 %v794, 1.0
      %v811 = vadd.f32 %v795, 1.0
      %v812 = vadd.f32 %v796, 1.0
      %v813 = vadd.f32 %v797, 1.0
      %v814 = vadd.f32 %v798, 1.0
      %v815 = vadd.f32 %v799, 1.0
      %v816 = vadd.f32 %v800, 1.0
      %v817 = vadd.f32 %v801, 1.0
      %v818 = vadd.f32 %v802, 1.0
      %v819 = vrcp.pop %v803
      %v820 = vmul.f32 1.0, %v819
      %v821 = vrcp.pop %v804
      %v822 = vmul.f32 1.0, %v821
      %v823 = vrcp.pop %v805
      %v824 = vmul.f32 1.0, %v823
      %v825 = vrcp.pop %v806
      %v826 = vmul.f32 1.0, %v825
      %v827 = vrcp.pop %v807
      %v828 = vmul.f32 1.0, %v827
      %v829 = vrcp.pop %v808
      %v830 = vmul.f32 1.0, %v829
      %v831 = vrcp.pop %v809
      %v832 = vmul.f32 1.0, %v831
      %v833 = vrcp.pop %v810
      %v834 = vmul.f32 1.0, %v833
      %v835 = vrcp.pop %v811
      %v836 = vmul.f32 1.0, %v835
      %v837 = vrcp.pop %v812
      %v838 = vmul.f32 1.0, %v837
      %v839 = vrcp.pop %v813
      %v840 = vmul.f32 1.0, %v839
      %v841 = vrcp.pop %v814
      %v842 = vmul.f32 1.0, %v841
      %v843 = vrcp.pop %v815
      %v844 = vmul.f32 1.0, %v843
      %v845 = vrcp.pop %v816
      %v846 = vmul.f32 1.0, %v845
      %v847 = vrcp.pop %v817
      %v848 = vmul.f32 1.0, %v847
      %v849 = vrcp.pop %v818
      %v850 = vmul.f32 1.0, %v849
      %v851 = vmul.f32 %v820, 1.0614054
      %v852 = vmul.f32 %v822, 1.0614054
      %v853 = vmul.f32 %v824, 1.0614054
      %v854 = vmul.f32 %v826, 1.0614054
      %v855 = vmul.f32 %v828, 1.0614054
      %v856 = vmul.f32 %v830, 1.0614054
      %v857 = vmul.f32 %v832, 1.0614054
      %v858 = vmul.f32 %v834, 1.0614054
      %v859 = vmul.f32 %v836, 1.0614054
      %v860 = vmul.f32 %v838, 1.0614054
      %v861 = vmul.f32 %v840, 1.0614054
      %v862 = vmul.f32 %v842, 1.0614054
      %v863 = vmul.f32 %v844, 1.0614054
      %v864 = vmul.f32 %v846, 1.0614054
      %v865 = vmul.f32 %v848, 1.0614054
      %v866 = vmul.f32 %v850, 1.0614054
      %v867 = vadd.f32 %v851, -1.4531521
      %v868 = vadd.f32 %v852, -1.4531521
      %v869 = vadd.f32 %v853, -1.4531521
      %v870 = vadd.f32 %v854, -1.4531521
      %v871 = vadd.f32 %v855, -1.4531521
      %v872 = vadd.f32 %v856, -1.4531521
      %v873 = vadd.f32 %v857, -1.4531521
      %v874 = vadd.f32 %v858, -1.4531521
      %v875 = vadd.f32 %v859, -1.4531521
      %v876 = vadd.f32 %v860, -1.4531521
      %v877 = vadd.f32 %v861, -1.4531521
      %v878 = vadd.f32 %v862, -1.4531521
      %v879 = vadd.f32 %v863, -1.4531521
      %v880 = vadd.f32 %v864, -1.4531521
      %v881 = vadd.f32 %v865, -1.4531521
      %v882 = vadd.f32 %v866, -1.4531521
      %v883 = vmul.f32 %v867, %v820
      %v884 = vmul.f32 %v868, %v822
      %v885 = vmul.f32 %v869, %v824
      %v886 = vmul.f32 %v870, %v826
      %v887 = vmul.f32 %v871, %v828
      %v888 = vmul.f32 %v872, %v830
      %v889 = vmul.f32 %v873, %v832
      %v890 = vmul.f32 %v874, %v834
      %v891 = vmul.f32 %v875, %v836
      %v892 = vmul.f32 %v876, %v838
      %v893 = vmul.f32 %v877, %v840
      %v894 = vmul.f32 %v878, %v842
      %v895 = vmul.f32 %v879, %v844
      %v896 = vmul.f32 %v880, %v846
      %v897 = vmul.f32 %v881, %v848
      %v898 = vmul.f32 %v882, %v850
      %v899 = vadd.f32 %v883, 1.4214138
      %v900 = vadd.f32 %v884, 1.4214138
      %v901 = vadd.f32 %v885, 1.4214138
      %v902 = vadd.f32 %v886, 1.4214138
      %v903 = vadd.f32 %v887, 1.4214138
      %v904 = vadd.f32 %v888, 1.4214138
      %v905 = vadd.f32 %v889, 1.4214138
      %v906 = vadd.f32 %v890, 1.4214138
      %v907 = vadd.f32 %v891, 1.4214138
      %v908 = vadd.f32 %v892, 1.4214138
      %v909 = vadd.f32 %v893, 1.4214138
      %v910 = vadd.f32 %v894, 1.4214138
      %v911 = vadd.f32 %v895, 1.4214138
      %v912 = vadd.f32 %v896, 1.4214138
      %v913 = vadd.f32 %v897, 1.4214138
      %v914 = vadd.f32 %v898, 1.4214138
      %v915 = vmul.f32 %v899, %v820
      %v916 = vmul.f32 %v900, %v822
      %v917 = vmul.f32 %v901, %v824
      %v918 = vmul.f32 %v902, %v826
      %v919 = vmul.f32 %v903, %v828
      %v920 = vmul.f32 %v904, %v830
      %v921 = vmul.f32 %v905, %v832
      %v922 = vmul.f32 %v906, %v834
      %v923 = vmul.f32 %v907, %v836
      %v924 = vmul.f32 %v908, %v838
      %v925 = vmul.f32 %v909, %v840
      %v926 = vmul.f32 %v910, %v842
      %v927 = vmul.f32 %v911, %v844
      %v928 = vmul.f32 %v912, %v846
      %v929 = vmul.f32 %v913, %v848
      %v930 = vmul.f32 %v914, %v850
      %v931 = vadd.f32 %v915, -0.28449672
      %v932 = vadd.f32 %v916, -0.28449672
      %v933 = vadd.f32 %v917, -0.28449672
      %v934 = vadd.f32 %v918, -0.28449672
      %v935 = vadd.f32 %v919, -0.28449672
      %v936 = vadd.f32 %v920, -0.28449672
      %v937 = vadd.f32 %v921, -0.28449672
      %v938 = vadd.f32 %v922, -0.28449672
      %v939 = vadd.f32 %v923, -0.28449672
      %v940 = vadd.f32 %v924, -0.28449672
      %v941 = vadd.f32 %v925, -0.28449672
      %v942 = vadd.f32 %v926, -0.28449672
      %v943 = vadd.f32 %v927, -0.28449672
      %v944 = vadd.f32 %v928, -0.28449672
      %v945 = vadd.f32 %v929, -0.28449672
      %v946 = vadd.f32 %v930, -0.28449672
      %v947 = vmul.f32 %v931, %v820
      %v948 = vmul.f32 %v932, %v822
      %v949 = vmul.f32 %v933, %v824
      %v950 = vmul.f32 %v934, %v826
      %v951 = vmul.f32 %v935, %v828
      %v952 = vmul.f32 %v936, %v830
      %v953 = vmul.f32 %v937, %v832
      %v954 = vmul.f32 %v938, %v834
      %v955 = vmul.f32 %v939, %v836
      %v956 = vmul.f32 %v940, %v838
      %v957 = vmul.f32 %v941, %v840
      %v958 = vmul.f32 %v942, %v842
      %v959 = vmul.f32 %v943, %v844
      %v960 = vmul.f32 %v944, %v846
      %v961 = vmul.f32 %v945, %v848
      %v962 = vmul.f32 %v946, %v850
      %v963 = vadd.f32 %v947, 0.2548296
      %v964 = vadd.f32 %v948, 0.2548296
      %v965 = vadd.f32 %v949, 0.2548296
      %v966 = vadd.f32 %v950, 0.2548296
      %v967 = vadd.f32 %v951, 0.2548296
      %v968 = vadd.f32 %v952, 0.2548296
      %v969 = vadd.f32 %v953, 0.2548296
      %v970 = vadd.f32 %v954, 0.2548296
      %v971 = vadd.f32 %v955, 0.2548296
      %v972 = vadd.f32 %v956, 0.2548296
      %v973 = vadd.f32 %v957, 0.2548296
      %v974 = vadd.f32 %v958, 0.2548296
      %v975 = vadd.f32 %v959, 0.2548296
      %v976 = vadd.f32 %v960, 0.2548296
      %v977 = vadd.f32 %v961, 0.2548296
      %v978 = vadd.f32 %v962, 0.2548296
      %v979 = vmul.f32 %v963, %v820
      %v980 = vmul.f32 %v964, %v822
      %v981 = vmul.f32 %v965, %v824
      %v982 = vmul.f32 %v966, %v826
      %v983 = vmul.f32 %v967, %v828
      %v984 = vmul.f32 %v968, %v830
      %v985 = vmul.f32 %v969, %v832
      %v986 = vmul.f32 %v970, %v834
      %v987 = vmul.f32 %v971, %v836
      %v988 = vmul.f32 %v972, %v838
      %v989 = vmul.f32 %v973, %v840
      %v990 = vmul.f32 %v974, %v842
      %v991 = vmul.f32 %v975, %v844
      %v992 = vmul.f32 %v976, %v846
      %v993 = vmul.f32 %v977, %v848
      %v994 = vmul.f32 %v978, %v850
      %v995 = vsub.f32 0.0, %v771
      %v996 = vsub.f32 0.0, %v772
      %v997 = vsub.f32 0.0, %v773
      %v998 = vsub.f32 0.0, %v774
      %v999 = vsub.f32 0.0, %v775
      %v1000 = vsub.f32 0.0, %v776
      %v1001 = vsub.f32 0.0, %v777
      %v1002 = vsub.f32 0.0, %v778
      %v1003 = vsub.f32 0.0, %v779
      %v1004 = vsub.f32 0.0, %v780
      %v1005 = vsub.f32 0.0, %v781
      %v1006 = vsub.f32 0.0, %v782
      %v1007 = vsub.f32 0.0, %v783
      %v1008 = vsub.f32 0.0, %v784
      %v1009 = vsub.f32 0.0, %v785
      %v1010 = vsub.f32 0.0, %v786
      %v1011 = vmul.f32 %v995, %v771
      %v1012 = vmul.f32 %v996, %v772
      %v1013 = vmul.f32 %v997, %v773
      %v1014 = vmul.f32 %v998, %v774
      %v1015 = vmul.f32 %v999, %v775
      %v1016 = vmul.f32 %v1000, %v776
      %v1017 = vmul.f32 %v1001, %v777
      %v1018 = vmul.f32 %v1002, %v778
      %v1019 = vmul.f32 %v1003, %v779
      %v1020 = vmul.f32 %v1004, %v780
      %v1021 = vmul.f32 %v1005, %v781
      %v1022 = vmul.f32 %v1006, %v782
      %v1023 = vmul.f32 %v1007, %v783
      %v1024 = vmul.f32 %v1008, %v784
      %v1025 = vmul.f32 %v1009, %v785
      %v1026 = vmul.f32 %v1010, %v786
      %v1027 = vmul.f32 %v1011, 1.442695
      %v1028 = vpow.pop %v1027
      %v1029 = vmul.f32 %v1012, 1.442695
      %v1030 = vpow.pop %v1029
      %v1031 = vmul.f32 %v1013, 1.442695
      %v1032 = vpow.pop %v1031
      %v1033 = vmul.f32 %v1014, 1.442695
      %v1034 = vpow.pop %v1033
      %v1035 = vmul.f32 %v1015, 1.442695
      %v1036 = vpow.pop %v1035
      %v1037 = vmul.f32 %v1016, 1.442695
      %v1038 = vpow.pop %v1037
      %v1039 = vmul.f32 %v1017, 1.442695
      %v1040 = vpow.pop %v1039
      %v1041 = vmul.f32 %v1018, 1.442695
      %v1042 = vpow.pop %v1041
      %v1043 = vmul.f32 %v1019, 1.442695
      %v1044 = vpow.pop %v1043
      %v1045 = vmul.f32 %v1020, 1.442695
      %v1046 = vpow.pop %v1045
      %v1047 = vmul.f32 %v1021, 1.442695
      %v1048 = vpow.pop %v1047
      %v1049 = vmul.f32 %v1022, 1.442695
      %v1050 = vpow.pop %v1049
      %v1051 = vmul.f32 %v1023, 1.442695
      %v1052 = vpow.pop %v1051
      %v1053 = vmul.f32 %v1024, 1.442695
      %v1054 = vpow.pop %v1053
      %v1055 = vmul.f32 %v1025, 1.442695
      %v1056 = vpow.pop %v1055
      %v1057 = vmul.f32 %v1026, 1.442695
      %v1058 = vpow.pop %v1057
      %v1059 = vmul.f32 %v979, %v1028
      %v1060 = vmul.f32 %v980, %v1030
      %v1061 = vmul.f32 %v981, %v1032
      %v1062 = vmul.f32 %v982, %v1034
      %v1063 = vmul.f32 %v983, %v1036
      %v1064 = vmul.f32 %v984, %v1038
      %v1065 = vmul.f32 %v985, %v1040
      %v1066 = vmul.f32 %v986, %v1042
      %v1067 = vmul.f32 %v987, %v1044
      %v1068 = vmul.f32 %v988, %v1046
      %v1069 = vmul.f32 %v989, %v1048
      %v1070 = vmul.f32 %v990, %v1050
      %v1071 = vmul.f32 %v991, %v1052
      %v1072 = vmul.f32 %v992, %v1054
      %v1073 = vmul.f32 %v993, %v1056
      %v1074 = vmul.f32 %v994, %v1058
      %v1075 = vsub.f32 1.0, %v1059
      %v1076 = vsub.f32 1.0, %v1060
      %v1077 = vsub.f32 1.0, %v1061
      %v1078 = vsub.f32 1.0, %v1062
      %v1079 = vsub.f32 1.0, %v1063
      %v1080 = vsub.f32 1.0, %v1064
      %v1081 = vsub.f32 1.0, %v1065
      %v1082 = vsub.f32 1.0, %v1066
      %v1083 = vsub.f32 1.0, %v1067
      %v1084 = vsub.f32 1.0, %v1068
      %v1085 = vsub.f32 1.0, %v1069
      %v1086 = vsub.f32 1.0, %v1070
      %v1087 = vsub.f32 1.0, %v1071
      %v1088 = vsub.f32 1.0, %v1072
      %v1089 = vsub.f32 1.0, %v1073
      %v1090 = vsub.f32 1.0, %v1074
      %v1091 = vmul.f32 %v755, %v1075
      %v1092 = vmul.f32 %v756, %v1076
      %v1093 = vmul.f32 %v757, %v1077
      %v1094 = vmul.f32 %v758, %v1078
      %v1095 = vmul.f32 %v759, %v1079
      %v1096 = vmul.f32 %v760, %v1080
      %v1097 = vmul.f32 %v761, %v1081
      %v1098 = vmul.f32 %v762, %v1082
      %v1099 = vmul.f32 %v763, %v1083
      %v1100 = vmul.f32 %v764, %v1084
      %v1101 = vmul.f32 %v765, %v1085
      %v1102 = vmul.f32 %v766, %v1086
      %v1103 = vmul.f32 %v767, %v1087
      %v1104 = vmul.f32 %v768, %v1088
      %v1105 = vmul.f32 %v769, %v1089
      %v1106 = vmul.f32 %v770, %v1090
      %v1107 = vadd.f32 %v1091, 1.0
      %v1108 = vadd.f32 %v1092, 1.0
      %v1109 = vadd.f32 %v1093, 1.0
      %v1110 = vadd.f32 %v1094, 1.0
      %v1111 = vadd.f32 %v1095, 1.0
      %v1112 = vadd.f32 %v1096, 1.0
      %v1113 = vadd.f32 %v1097, 1.0
      %v1114 = vadd.f32 %v1098, 1.0
      %v1115 = vadd.f32 %v1099, 1.0
      %v1116 = vadd.f32 %v1100, 1.0
      %v1117 = vadd.f32 %v1101, 1.0
      %v1118 = vadd.f32 %v1102, 1.0
      %v1119 = vadd.f32 %v1103, 1.0
      %v1120 = vadd.f32 %v1104, 1.0
      %v1121 = vadd.f32 %v1105, 1.0
      %v1122 = vadd.f32 %v1106, 1.0
      %v1123 = vmul.f32 %v707, %v1107
      %v1124 = vmul.f32 %v708, %v1108
      %v1125 = vmul.f32 %v709, %v1109
      %v1126 = vmul.f32 %v710, %v1110
      %v1127 = vmul.f32 %v711, %v1111
      %v1128 = vmul.f32 %v712, %v1112
      %v1129 = vmul.f32 %v713, %v1113
      %v1130 = vmul.f32 %v714, %v1114
      %v1131 = vmul.f32 %v715, %v1115
      %v1132 = vmul.f32 %v716, %v1116
      %v1133 = vmul.f32 %v717, %v1117
      %v1134 = vmul.f32 %v718, %v1118
      %v1135 = vmul.f32 %v719, %v1119
      %v1136 = vmul.f32 %v720, %v1120
      %v1137 = vmul.f32 %v721, %v1121
      %v1138 = vmul.f32 %v722, %v1122
      %v1139 = vpack.c.bf16 %v1124, %v1123
      %v1140 = vpack.c.bf16 %v1126, %v1125
      %v1141 = vpack.c.bf16 %v1128, %v1127
      %v1142 = vpack.c.bf16 %v1130, %v1129
      %v1143 = vpack.c.bf16 %v1132, %v1131
      %v1144 = vpack.c.bf16 %v1134, %v1133
      %v1145 = vpack.c.bf16 %v1136, %v1135
      %v1146 = vpack.c.bf16 %v1138, %v1137
      %v1147 = vld [vmem:[%s5] sm:$0xf]
      %v1148 = vld [vmem:[%s5 + $0x4] sm:$0xf]
      %v1149 = vld [vmem:[%s5 + $0x8] sm:$0xf]
      %v1150 = vld [vmem:[%s5 + $0xc] sm:$0xf]
      %v1151 = vld [vmem:[%s5 + $0x10] sm:$0xf]
      %v1152 = vld [vmem:[%s5 + $0x14] sm:$0xf]
      %v1153 = vld [vmem:[%s5 + $0x18] sm:$0xf]
      %v1154 = vld [vmem:[%s5 + $0x1c] sm:$0xf]
      %v1155 = vld [vmem:[%s6] sm:$0x1]
      %v1157 = vlaneseq
      %v1158 = vshrl.u32 %v1157, 7
      %v1159 = vsub.s32 0, %v1158
      %v1160 = vrot.slane %v1155, %v1159
      %v1170 = vunpack.c.l.b16 %v1147
      %v1171 = vunpack.c.l.b16 %v1148
      %v1172 = vunpack.c.l.b16 %v1149
      %v1173 = vunpack.c.l.b16 %v1150
      %v1174 = vunpack.c.l.b16 %v1151
      %v1175 = vunpack.c.l.b16 %v1152
      %v1176 = vunpack.c.l.b16 %v1153
      %v1177 = vunpack.c.l.b16 %v1154
      %v1178 = vpack.c.b16 %v1171, %v1170
      %v1179 = vpack.c.b16 %v1173, %v1172
      %v1180 = vpack.c.b16 %v1175, %v1174
      %v1181 = vpack.c.b16 %v1177, %v1176
      %vm1186 = vcmask 523264
      %v1188 = vsel %vm1186, %v1139, 0
      %v1191 = vsel %vm1186, %v1140, 0
      %v1194 = vsel %vm1186, %v1141, 0
      %v1197 = vsel %vm1186, %v1142, 0
      %v1200 = vsel %vm1186, %v1143, 0
      %v1203 = vsel %vm1186, %v1144, 0
      %v1206 = vsel %vm1186, %v1145, 0
      %v1209 = vsel %vm1186, %v1146, 0
      %1211 = vmatprep.subr.bf16.mxu0 0
      %1212 = vmatpush1.bf16.msra.mxu0 %v1178
      %1213 = vmatprep.subr.bf16.mxu0 0
      %1214 = vmatpush1.bf16.msra.mxu0 %v1179
      %1215 = vmatprep.subr.bf16.mxu0 0
      %1216 = vmatpush1.bf16.msra.mxu0 %v1180
      %1217 = vmatprep.subr.bf16.mxu0 0
      %1218 = vmatpush1.bf16.msra.mxu0 %v1181
      %1219 = vmatprep.subr.bf16.mxu0 0
      %1220 = vmatpush1.bf16.msra.mxu0 0
      %1221 = vmatprep.subr.bf16.mxu0 0
      %1222 = vmatpush1.bf16.msra.mxu0 0
      %1223 = vmatprep.subr.bf16.mxu0 0
      %1224 = vmatpush1.bf16.msra.mxu0 0
      %1225 = vmatprep.subr.bf16.mxu0 0
      %1226 = vmatpush1.bf16.msra.mxu0 0
      %1227 = vmatprep.subr.bf16.mxu0 0
      %1228 = vmatpush1.bf16.msra.mxu0 0
      %1229 = vmatprep.subr.bf16.mxu0 0
      %1230 = vmatpush1.bf16.msra.mxu0 0
      %1231 = vmatprep.subr.bf16.mxu0 0
      %1232 = vmatpush1.bf16.msra.mxu0 0
      %1233 = vmatprep.subr.bf16.mxu0 0
      %1234 = vmatpush1.bf16.msra.mxu0 0
      %1235 = vmatprep.subr.bf16.mxu0 0
      %1236 = vmatpush1.bf16.msra.mxu0 0
      %1237 = vmatprep.subr.bf16.mxu0 0
      %1238 = vmatpush1.bf16.msra.mxu0 0
      %1239 = vmatprep.subr.bf16.mxu0 0
      %1240 = vmatpush1.bf16.msra.mxu0 0
      %1241 = vmatprep.subr.bf16.mxu0 0
      %1242 = vmatpush1.bf16.msra.mxu0 0
      %1243 = vmatprep.mubr.bf16.mxu0 0
      %1244 = vmatmul.mubr.bf16.gmra.mrb[0].mxu0 %v1188
      %v1245 = vpop.f32.mrb[0].mxu0
      %v1246 = vadd.f32 %v1160, %v1245
      %v1247 = vpop.f32.mrb[0].mxu0
      %v1248 = vpop.f32.mrb[0].mxu0
      %v1249 = vadd.f32 %v1160, %v1248
      %v1250 = vpop.f32.mrb[0].mxu0
      %1251 = vmatprep.mubr.bf16.mxu0 0
      %1252 = vmatmul.mubr.bf16.gmra.mrb[0].mxu0 %v1191
      %v1253 = vpop.f32.mrb[0].mxu0
      %v1254 = vadd.f32 %v1160, %v1253
      %v1255 = vpop.f32.mrb[0].mxu0
      %v1256 = vpop.f32.mrb[0].mxu0
      %v1257 = vadd.f32 %v1160, %v1256
      %v1258 = vpop.f32.mrb[0].mxu0
      %1259 = vmatprep.mubr.bf16.mxu0 0
      %1260 = vmatmul.mubr.bf16.gmra.mrb[0].mxu0 %v1194
      %v1261 = vpop.f32.mrb[0].mxu0
      %v1262 = vadd.f32 %v1160, %v1261
      %v1263 = vpop.f32.mrb[0].mxu0
      %v1264 = vpop.f32.mrb[0].mxu0
      %v1265 = vadd.f32 %v1160, %v1264
      %v1266 = vpop.f32.mrb[0].mxu0
      %1267 = vmatprep.mubr.bf16.mxu0 0
      %1268 = vmatmul.mubr.bf16.gmra.mrb[0].mxu0 %v1197
      %v1269 = vpop.f32.mrb[0].mxu0
      %v1270 = vadd.f32 %v1160, %v1269
      %v1271 = vpop.f32.mrb[0].mxu0
      %v1272 = vpop.f32.mrb[0].mxu0
      %v1273 = vadd.f32 %v1160, %v1272
      %v1274 = vpop.f32.mrb[0].mxu0
      %1275 = vmatprep.mubr.bf16.mxu0 0
      %1276 = vmatmul.mubr.bf16.gmra.mrb[0].mxu0 %v1200
      %v1277 = vpop.f32.mrb[0].mxu0
      %v1278 = vadd.f32 %v1160, %v1277
      %v1279 = vpop.f32.mrb[0].mxu0
      %v1280 = vpop.f32.mrb[0].mxu0
      %v1281 = vadd.f32 %v1160, %v1280
      %v1282 = vpop.f32.mrb[0].mxu0
      %1283 = vmatprep.mubr.bf16.mxu0 0
      %1284 = vmatmul.mubr.bf16.gmra.mrb[0].mxu0 %v1203
      %v1285 = vpop.f32.mrb[0].mxu0
      %v1286 = vadd.f32 %v1160, %v1285
      %v1287 = vpop.f32.mrb[0].mxu0
      %v1288 = vpop.f32.mrb[0].mxu0
      %v1289 = vadd.f32 %v1160, %v1288
      %v1290 = vpop.f32.mrb[0].mxu0
      %1291 = vmatprep.mubr.bf16.mxu0 0
      %1292 = vmatmul.mubr.bf16.gmra.mrb[0].mxu0 %v1206
      %v1293 = vpop.f32.mrb[0].mxu0
      %v1294 = vadd.f32 %v1160, %v1293
      %v1295 = vpop.f32.mrb[0].mxu0
      %v1296 = vpop.f32.mrb[0].mxu0
      %v1297 = vadd.f32 %v1160, %v1296
      %v1298 = vpop.f32.mrb[0].mxu0
      %1299 = vmatprep.mubr.bf16.mxu0 0
      %1300 = vmatmul.mubr.bf16.gmra.mrb[0].mxu0 %v1209
      %v1301 = vpop.f32.mrb[0].mxu0
      %v1302 = vadd.f32 %v1160, %v1301
      %v1303 = vpop.f32.mrb[0].mxu0
      %v1304 = vpop.f32.mrb[0].mxu0
      %v1305 = vadd.f32 %v1160, %v1304
      %v1306 = vpop.f32.mrb[0].mxu0
      %1307 = vdwg.mxu0
      %v1308 = vadd.f32 %v283, %v1246
      %v1309 = vadd.f32 %v284, %v1249
      %v1310 = vadd.f32 %v285, %v1254
      %v1311 = vadd.f32 %v286, %v1257
      %v1312 = vadd.f32 %v287, %v1262
      %v1313 = vadd.f32 %v288, %v1265
      %v1314 = vadd.f32 %v289, %v1270
      %v1315 = vadd.f32 %v290, %v1273
      %v1316 = vadd.f32 %v291, %v1278
      %v1317 = vadd.f32 %v292, %v1281
      %v1318 = vadd.f32 %v293, %v1286
      %v1319 = vadd.f32 %v294, %v1289
      %v1320 = vadd.f32 %v295, %v1294
      %v1321 = vadd.f32 %v296, %v1297
      %v1322 = vadd.f32 %v297, %v1302
      %v1323 = vadd.f32 %v298, %v1305
      %1324 = vst.msk [vmem:[%s280] sm:$0xff] %vm301, %v1308
      %1325 = vst.msk [vmem:[%s280 + $0x8] sm:$0xff] %vm301, %v1309
      %1326 = vst.msk [vmem:[%s280 + $0x10] sm:$0xff] %vm301, %v1310
      %1327 = vst.msk [vmem:[%s280 + $0x18] sm:$0xff] %vm301, %v1311
      %1328 = vst.msk [vmem:[%s280 + $0x20] sm:$0xff] %vm301, %v1312
      %1329 = vst.msk [vmem:[%s280 + $0x28] sm:$0xff] %vm301, %v1313
      %1330 = vst.msk [vmem:[%s280 + $0x30] sm:$0xff] %vm301, %v1314
      %1331 = vst.msk [vmem:[%s280 + $0x38] sm:$0xff] %vm301, %v1315
      %1332 = vst.msk [vmem:[%s280 + $0x40] sm:$0xff] %vm301, %v1316
      %1333 = vst.msk [vmem:[%s280 + $0x48] sm:$0xff] %vm301, %v1317
      %1334 = vst.msk [vmem:[%s280 + $0x50] sm:$0xff] %vm301, %v1318
      %1335 = vst.msk [vmem:[%s280 + $0x58] sm:$0xff] %vm301, %v1319
      %1336 = vst.msk [vmem:[%s280 + $0x60] sm:$0xff] %vm301, %v1320
      %1337 = vst.msk [vmem:[%s280 + $0x68] sm:$0xff] %vm301, %v1321
      %1338 = vst.msk [vmem:[%s280 + $0x70] sm:$0xff] %vm301, %v1322
      %1339 = vst.msk [vmem:[%s280 + $0x78] sm:$0xff] %vm301, %v1323
      %s1340 = smul.u32 16, %s18
      %p1341 = scmp.lt.s32.totalorder %s1340, 31
      %s1342 = scalar_select %p1341, %s1340, 31
      %s1343 = smul.addr %s1342, 8
      %s1344 = scalar_lea.vmem %s7, %s1343
      // Predicated region
      $region49: #{vit_forward.11} parent=47 // pred_check
        %p1345 = pneg %p188
      $region50: #{vit_forward.11} parent=47 // pred_check_branch
        %1347 = sbr.rel (%p1345) target = $region52
      $region51: #{vit_forward.11} parent=47 // pred_region
        %s1348 = smul.u32 16, %s18
      $region52: #{vit_forward.11} parent=47 // pred_fallthru
        _
    $region48: #{vit_forward.11} parent=5 // pred_fallthru
      _
    %p1349 = scmp.le.s32.totalorder 2, %s13
    // Predicated region
    $region53: #{vit_forward.11} parent=5 // pred_check
      %p1350 = pneg %p1349
    $region54: #{vit_forward.11} parent=5 // pred_check_branch
      %1352 = sbr.rel (%p1350) target = $region56
    $region55: #{vit_forward.11} parent=5 // pred_region
      %s1353 = ssub.s32 %s13, 2
      // Predicated region
      $region57: #{vit_forward.11} parent=55 // pred_check
        %p1354 = pneg %p194
      $region58: #{vit_forward.11} parent=55 // pred_check_branch
        %1356 = sbr.rel (%p1354) target = $region60
      $region59: #{vit_forward.11} parent=55 // pred_region
        %s1357 = smul.u32 16, %s19
        %p1358 = scmp.lt.s32.totalorder %s1357, 31
        %s1359 = scalar_select %p1358, %s1357, 31
        %s1360 = smul.addr %s1359, 8
        %s1361 = scalar_lea.vmem %s7, %s1360
      $region60: #{vit_forward.11} parent=55 // pred_fallthru
        _
    $region56: #{vit_forward.11} parent=5 // pred_fallthru
      _
  $region6: #{vit_forward.11} parent=0 // loop_footer
    %s17 = sadd.s32 1, %s13
  $region7: #{vit_forward.11} parent=0 // loop_footer_branch
    %12 = sbr.rel target = $region3
  $region8: #{vit_forward.11} parent=0 // loop_exit
    _

</llo_original>
